<compile_context>
chip_gen: v7x
topology: tpu7x:2x2x1
jax: 0.10.0
libtpu: 0.0.40
codegen_flags: <defaults>
</compile_context>

<pallas_src>
import functools

import jax
import jax.numpy as jnp
from jax.experimental import pallas as pl
from jax.experimental.pallas import tpu as pltpu


_EXT = 8   # extended h1 rows per time tile (need >= Tt+2 total; 8-aligned)


def _segmenter_kernel(x_ref, w1_ref, b1_ref, w2_ref, b2_ref, w3_ref, b3_ref,
                      out_ref, *, T_orig, Tt, K1):
    """One (batch-block, time-tile) grid step.

    x_ref  : (Bb, Tp+K1+_EXT-1, C) bf16  input, pre-padded with K1//2+1 zeros
                                         on the left and zeros on the right
    w1_ref : (K1, C, HP)  bf16  conv1 weight, per tap
    b1_ref : (1, HP)      f32   conv1 bias (zeros in padded channels)
    w2_ref : (3*HP, HP)   bf16  conv2 weight, im2col (tap-major, then channel)
    b2_ref : (1, HP)      f32   conv2 bias (zeros in padded channels)
    w3_ref : (2, HP)      f32   conv3 (1x1) weight, transposed, zero-padded
    b3_ref : (2,)         f32   conv3 bias (SMEM scalars)
    out_ref: (Bb, 2, Tt)  f32   boundary logits, time on the lane axis
    """
    Bb = x_ref.shape[0]
    C = x_ref.shape[2]
    HP = b1_ref.shape[1]
    Text = Tt + _EXT                    # conv1 computed on [t0-1, t0+Tt] (+slack)

    t0 = pl.multiple_of(pl.program_id(1) * Tt, 128)

    # Input window covering every tap of every extended position of this tile.
    xw = x_ref[:, pl.ds(t0, Tt + _EXT + K1 - 1), :]     # (Bb, Tt+_EXT+K1-1, C)

    # ---- conv1: K1 per-tap matmuls, f32 accumulation, bias + ReLU ----------
    acc = jnp.zeros((Bb * Text, HP), jnp.float32)
    for k in range(K1):                                  # static unroll, K1 small
        slab = xw[:, k:k + Text, :].reshape(Bb * Text, C)
        acc = acc + jnp.dot(slab, w1_ref[k], preferred_element_type=jnp.float32)
    h1 = jnp.maximum(acc + b1_ref[0], 0.0)               # (Bb*Text, HP) f32
    # dropout -> identity (eval mode)

    # Re-create conv2's implicit zero "same"-padding: zero every h1 row whose
    # global time index (t0 + e - 1) lies outside [0, T_orig).
    row = jax.lax.broadcasted_iota(jnp.int32, (Bb * Text, 1), 0)
    tg = row % Text + (t0 - 1)
    valid = jnp.logical_and(tg >= 0, tg < T_orig)
    h1 = jnp.where(valid, h1, 0.0).astype(jnp.bfloat16)

    # ---- conv2: ONE im2col matmul (HP=128 -> vreg-aligned lane concat) -----
    h1_3d = h1.reshape(Bb, Text, HP)
    hi = jnp.concatenate([h1_3d[:, k:k + Tt, :] for k in range(3)], axis=-1)
    hi = hi.reshape(Bb * Tt, 3 * HP)
    h2 = jnp.dot(hi, w2_ref[...], preferred_element_type=jnp.float32)
    h2 = jnp.maximum(h2 + b2_ref[0], 0.0)                # (Bb*Tt, HP) f32
    # dropout -> identity (eval mode)

    # ---- conv3 (1x1, HP -> 2): VPU multiply + lane reduce, lane-dense store -
    h2_3d = h2.reshape(Bb, Tt, HP)                       # Tt % 128 == 0 -> no-op
    w3 = w3_ref[...]                                     # (2, HP) f32
    out_ref[:, 0, :] = jnp.sum(h2_3d * w3[0, :], axis=-1) + b3_ref[0]
    out_ref[:, 1, :] = jnp.sum(h2_3d * w3[1, :], axis=-1) + b3_ref[1]


# ----------------------------- tiling plan ----------------------------------

def _round_up(x, m):
    return ((x + m - 1) // m) * m


def _largest_divisor_leq(n, cap):
    cap = max(1, min(n, cap))
    for d in range(cap, 0, -1):
        if n % d == 0:
            return d
    return 1


def _block_vmem_bytes(Bb, Tfull, Tt, C, HP, K1):
    """Rough per-grid-step VMEM footprint (bytes), incl. double buffering."""
    Text = Tt + _EXT
    x_blk = 2 * Bb * Tfull * C * 2                        # bf16 in, x2 buffers
    out_blk = 2 * Bb * 2 * Tt * 4                         # f32 out, x2 buffers
    weights = (K1 * C * HP + 3 * HP * HP) * 2 + (3 * HP + 2) * 4
    inter = Bb * Text * HP * (4 + 2)                      # h1 f32 + bf16
    inter += Bb * Tt * HP * (3 * 2 + 4)                   # im2col bf16 + h2 f32
    return x_blk + out_blk + weights + inter + (2 << 20)  # + slop


def _tpu_vmem_plan():
    """(vmem_limit_bytes, prefer_multi_step) derived from the TPU generation."""
    try:
        info = pltpu.get_tpu_info()
        phys = int(getattr(info, "vmem_capacity_bytes", 0))
    except Exception:
        phys = 0
    if phys <= 0:                       # unknown chip: stay conservative
        return 32 * 1024 * 1024, False
    if phys <= 80 * 1024 * 1024:        # v7x-class: 64 MiB / TC, 2 TensorCores
        return 40 * 1024 * 1024, True
    return 96 * 1024 * 1024, False      # v5e / v6e: 128 MiB, single TensorCore


def _plan(B, T, C, H, K1):
    """Static tiling plan: (Bb, Tt, Tp, HP, vmem_limit_bytes)."""
    HP = _round_up(H, 128)
    Tp = _round_up(T, 128)
    vmem_limit, prefer_multi = _tpu_vmem_plan()
    budget = int(vmem_limit * 0.6)
    Tfull = Tp + K1 + _EXT - 1

    Tt = 128
    for cand in (1024, 512, 256, 128):
        if Tp % cand == 0 and _block_vmem_bytes(1, Tfull, cand, C, HP, K1) <= budget:
            Tt = cand
            break

    Bb = 1
    for d in range(B, 0, -1):
        if B % d == 0 and _block_vmem_bytes(d, Tfull, Tt, C, HP, K1) <= budget:
            Bb = d
            break

    if prefer_multi and (B // Bb) * (Tp // Tt) < 2:
        if B >= 2:
            Bb = _largest_divisor_leq(B, B // 2)          # keep both v7x TCs busy
        else:
            for cand in (512, 256, 128):
                if cand < Tt and Tp % cand == 0:
                    Tt = cand
                    break
        # TODO(synk): for B == 1 and Tp == 128 a single grid step is unavoidable.
    return Bb, Tt, Tp, HP, int(vmem_limit)


# ------------------------------- wrapper -------------------------------------

@functools.partial(jax.jit, static_argnames=("kernel_size", "plan"))
def _forward_impl(x, params, kernel_size, plan):
    B, T, C = x.shape
    K1 = kernel_size
    p1 = K1 // 2
    H = params["w1"].shape[2]
    Bb, Tt, Tp, HP, vmem_limit = plan
    Tfull = Tp + K1 + _EXT - 1
    nb, nt = B // Bb, Tp // Tt

    # ---- input: bf16, zero-padded so every conv window indexes real memory --
    #   layout: [ K1//2+1 zeros | x (T) | zeros up to Tp + K1//2 + _EXT - 2 ]
    x_pad = jnp.pad(x.astype(jnp.bfloat16),
                    ((0, 0), (p1 + 1, Tfull - T - (p1 + 1)), (0, 0)))

    # ---- weights: hidden dim zero-padded to HP=128 lanes (bias pads are 0) --
    w1p = jnp.pad(params["w1"], ((0, 0), (0, 0), (0, HP - H))).astype(jnp.bfloat16)
    b1p = jnp.pad(params["b1"], ((0, 0), (0, HP - H)))
    w2p = jnp.pad(params["w2"], ((0, 0), (0, HP - H), (0, HP - H)))
    w2p = w2p.astype(jnp.bfloat16).reshape(3 * HP, HP)    # im2col, tap-major
    b2p = jnp.pad(params["b2"], ((0, 0), (0, HP - H)))
    w3p = jnp.pad(params["w3"].T, ((0, 0), (0, HP - H)))  # (2, HP) f32
    b3f = params["b3"].reshape(2)

    kern = functools.partial(_segmenter_kernel, T_orig=T, Tt=Tt, K1=K1)

    out = pl.pallas_call(
        kern,
        out_shape=jax.ShapeDtypeStruct((B, 2, Tp), jnp.float32),
        grid_spec=pltpu.PrefetchScalarGridSpec(
            num_scalar_prefetch=0,
            grid=(nb, nt),
            in_specs=[
                pl.BlockSpec((Bb, Tfull, C), lambda b, t: (b, 0, 0)),
                pl.BlockSpec((K1, C, HP), lambda b, t: (0, 0, 0)),
                pl.BlockSpec((1, HP), lambda b, t: (0, 0)),
                pl.BlockSpec((3 * HP, HP), lambda b, t: (0, 0)),
                pl.BlockSpec((1, HP), lambda b, t: (0, 0)),
                pl.BlockSpec((2, HP), lambda b, t: (0, 0)),
                pl.BlockSpec(memory_space=pltpu.MemorySpace.SMEM),
            ],
            out_specs=pl.BlockSpec((Bb, 2, Tt), lambda b, t: (b, 0, t)),
        ),
        compiler_params=pltpu.CompilerParams(
            dimension_semantics=("parallel", "parallel"),
            vmem_limit_bytes=vmem_limit,
        ),
    )(x_pad, w1p, b1p, w2p, b2p, w3p, b3f)

    # lane-dense (B, 2, Tp) -> caller layout (B, T, 2); cheap XLA transpose.
    return jnp.transpose(out, (0, 2, 1))[:, :T, :]


def reborn_segmenter_forward(x, params, kernel_size):
    """x: (B, T, C) float32 -> boundary logits (B, T, 2) float32."""
    B, T, C = x.shape
    assert kernel_size % 2 == 1, "odd kernel_size required for 'same' padding"
    H = params["w1"].shape[2]
    plan = _plan(B, T, C, H, kernel_size)
    return _forward_impl(x, params, kernel_size=kernel_size, plan=plan)


# ------------------------------ reference ------------------------------------

def _conv1d_ref(x_btc, w_kio, b, pad):
    """Reference conv1d: x (B,T,Cin), w (K,Cin,Cout) -> (B,T,Cout), f32 accum."""
    y = jax.lax.conv_general_dilated(
        x_btc, w_kio,
        window_strides=(1,),
        padding=[(pad, pad)],
        dimension_numbers=("NWC", "WIO", "NWC"),
        preferred_element_type=jnp.float32,
        precision=jax.lax.Precision.HIGHEST,
    )
    return y + b[0]


def _reference_forward(x, params, kernel_size):
    """lax.conv reference using the same bf16 MXU-operand casts as the kernel."""
    h = jax.nn.relu(_conv1d_ref(x.astype(jnp.bfloat16),
                                params["w1"].astype(jnp.bfloat16),
                                params["b1"], kernel_size // 2))
    h = jax.nn.relu(_conv1d_ref(h.astype(jnp.bfloat16),
                                params["w2"].astype(jnp.bfloat16),
                                params["b2"], 1))
    return _conv1d_ref(h, params["w3"][None], params["b3"], 0)


def init_params(key, input_dim, hidden_dim, kernel_size):
    """Deterministic synthetic params, stored in kernel layout (K, Cin, Cout)."""
    ks = jax.random.split(key, 6)

    def u(k, shape, fan_in):
        bound = 1.0 / jnp.sqrt(fan_in)
        return jax.random.uniform(k, shape, jnp.float32, -bound, bound)

    return {
        "w1": u(ks[0], (kernel_size, input_dim, hidden_dim), input_dim * kernel_size),
        "b1": u(ks[1], (1, hidden_dim), input_dim * kernel_size),
        "w2": u(ks[2], (3, hidden_dim, hidden_dim), hidden_dim * 3),
        "b2": u(ks[3], (1, hidden_dim), hidden_dim * 3),
        "w3": u(ks[4], (hidden_dim, 2), hidden_dim),
        "b3": u(ks[5], (1, 2), hidden_dim),
    }


if __name__ == "__main__":
    # config: segmenter_input_dim=4, segmenter_hidden_dim=32,
    #         segmenter_kernel_size=5, segmenter_dropout (identity at eval)
    B, T, C, H, K1 = 2, 8, 4, 32, 5

    key = jax.random.PRNGKey(0)
    kx, kp = jax.random.split(key)
    x = jax.random.normal(kx, (B, T, C), jnp.float32)
    params = init_params(kp, C, H, K1)

    out = reborn_segmenter_forward(x, params, kernel_size=K1)
    out = jax.block_until_ready(out)

    ref = _reference_forward(x, params, K1)
    assert out.shape == (B, T, 2)
    max_err = float(jnp.max(jnp.abs(out - ref)))
    assert jnp.allclose(out, ref, atol=2e-3, rtol=2e-3), f"mismatch vs reference: {max_err}"

    # TODO(synk): boundary_predict / pre_segment use categorical sampling and
    # per-batch data-dependent ragged pooling loops; not implemented as kernels.
    print("KERNEL_OK")
</pallas_src>

<mosaic_0001>
module attributes {stable_mosaic.version = 11 : i64} {
  func.func @_segmenter_kernel(%arg0: i32, %arg1: i32, %arg2: memref<2x140x4xbf16, #tpu.memory_space<vmem>>, %arg3: memref<5x4x128xbf16, #tpu.memory_space<vmem>>, %arg4: memref<1x128xf32, #tpu.memory_space<vmem>>, %arg5: memref<384x128xbf16, #tpu.memory_space<vmem>>, %arg6: memref<1x128xf32, #tpu.memory_space<vmem>>, %arg7: memref<2x128xf32, #tpu.memory_space<vmem>>, %arg8: memref<2xf32, #tpu.memory_space<smem>>, %arg9: memref<2x2x128xf32, #tpu.memory_space<vmem>>) attributes {dimension_semantics = [#tpu.dimension_semantics<parallel>, #tpu.dimension_semantics<parallel>], iteration_bounds = array<i64: 1, 1>, scalar_prefetch = 0 : i64, scratch_operands = 0 : i64, tpu.core_type = #tpu.core_type<tc>, window_params = [{transform_indices = @transform_0, window_bounds = array<i64: 2, 140, 4>}, {pipeline_mode = #tpu.pipeline_mode<synchronous>, transform_indices = @transform_1, window_bounds = array<i64: 5, 4, 128>}, {pipeline_mode = #tpu.pipeline_mode<synchronous>, transform_indices = @transform_2, window_bounds = array<i64: 1, 128>}, {pipeline_mode = #tpu.pipeline_mode<synchronous>, transform_indices = @transform_3, window_bounds = array<i64: 384, 128>}, {pipeline_mode = #tpu.pipeline_mode<synchronous>, transform_indices = @transform_4, window_bounds = array<i64: 1, 128>}, {pipeline_mode = #tpu.pipeline_mode<synchronous>, transform_indices = @transform_5, window_bounds = array<i64: 2, 128>}, {transform_indices = @transform_6, window_bounds = array<i64: 2>}, {transform_indices = @transform_7, window_bounds = array<i64: 2, 2, 128>}]} {
    %c128_i32 = arith.constant 128 : i32
    %0 = arith.muli %arg1, %c128_i32 : i32
    %1 = tpu.assume_multiple %0, 128 : i32
    %c0 = arith.constant 0 : index
    %2 = arith.index_cast %1 : i32 to index
    %c0_0 = arith.constant 0 : index
    %3 = vector.load %arg2[%c0, %2, %c0_0] : memref<2x140x4xbf16, #tpu.memory_space<vmem>>, vector<2x140x4xbf16>
    %cst = arith.constant 0.000000e+00 : f32
    %4 = vector.broadcast %cst : f32 to vector<272x128xf32>
    %5 = vector.extract_strided_slice %3 {offsets = [0, 0, 0], sizes = [2, 136, 4], strides = [1, 1, 1]} : vector<2x140x4xbf16> to vector<2x136x4xbf16>
    %6 = vector.shape_cast %5 : vector<2x136x4xbf16> to vector<272x4xbf16>
    %c0_1 = arith.constant 0 : index
    %c0_2 = arith.constant 0 : index
    %c0_3 = arith.constant 0 : index
    %7 = vector.load %arg3[%c0_1, %c0_2, %c0_3] : memref<5x4x128xbf16, #tpu.memory_space<vmem>>, vector<1x4x128xbf16>
    %8 = vector.shape_cast %7 : vector<1x4x128xbf16> to vector<4x128xbf16>
    %cst_4 = arith.constant dense<0.000000e+00> : vector<272x128xf32>
    %9 = tpu.matmul %6, %8, %cst_4 {dimension_numbers = #tpu.dot_dimension_numbers<[1], [0], [0], [1], [0, 0, 1, 1], [], []>} : vector<272x4xbf16>, vector<4x128xbf16>, vector<272x128xf32> -> vector<272x128xf32>
    %10 = arith.addf %4, %9 : vector<272x128xf32>
    %11 = vector.extract_strided_slice %3 {offsets = [0, 1, 0], sizes = [2, 136, 4], strides = [1, 1, 1]} : vector<2x140x4xbf16> to vector<2x136x4xbf16>
    %12 = vector.shape_cast %11 : vector<2x136x4xbf16> to vector<272x4xbf16>
    %c1 = arith.constant 1 : index
    %c0_5 = arith.constant 0 : index
    %c0_6 = arith.constant 0 : index
    %13 = vector.load %arg3[%c1, %c0_5, %c0_6] : memref<5x4x128xbf16, #tpu.memory_space<vmem>>, vector<1x4x128xbf16>
    %14 = vector.shape_cast %13 : vector<1x4x128xbf16> to vector<4x128xbf16>
    %cst_7 = arith.constant dense<0.000000e+00> : vector<272x128xf32>
    %15 = tpu.matmul %12, %14, %cst_7 {dimension_numbers = #tpu.dot_dimension_numbers<[1], [0], [0], [1], [0, 0, 1, 1], [], []>} : vector<272x4xbf16>, vector<4x128xbf16>, vector<272x128xf32> -> vector<272x128xf32>
    %16 = arith.addf %10, %15 : vector<272x128xf32>
    %17 = vector.extract_strided_slice %3 {offsets = [0, 2, 0], sizes = [2, 136, 4], strides = [1, 1, 1]} : vector<2x140x4xbf16> to vector<2x136x4xbf16>
    %18 = vector.shape_cast %17 : vector<2x136x4xbf16> to vector<272x4xbf16>
    %c2 = arith.constant 2 : index
    %c0_8 = arith.constant 0 : index
    %c0_9 = arith.constant 0 : index
    %19 = vector.load %arg3[%c2, %c0_8, %c0_9] : memref<5x4x128xbf16, #tpu.memory_space<vmem>>, vector<1x4x128xbf16>
    %20 = vector.shape_cast %19 : vector<1x4x128xbf16> to vector<4x128xbf16>
    %cst_10 = arith.constant dense<0.000000e+00> : vector<272x128xf32>
    %21 = tpu.matmul %18, %20, %cst_10 {dimension_numbers = #tpu.dot_dimension_numbers<[1], [0], [0], [1], [0, 0, 1, 1], [], []>} : vector<272x4xbf16>, vector<4x128xbf16>, vector<272x128xf32> -> vector<272x128xf32>
    %22 = arith.addf %16, %21 : vector<272x128xf32>
    %23 = vector.extract_strided_slice %3 {offsets = [0, 3, 0], sizes = [2, 136, 4], strides = [1, 1, 1]} : vector<2x140x4xbf16> to vector<2x136x4xbf16>
    %24 = vector.shape_cast %23 : vector<2x136x4xbf16> to vector<272x4xbf16>
    %c3 = arith.constant 3 : index
    %c0_11 = arith.constant 0 : index
    %c0_12 = arith.constant 0 : index
    %25 = vector.load %arg3[%c3, %c0_11, %c0_12] : memref<5x4x128xbf16, #tpu.memory_space<vmem>>, vector<1x4x128xbf16>
    %26 = vector.shape_cast %25 : vector<1x4x128xbf16> to vector<4x128xbf16>
    %cst_13 = arith.constant dense<0.000000e+00> : vector<272x128xf32>
    %27 = tpu.matmul %24, %26, %cst_13 {dimension_numbers = #tpu.dot_dimension_numbers<[1], [0], [0], [1], [0, 0, 1, 1], [], []>} : vector<272x4xbf16>, vector<4x128xbf16>, vector<272x128xf32> -> vector<272x128xf32>
    %28 = arith.addf %22, %27 : vector<272x128xf32>
    %29 = vector.extract_strided_slice %3 {offsets = [0, 4, 0], sizes = [2, 136, 4], strides = [1, 1, 1]} : vector<2x140x4xbf16> to vector<2x136x4xbf16>
    %30 = vector.shape_cast %29 : vector<2x136x4xbf16> to vector<272x4xbf16>
    %c4 = arith.constant 4 : index
    %c0_14 = arith.constant 0 : index
    %c0_15 = arith.constant 0 : index
    %31 = vector.load %arg3[%c4, %c0_14, %c0_15] : memref<5x4x128xbf16, #tpu.memory_space<vmem>>, vector<1x4x128xbf16>
    %32 = vector.shape_cast %31 : vector<1x4x128xbf16> to vector<4x128xbf16>
    %cst_16 = arith.constant dense<0.000000e+00> : vector<272x128xf32>
    %33 = tpu.matmul %30, %32, %cst_16 {dimension_numbers = #tpu.dot_dimension_numbers<[1], [0], [0], [1], [0, 0, 1, 1], [], []>} : vector<272x4xbf16>, vector<4x128xbf16>, vector<272x128xf32> -> vector<272x128xf32>
    %34 = arith.addf %28, %33 : vector<272x128xf32>
    %c0_17 = arith.constant 0 : index
    %c0_18 = arith.constant 0 : index
    %35 = vector.load %arg4[%c0_17, %c0_18] : memref<1x128xf32, #tpu.memory_space<vmem>>, vector<1x128xf32>
    %36 = vector.shape_cast %35 : vector<1x128xf32> to vector<128xf32>
    %37 = vector.shape_cast %36 : vector<128xf32> to vector<1x128xf32>
    %38 = vector.broadcast %37 : vector<1x128xf32> to vector<272x128xf32>
    %39 = arith.addf %34, %38 : vector<272x128xf32>
    %cst_19 = arith.constant 0.000000e+00 : f32
    %40 = vector.broadcast %cst_19 : f32 to vector<272x128xf32>
    %41 = arith.maximumf %39, %40 : vector<272x128xf32>
    %42 = tpu.iota {dimensions = array<i32: 0>} : vector<272x1xi32>
    %c136_i32 = arith.constant 136 : i32
    %c0_i32 = arith.constant 0 : i32
    %43 = arith.cmpi eq, %c136_i32, %c0_i32 : i32
    %c1_i32 = arith.constant 1 : i32
    %44 = arith.select %43, %c1_i32, %c136_i32 : i32
    %45 = vector.broadcast %44 : i32 to vector<272x1xi32>
    %46 = arith.remsi %42, %45 : vector<272x1xi32>
    %c0_i32_20 = arith.constant 0 : i32
    %47 = vector.broadcast %c0_i32_20 : i32 to vector<272x1xi32>
    %48 = arith.cmpi ne, %46, %47 : vector<272x1xi32>
    %c0_i32_21 = arith.constant 0 : i32
    %49 = vector.broadcast %c0_i32_21 : i32 to vector<272x1xi32>
    %50 = arith.cmpi slt, %46, %49 : vector<272x1xi32>
    %c0_i32_22 = arith.constant 0 : i32
    %51 = arith.cmpi slt, %44, %c0_i32_22 : i32
    %52 = vector.broadcast %51 : i1 to vector<272x1xi1>
    %53 = vector.broadcast %52 : vector<272x1xi1> to vector<272x1xi1>
    %54 = arith.xori %50, %53 : vector<272x1xi1>
    %55 = arith.andi %54, %48 : vector<272x1xi1>
    %56 = vector.broadcast %44 : i32 to vector<272x1xi32>
    %57 = arith.addi %46, %56 : vector<272x1xi32>
    %58 = arith.select %55, %57, %46 : vector<272x1xi1>, vector<272x1xi32>
    %c1_i32_23 = arith.constant 1 : i32
    %59 = arith.subi %1, %c1_i32_23 : i32
    %60 = vector.broadcast %59 : i32 to vector<272x1xi32>
    %61 = arith.addi %58, %60 : vector<272x1xi32>
    %c0_i32_24 = arith.constant 0 : i32
    %62 = vector.broadcast %c0_i32_24 : i32 to vector<272x1xi32>
    %63 = arith.cmpi sge, %61, %62 : vector<272x1xi32>
    %c8_i32 = arith.constant 8 : i32
    %64 = vector.broadcast %c8_i32 : i32 to vector<272x1xi32>
    %65 = arith.cmpi slt, %61, %64 : vector<272x1xi32>
    %66 = arith.andi %63, %65 : vector<272x1xi1>
    %cst_25 = arith.constant 0.000000e+00 : f32
    %67 = vector.shape_cast %66 : vector<272x1xi1> to vector<272x1xi1>
    %68 = vector.broadcast %67 : vector<272x1xi1> to vector<272x128xi1>
    %69 = vector.broadcast %cst_25 : f32 to vector<272x128xf32>
    %70 = arith.select %68, %41, %69 : vector<272x128xi1>, vector<272x128xf32>
    %71 = arith.truncf %70 : vector<272x128xf32> to vector<272x128xbf16>
    %72 = vector.shape_cast %71 : vector<272x128xbf16> to vector<2x136x128xbf16>
    %73 = vector.extract_strided_slice %72 {offsets = [0, 0, 0], sizes = [2, 128, 128], strides = [1, 1, 1]} : vector<2x136x128xbf16> to vector<2x128x128xbf16>
    %74 = vector.extract_strided_slice %72 {offsets = [0, 1, 0], sizes = [2, 128, 128], strides = [1, 1, 1]} : vector<2x136x128xbf16> to vector<2x128x128xbf16>
    %75 = vector.extract_strided_slice %72 {offsets = [0, 2, 0], sizes = [2, 128, 128], strides = [1, 1, 1]} : vector<2x136x128xbf16> to vector<2x128x128xbf16>
    %76 = tpu.concatenate %73, %74, %75 in 2 : vector<2x128x128xbf16>, vector<2x128x128xbf16>, vector<2x128x128xbf16> -> vector<2x128x384xbf16>
    %77 = vector.shape_cast %76 : vector<2x128x384xbf16> to vector<256x384xbf16>
    %c0_26 = arith.constant 0 : index
    %c0_27 = arith.constant 0 : index
    %78 = vector.load %arg5[%c0_26, %c0_27] : memref<384x128xbf16, #tpu.memory_space<vmem>>, vector<384x128xbf16>
    %cst_28 = arith.constant dense<0.000000e+00> : vector<256x128xf32>
    %79 = tpu.matmul %77, %78, %cst_28 {dimension_numbers = #tpu.dot_dimension_numbers<[1], [0], [0], [1], [0, 0, 1, 1], [], []>} : vector<256x384xbf16>, vector<384x128xbf16>, vector<256x128xf32> -> vector<256x128xf32>
    %c0_29 = arith.constant 0 : index
    %c0_30 = arith.constant 0 : index
    %80 = vector.load %arg6[%c0_29, %c0_30] : memref<1x128xf32, #tpu.memory_space<vmem>>, vector<1x128xf32>
    %81 = vector.shape_cast %80 : vector<1x128xf32> to vector<128xf32>
    %82 = vector.shape_cast %81 : vector<128xf32> to vector<1x128xf32>
    %83 = vector.broadcast %82 : vector<1x128xf32> to vector<256x128xf32>
    %84 = arith.addf %79, %83 : vector<256x128xf32>
    %cst_31 = arith.constant 0.000000e+00 : f32
    %85 = vector.broadcast %cst_31 : f32 to vector<256x128xf32>
    %86 = arith.maximumf %84, %85 : vector<256x128xf32>
    %87 = vector.shape_cast %86 : vector<256x128xf32> to vector<2x128x128xf32>
    %c0_32 = arith.constant 0 : index
    %c0_33 = arith.constant 0 : index
    %88 = vector.load %arg7[%c0_32, %c0_33] : memref<2x128xf32, #tpu.memory_space<vmem>>, vector<2x128xf32>
    %89 = vector.extract_strided_slice %88 {offsets = [0, 0], sizes = [1, 128], strides = [1, 1]} : vector<2x128xf32> to vector<1x128xf32>
    %90 = vector.shape_cast %89 : vector<1x128xf32> to vector<128xf32>
    %91 = vector.shape_cast %90 : vector<128xf32> to vector<1x1x128xf32>
    %92 = vector.broadcast %91 : vector<1x1x128xf32> to vector<2x128x128xf32>
    %93 = arith.mulf %87, %92 : vector<2x128x128xf32>
    %cst_34 = arith.constant dense<0.000000e+00> : vector<2x128xf32>
    %94 = vector.multi_reduction <add>, %93, %cst_34 [2] : vector<2x128x128xf32> to vector<2x128xf32>
    %c0_35 = arith.constant 0 : index
    %95 = memref.load %arg8[%c0_35] : memref<2xf32, #tpu.memory_space<smem>>
    %96 = vector.broadcast %95 : f32 to vector<2x128xf32>
    %97 = arith.addf %94, %96 : vector<2x128xf32>
    %c0_36 = arith.constant 0 : index
    %c0_37 = arith.constant 0 : index
    %c0_38 = arith.constant 0 : index
    %98 = vector.load %arg9[%c0_36, %c0_37, %c0_38] : memref<2x2x128xf32, #tpu.memory_space<vmem>>, vector<2x1x128xf32>
    %99 = vector.shape_cast %98 : vector<2x1x128xf32> to vector<2x128xf32>
    %100 = vector.shape_cast %97 : vector<2x128xf32> to vector<2x1x128xf32>
    tpu.vector_store %arg9[%c0_36, %c0_37, %c0_38], %100 {strides = array<i32>} : memref<2x2x128xf32, #tpu.memory_space<vmem>>, vector<2x1x128xf32>,
    %101 = vector.extract_strided_slice %88 {offsets = [1, 0], sizes = [1, 128], strides = [1, 1]} : vector<2x128xf32> to vector<1x128xf32>
    %102 = vector.shape_cast %101 : vector<1x128xf32> to vector<128xf32>
    %103 = vector.shape_cast %102 : vector<128xf32> to vector<1x1x128xf32>
    %104 = vector.broadcast %103 : vector<1x1x128xf32> to vector<2x128x128xf32>
    %105 = arith.mulf %87, %104 : vector<2x128x128xf32>
    %cst_39 = arith.constant dense<0.000000e+00> : vector<2x128xf32>
    %106 = vector.multi_reduction <add>, %105, %cst_39 [2] : vector<2x128x128xf32> to vector<2x128xf32>
    %c1_40 = arith.constant 1 : index
    %107 = memref.load %arg8[%c1_40] : memref<2xf32, #tpu.memory_space<smem>>
    %108 = vector.broadcast %107 : f32 to vector<2x128xf32>
    %109 = arith.addf %106, %108 : vector<2x128xf32>
    %c0_41 = arith.constant 0 : index
    %c1_42 = arith.constant 1 : index
    %c0_43 = arith.constant 0 : index
    %110 = vector.load %arg9[%c0_41, %c1_42, %c0_43] : memref<2x2x128xf32, #tpu.memory_space<vmem>>, vector<2x1x128xf32>
    %111 = vector.shape_cast %110 : vector<2x1x128xf32> to vector<2x128xf32>
    %112 = vector.shape_cast %109 : vector<2x128xf32> to vector<2x1x128xf32>
    tpu.vector_store %arg9[%c0_41, %c1_42, %c0_43], %112 {strides = array<i32>} : memref<2x2x128xf32, #tpu.memory_space<vmem>>, vector<2x1x128xf32>,
    return
  }
  func.func @transform_0(%arg0: i32, %arg1: i32) -> (i32, i32, i32) {
    %c0_i32 = arith.constant 0 : i32
    %c0_i32_0 = arith.constant 0 : i32
    %c0_i32_1 = arith.constant 0 : i32
    return %arg0, %c0_i32, %c0_i32_0 : i32, i32, i32
  }
  func.func @transform_1(%arg0: i32, %arg1: i32) -> (i32, i32, i32) {
    %c0_i32 = arith.constant 0 : i32
    %c0_i32_0 = arith.constant 0 : i32
    %c0_i32_1 = arith.constant 0 : i32
    %c0_i32_2 = arith.constant 0 : i32
    return %c0_i32, %c0_i32_0, %c0_i32_1 : i32, i32, i32
  }
  func.func @transform_2(%arg0: i32, %arg1: i32) -> (i32, i32) {
    %c0_i32 = arith.constant 0 : i32
    %c0_i32_0 = arith.constant 0 : i32
    %c0_i32_1 = arith.constant 0 : i32
    return %c0_i32, %c0_i32_0 : i32, i32
  }
  func.func @transform_3(%arg0: i32, %arg1: i32) -> (i32, i32) {
    %c0_i32 = arith.constant 0 : i32
    %c0_i32_0 = arith.constant 0 : i32
    %c0_i32_1 = arith.constant 0 : i32
    return %c0_i32, %c0_i32_0 : i32, i32
  }
  func.func @transform_4(%arg0: i32, %arg1: i32) -> (i32, i32) {
    %c0_i32 = arith.constant 0 : i32
    %c0_i32_0 = arith.constant 0 : i32
    %c0_i32_1 = arith.constant 0 : i32
    return %c0_i32, %c0_i32_0 : i32, i32
  }
  func.func @transform_5(%arg0: i32, %arg1: i32) -> (i32, i32) {
    %c0_i32 = arith.constant 0 : i32
    %c0_i32_0 = arith.constant 0 : i32
    %c0_i32_1 = arith.constant 0 : i32
    return %c0_i32, %c0_i32_0 : i32, i32
  }
  func.func @transform_6(%arg0: i32, %arg1: i32) -> i32 {
    %c0_i32 = arith.constant 0 : i32
    %c0_i32_0 = arith.constant 0 : i32
    return %c0_i32 : i32
  }
  func.func @transform_7(%arg0: i32, %arg1: i32) -> (i32, i32, i32) {
    %c0_i32 = arith.constant 0 : i32
    %c0_i32_0 = arith.constant 0 : i32
    return %arg0, %c0_i32, %arg1 : i32, i32, i32
  }
}

</mosaic_0001>

<llo_original>
// kernel: _forward_impl.1
$region0: #{_forward_impl.1}
  #allocation0 [shape = 'u32[]', space=smem, size = 0x4, offset = 0x4, fixed_abs, tag = 'smem constant byte address 0x4 - core index']
  #allocation1 [shape = 'u32[144,128]{1,0:T(1,128)}', space=vmem, size = 0x12000, scoped, tag = 'internal scratch']
  %s0 = inlined_call_operand.vmem [shape: bf16[2,140,4], index: 0, kind: input, shape index: {}]
  %s1 = inlined_call_operand.vmem [shape: bf16[5,4,128], index: 1, kind: input, shape index: {}]
  %s2 = inlined_call_operand.vmem [shape: f32[1,128], index: 2, kind: input, shape index: {}]
  %s3 = inlined_call_operand.vmem [shape: bf16[384,128], index: 3, kind: input, shape index: {}]
  %s4 = inlined_call_operand.vmem [shape: f32[1,128], index: 4, kind: input, shape index: {}]
  %s5 = inlined_call_operand.vmem [shape: f32[2,128], index: 5, kind: input, shape index: {}]
  %s6 = inlined_call_operand.vmem [shape: f32[2], index: 6, kind: input, shape index: {}]
  %s7 = inlined_call_operand.hbm [shape: f32[2,2,128], index: 7, kind: output, shape index: {}]
  %s8 = sld [smem:[#allocation0]]
  $region42: #{_forward_impl.1} parent=0
    _
  %s10 = ssub.s32 1, %s8
  %s11 = scalar_select 0, %s10, %s8
  $region1: #{_forward_impl.1} parent=0
    #allocation2 [shape = 'u8[512]{0}', space=smem, size = 0x200, scoped, tag = 'input window, operand 6, single buffered']
    #allocation3 [shape = 's32[1]{0}', space=sflag, size = 0x4, scoped, tag = 'scoped memory for _forward_impl.1']
    #allocation4 [shape = 's32[1]{0}', space=sflag, size = 0x4, scoped, tag = 'scoped memory for _forward_impl.1']
    #allocation5 [shape = 'u8[2048]{0}', space=vmem, size = 0x800, scoped, tag = 'output window, operand 0, single buffered']
    %12 = vsyncpa [#allocation4], 0
    %13 = vsyncpa [#allocation3], 0
    // Predicated region
    $region2: #{_forward_impl.1} parent=1 // pred_check
      _
    $region3: #{_forward_impl.1} parent=1 // pred_check_branch
      %15 = sbr.rel (0) target = $region5
    $region4: #{_forward_impl.1} parent=1 // pred_region
      _
    $region5: #{_forward_impl.1} parent=1 // pred_fallthru
      _
    // Predicated region
    $region6: #{_forward_impl.1} parent=1 // pred_check
      _
    $region7: #{_forward_impl.1} parent=1 // pred_check_branch
      %17 = sbr.rel (0) target = $region9
    $region8: #{_forward_impl.1} parent=1 // pred_region
      _
    $region9: #{_forward_impl.1} parent=1 // pred_fallthru
      _
    // Predicated region
    $region10: #{_forward_impl.1} parent=1 // pred_check
      _
    $region11: #{_forward_impl.1} parent=1 // pred_check_branch
      %19 = sbr.rel (0) target = $region13
    $region12: #{_forward_impl.1} parent=1 // pred_region
      _
    $region13: #{_forward_impl.1} parent=1 // pred_fallthru
      _
    // Predicated region
    $region14: #{_forward_impl.1} parent=1 // pred_check
      _
    $region15: #{_forward_impl.1} parent=1 // pred_check_branch
      %21 = sbr.rel (0) target = $region17
    $region16: #{_forward_impl.1} parent=1 // pred_region
      _
    $region17: #{_forward_impl.1} parent=1 // pred_fallthru
      _
    // Predicated region
    $region18: #{_forward_impl.1} parent=1 // pred_check
      _
    $region19: #{_forward_impl.1} parent=1 // pred_check_branch
      %23 = sbr.rel (0) target = $region21
    $region20: #{_forward_impl.1} parent=1 // pred_region
      _
    $region21: #{_forward_impl.1} parent=1 // pred_fallthru
      _
    // Predicated region
    $region22: #{_forward_impl.1} parent=1 // pred_check
      _
    $region23: #{_forward_impl.1} parent=1 // pred_check_branch
      %25 = sbr.rel (0) target = $region25
    $region24: #{_forward_impl.1} parent=1 // pred_region
      _
    $region25: #{_forward_impl.1} parent=1 // pred_fallthru
      _
    // Predicated region
    $region26: #{_forward_impl.1} parent=1 // pred_check
      _
    $region27: #{_forward_impl.1} parent=1 // pred_check_branch
      %27 = sbr.rel (0) target = $region29
    $region28: #{_forward_impl.1} parent=1 // pred_region
      %s29 = ssub.s32 16, 16
      %30 = vsyncadd [#allocation4], %s29
      %s32 = sshll.u32 %s6, 4
      %s33 = int_to_ptr.vmem [resolvable:$true] %s32
      %35 = dma.vmem_to_smem %s33, 16, [#allocation2], [#allocation4]
    $region29: #{_forward_impl.1} parent=1 // pred_fallthru
      _
    // Predicated region
    $region30: #{_forward_impl.1} parent=1 // pred_check
      _
    $region31: #{_forward_impl.1} parent=1 // pred_check_branch
      %37 = sbr.rel (0) target = $region33
    $region32: #{_forward_impl.1} parent=1 // pred_region
      %38 = dma.done [#allocation4], 16
    $region33: #{_forward_impl.1} parent=1 // pred_fallthru
      _
    %39 = sfence
    %s41 = smul.u32 0, 128
    %s42 = sshra.s32 %s41, 3
    %s43 = sand.u32 %s41, 7
    %s44 = smul.addr %s42, 4
    %s45 = scalar_lea.vmem %s0, %s44
    %v46 = vld [vmem:[%s45] sm:$0xf]
    %v47 = vld [vmem:[%s45 + $0x4] sm:$0xf]
    %v48 = vld [vmem:[%s45 + $0x8] sm:$0xf]
    %v49 = vld [vmem:[%s45 + $0xc] sm:$0xf]
    %v50 = vld [vmem:[%s45 + $0x10] sm:$0xf]
    %v51 = vld [vmem:[%s45 + $0x14] sm:$0xf]
    %v52 = vld [vmem:[%s45 + $0x18] sm:$0xf]
    %v53 = vld [vmem:[%s45 + $0x1c] sm:$0xf]
    %v54 = vld [vmem:[%s45 + $0x20] sm:$0xf]
    %v55 = vld [vmem:[%s45 + $0x24] sm:$0xf]
    %v56 = vld [vmem:[%s45 + $0x28] sm:$0xf]
    %v57 = vld [vmem:[%s45 + $0x2c] sm:$0xf]
    %v58 = vld [vmem:[%s45 + $0x30] sm:$0xf]
    %v59 = vld [vmem:[%s45 + $0x34] sm:$0xf]
    %v60 = vld [vmem:[%s45 + $0x38] sm:$0xf]
    %v61 = vld [vmem:[%s45 + $0x3c] sm:$0xf]
    %v62 = vld [vmem:[%s45 + $0x40] sm:$0xf]
    %v63 = vld [vmem:[%s45 + $0x44] sm:$0x3]
    %v64 = vld [vmem:[%s45 + $0x48] sm:$0xf]
    %v65 = vld [vmem:[%s45 + $0x4c] sm:$0xf]
    %v66 = vld [vmem:[%s45 + $0x50] sm:$0xf]
    %v67 = vld [vmem:[%s45 + $0x54] sm:$0xf]
    %v68 = vld [vmem:[%s45 + $0x58] sm:$0xf]
    %v69 = vld [vmem:[%s45 + $0x5c] sm:$0xf]
    %v70 = vld [vmem:[%s45 + $0x60] sm:$0xf]
    %v71 = vld [vmem:[%s45 + $0x64] sm:$0xf]
    %v72 = vld [vmem:[%s45 + $0x68] sm:$0xf]
    %v73 = vld [vmem:[%s45 + $0x6c] sm:$0xf]
    %v74 = vld [vmem:[%s45 + $0x70] sm:$0xf]
    %v75 = vld [vmem:[%s45 + $0x74] sm:$0xf]
    %v76 = vld [vmem:[%s45 + $0x78] sm:$0xf]
    %v77 = vld [vmem:[%s45 + $0x7c] sm:$0xf]
    %v78 = vld [vmem:[%s45 + $0x80] sm:$0xf]
    %v79 = vld [vmem:[%s45 + $0x84] sm:$0xf]
    %v80 = vld [vmem:[%s45 + $0x88] sm:$0xf]
    %v81 = vld [vmem:[%s45 + $0x8c] sm:$0x3]
    %v82 = vld [vmem:[%s1] sm:$0x3]
    %vm83 = vsmask.f32 3328
    %vm84 = vsmask.f32 7440
    %vm85 = vmor %vm83, %vm84
    %v87 = vshrl.u32 %v46, 16
    %v89 = vrot.slane %v87, 4
    %v90 = vshll.u32 %v46, 16
    %v92 = vrot.slane %v90, 5
    %v93 = vor.u32 %v89, %v92
    %v94 = vrot.slane %v93, 4
    %v96 = vshll.u32 %v47, 16
    %v98 = vrot.slane %v96, 5
    %v99 = vsel %vm85, %v94, %v98
    %v100 = vshrl.u32 %v47, 16
    %v102 = vrot.slane %v100, 4
    %v103 = vor.u32 %v102, %v98
    %v104 = vrot.slane %v103, 4
    %v106 = vshll.u32 %v48, 16
    %v108 = vrot.slane %v106, 5
    %v109 = vsel %vm85, %v104, %v108
    %v110 = vshrl.u32 %v48, 16
    %v112 = vrot.slane %v110, 4
    %v113 = vor.u32 %v112, %v108
    %v114 = vrot.slane %v113, 4
    %v116 = vshll.u32 %v49, 16
    %v118 = vrot.slane %v116, 5
    %v119 = vsel %vm85, %v114, %v118
    %v120 = vshrl.u32 %v49, 16
    %v122 = vrot.slane %v120, 4
    %v123 = vor.u32 %v122, %v118
    %v124 = vrot.slane %v123, 4
    %v126 = vshll.u32 %v50, 16
    %v128 = vrot.slane %v126, 5
    %v129 = vsel %vm85, %v124, %v128
    %v130 = vshrl.u32 %v50, 16
    %v132 = vrot.slane %v130, 4
    %v133 = vor.u32 %v132, %v128
    %v134 = vrot.slane %v133, 4
    %v136 = vshll.u32 %v51, 16
    %v138 = vrot.slane %v136, 5
    %v139 = vsel %vm85, %v134, %v138
    %v140 = vshrl.u32 %v51, 16
    %v142 = vrot.slane %v140, 4
    %v143 = vor.u32 %v142, %v138
    %v144 = vrot.slane %v143, 4
    %v146 = vshll.u32 %v52, 16
    %v148 = vrot.slane %v146, 5
    %v149 = vsel %vm85, %v144, %v148
    %v150 = vshrl.u32 %v52, 16
    %v152 = vrot.slane %v150, 4
    %v153 = vor.u32 %v152, %v148
    %v154 = vrot.slane %v153, 4
    %v156 = vshll.u32 %v53, 16
    %v158 = vrot.slane %v156, 5
    %v159 = vsel %vm85, %v154, %v158
    %v160 = vshrl.u32 %v53, 16
    %v162 = vrot.slane %v160, 4
    %v163 = vor.u32 %v162, %v158
    %v164 = vrot.slane %v163, 4
    %v166 = vshll.u32 %v54, 16
    %v168 = vrot.slane %v166, 5
    %v169 = vsel %vm85, %v164, %v168
    %v170 = vshrl.u32 %v54, 16
    %v172 = vrot.slane %v170, 4
    %v173 = vor.u32 %v172, %v168
    %v174 = vrot.slane %v173, 4
    %v176 = vshll.u32 %v55, 16
    %v178 = vrot.slane %v176, 5
    %v179 = vsel %vm85, %v174, %v178
    %v180 = vshrl.u32 %v55, 16
    %v182 = vrot.slane %v180, 4
    %v183 = vor.u32 %v182, %v178
    %v184 = vrot.slane %v183, 4
    %v186 = vshll.u32 %v56, 16
    %v188 = vrot.slane %v186, 5
    %v189 = vsel %vm85, %v184, %v188
    %v190 = vshrl.u32 %v56, 16
    %v192 = vrot.slane %v190, 4
    %v193 = vor.u32 %v192, %v188
    %v194 = vrot.slane %v193, 4
    %v196 = vshll.u32 %v57, 16
    %v198 = vrot.slane %v196, 5
    %v199 = vsel %vm85, %v194, %v198
    %v200 = vshrl.u32 %v57, 16
    %v202 = vrot.slane %v200, 4
    %v203 = vor.u32 %v202, %v198
    %v204 = vrot.slane %v203, 4
    %v206 = vshll.u32 %v58, 16
    %v208 = vrot.slane %v206, 5
    %v209 = vsel %vm85, %v204, %v208
    %v210 = vshrl.u32 %v58, 16
    %v212 = vrot.slane %v210, 4
    %v213 = vor.u32 %v212, %v208
    %v214 = vrot.slane %v213, 4
    %v216 = vshll.u32 %v59, 16
    %v218 = vrot.slane %v216, 5
    %v219 = vsel %vm85, %v214, %v218
    %v220 = vshrl.u32 %v59, 16
    %v222 = vrot.slane %v220, 4
    %v223 = vor.u32 %v222, %v218
    %v224 = vrot.slane %v223, 4
    %v226 = vshll.u32 %v60, 16
    %v228 = vrot.slane %v226, 5
    %v229 = vsel %vm85, %v224, %v228
    %v230 = vshrl.u32 %v60, 16
    %v232 = vrot.slane %v230, 4
    %v233 = vor.u32 %v232, %v228
    %v234 = vrot.slane %v233, 4
    %v236 = vshll.u32 %v61, 16
    %v238 = vrot.slane %v236, 5
    %v239 = vsel %vm85, %v234, %v238
    %v240 = vshrl.u32 %v61, 16
    %v242 = vrot.slane %v240, 4
    %v243 = vor.u32 %v242, %v238
    %v244 = vrot.slane %v243, 4
    %v246 = vshll.u32 %v62, 16
    %v248 = vrot.slane %v246, 5
    %v249 = vsel %vm85, %v244, %v248
    %v250 = vshrl.u32 %v62, 16
    %v252 = vrot.slane %v250, 4
    %v253 = vor.u32 %v252, %v248
    %v254 = vrot.slane %v253, 4
    %v256 = vshll.u32 %v63, 16
    %v258 = vrot.slane %v256, 5
    %v259 = vsel %vm85, %v254, %v258
    %v261 = vshrl.u32 %v64, 16
    %v263 = vrot.slane %v261, 4
    %v264 = vshll.u32 %v64, 16
    %v266 = vrot.slane %v264, 5
    %v267 = vor.u32 %v263, %v266
    %v268 = vrot.slane %v267, 4
    %v270 = vshll.u32 %v65, 16
    %v272 = vrot.slane %v270, 5
    %v273 = vsel %vm85, %v268, %v272
    %v274 = vshrl.u32 %v65, 16
    %v276 = vrot.slane %v274, 4
    %v277 = vor.u32 %v276, %v272
    %v278 = vrot.slane %v277, 4
    %v280 = vshll.u32 %v66, 16
    %v282 = vrot.slane %v280, 5
    %v283 = vsel %vm85, %v278, %v282
    %v284 = vshrl.u32 %v66, 16
    %v286 = vrot.slane %v284, 4
    %v287 = vor.u32 %v286, %v282
    %v288 = vrot.slane %v287, 4
    %v290 = vshll.u32 %v67, 16
    %v292 = vrot.slane %v290, 5
    %v293 = vsel %vm85, %v288, %v292
    %v294 = vshrl.u32 %v67, 16
    %v296 = vrot.slane %v294, 4
    %v297 = vor.u32 %v296, %v292
    %v298 = vrot.slane %v297, 4
    %v300 = vshll.u32 %v68, 16
    %v302 = vrot.slane %v300, 5
    %v303 = vsel %vm85, %v298, %v302
    %v304 = vshrl.u32 %v68, 16
    %v306 = vrot.slane %v304, 4
    %v307 = vor.u32 %v306, %v302
    %v308 = vrot.slane %v307, 4
    %v310 = vshll.u32 %v69, 16
    %v312 = vrot.slane %v310, 5
    %v313 = vsel %vm85, %v308, %v312
    %v314 = vshrl.u32 %v69, 16
    %v316 = vrot.slane %v314, 4
    %v317 = vor.u32 %v316, %v312
    %v318 = vrot.slane %v317, 4
    %v320 = vshll.u32 %v70, 16
    %v322 = vrot.slane %v320, 5
    %v323 = vsel %vm85, %v318, %v322
    %v324 = vshrl.u32 %v70, 16
    %v326 = vrot.slane %v324, 4
    %v327 = vor.u32 %v326, %v322
    %v328 = vrot.slane %v327, 4
    %v330 = vshll.u32 %v71, 16
    %v332 = vrot.slane %v330, 5
    %v333 = vsel %vm85, %v328, %v332
    %v334 = vshrl.u32 %v71, 16
    %v336 = vrot.slane %v334, 4
    %v337 = vor.u32 %v336, %v332
    %v338 = vrot.slane %v337, 4
    %v340 = vshll.u32 %v72, 16
    %v342 = vrot.slane %v340, 5
    %v343 = vsel %vm85, %v338, %v342
    %v344 = vshrl.u32 %v72, 16
    %v346 = vrot.slane %v344, 4
    %v347 = vor.u32 %v346, %v342
    %v348 = vrot.slane %v347, 4
    %v350 = vshll.u32 %v73, 16
    %v352 = vrot.slane %v350, 5
    %v353 = vsel %vm85, %v348, %v352
    %v354 = vshrl.u32 %v73, 16
    %v356 = vrot.slane %v354, 4
    %v357 = vor.u32 %v356, %v352
    %v358 = vrot.slane %v357, 4
    %v360 = vshll.u32 %v74, 16
    %v362 = vrot.slane %v360, 5
    %v363 = vsel %vm85, %v358, %v362
    %v364 = vshrl.u32 %v74, 16
    %v366 = vrot.slane %v364, 4
    %v367 = vor.u32 %v366, %v362
    %v368 = vrot.slane %v367, 4
    %v370 = vshll.u32 %v75, 16
    %v372 = vrot.slane %v370, 5
    %v373 = vsel %vm85, %v368, %v372
    %v374 = vshrl.u32 %v75, 16
    %v376 = vrot.slane %v374, 4
    %v377 = vor.u32 %v376, %v372
    %v378 = vrot.slane %v377, 4
    %v380 = vshll.u32 %v76, 16
    %v382 = vrot.slane %v380, 5
    %v383 = vsel %vm85, %v378, %v382
    %v384 = vshrl.u32 %v76, 16
    %v386 = vrot.slane %v384, 4
    %v387 = vor.u32 %v386, %v382
    %v388 = vrot.slane %v387, 4
    %v390 = vshll.u32 %v77, 16
    %v392 = vrot.slane %v390, 5
    %v393 = vsel %vm85, %v388, %v392
    %v394 = vshrl.u32 %v77, 16
    %v396 = vrot.slane %v394, 4
    %v397 = vor.u32 %v396, %v392
    %v398 = vrot.slane %v397, 4
    %v400 = vshll.u32 %v78, 16
    %v402 = vrot.slane %v400, 5
    %v403 = vsel %vm85, %v398, %v402
    %v404 = vshrl.u32 %v78, 16
    %v406 = vrot.slane %v404, 4
    %v407 = vor.u32 %v406, %v402
    %v408 = vrot.slane %v407, 4
    %v410 = vshll.u32 %v79, 16
    %v412 = vrot.slane %v410, 5
    %v413 = vsel %vm85, %v408, %v412
    %v414 = vshrl.u32 %v79, 16
    %v416 = vrot.slane %v414, 4
    %v417 = vor.u32 %v416, %v412
    %v418 = vrot.slane %v417, 4
    %v420 = vshll.u32 %v80, 16
    %v422 = vrot.slane %v420, 5
    %v423 = vsel %vm85, %v418, %v422
    %v424 = vshrl.u32 %v80, 16
    %v426 = vrot.slane %v424, 4
    %v427 = vor.u32 %v426, %v422
    %v428 = vrot.slane %v427, 4
    %v430 = vshll.u32 %v81, 16
    %v432 = vrot.slane %v430, 5
    %v433 = vsel %vm85, %v428, %v432
    %s434 = scalar_lea.vmem %s1, 2
    %v435 = vld [vmem:[%s434] sm:$0x3]
    %v436 = vunpack.c.l.b16 %v99
    %v437 = vunpack.c.l.b16 %v109
    %v438 = vunpack.c.l.b16 %v119
    %v439 = vunpack.c.l.b16 %v129
    %v440 = vunpack.c.l.b16 %v139
    %v441 = vunpack.c.l.b16 %v149
    %v442 = vunpack.c.l.b16 %v159
    %v443 = vunpack.c.l.b16 %v169
    %v444 = vunpack.c.l.b16 %v179
    %v445 = vunpack.c.l.b16 %v189
    %v446 = vunpack.c.l.b16 %v199
    %v447 = vunpack.c.l.b16 %v209
    %v448 = vunpack.c.l.b16 %v219
    %v449 = vunpack.c.l.b16 %v229
    %v450 = vunpack.c.l.b16 %v239
    %v451 = vunpack.c.l.b16 %v249
    %v452 = vunpack.c.l.b16 %v259
    %v453 = vunpack.c.l.b16 %v273
    %v454 = vunpack.c.l.b16 %v283
    %v455 = vunpack.c.l.b16 %v293
    %v456 = vunpack.c.l.b16 %v303
    %v457 = vunpack.c.l.b16 %v313
    %v458 = vunpack.c.l.b16 %v323
    %v459 = vunpack.c.l.b16 %v333
    %v460 = vunpack.c.l.b16 %v343
    %v461 = vunpack.c.l.b16 %v353
    %v462 = vunpack.c.l.b16 %v363
    %v463 = vunpack.c.l.b16 %v373
    %v464 = vunpack.c.l.b16 %v383
    %v465 = vunpack.c.l.b16 %v393
    %v466 = vunpack.c.l.b16 %v403
    %v467 = vunpack.c.l.b16 %v413
    %v468 = vunpack.c.l.b16 %v423
    %v469 = vunpack.c.l.b16 %v433
    %v470 = vpack.c.b16 %v437, %v436
    %v471 = vpack.c.b16 %v439, %v438
    %v472 = vpack.c.b16 %v441, %v440
    %v473 = vpack.c.b16 %v443, %v442
    %v474 = vpack.c.b16 %v445, %v444
    %v475 = vpack.c.b16 %v447, %v446
    %v476 = vpack.c.b16 %v449, %v448
    %v477 = vpack.c.b16 %v451, %v450
    %v478 = vpack.c.b16 %v453, %v452
    %v479 = vpack.c.b16 %v455, %v454
    %v480 = vpack.c.b16 %v457, %v456
    %v481 = vpack.c.b16 %v459, %v458
    %v482 = vpack.c.b16 %v461, %v460
    %v483 = vpack.c.b16 %v463, %v462
    %v484 = vpack.c.b16 %v465, %v464
    %v485 = vpack.c.b16 %v467, %v466
    %v486 = vpack.c.b16 %v469, %v468
    %vm487 = vcmask 31744
    %v489 = vsel %vm487, %v470, 0
    %v492 = vsel %vm487, %v471, 0
    %v495 = vsel %vm487, %v472, 0
    %v498 = vsel %vm487, %v473, 0
    %v501 = vsel %vm487, %v474, 0
    %v504 = vsel %vm487, %v475, 0
    %v507 = vsel %vm487, %v476, 0
    %v510 = vsel %vm487, %v477, 0
    %v513 = vsel %vm487, %v478, 0
    %v516 = vsel %vm487, %v479, 0
    %v519 = vsel %vm487, %v480, 0
    %v522 = vsel %vm487, %v481, 0
    %v525 = vsel %vm487, %v482, 0
    %v528 = vsel %vm487, %v483, 0
    %v531 = vsel %vm487, %v484, 0
    %v534 = vsel %vm487, %v485, 0
    %v537 = vsel %vm487, %v486, 0
    %vm539 = vcmask 1041408
    %v541 = vsel %vm539, %v435, 0
    %543 = vmatprep.subr.bf16.mxu0 0
    %544 = vmatpush1.bf16.msra.mxu0 %v541
    %545 = vmatprep.subr.bf16.mxu0 0
    %546 = vmatpush1.bf16.msra.mxu0 0
    %547 = vmatprep.subr.bf16.mxu0 0
    %548 = vmatpush1.bf16.msra.mxu0 0
    %549 = vmatprep.subr.bf16.mxu0 0
    %550 = vmatpush1.bf16.msra.mxu0 0
    %551 = vmatprep.subr.bf16.mxu0 0
    %552 = vmatpush1.bf16.msra.mxu0 0
    %553 = vmatprep.subr.bf16.mxu0 0
    %554 = vmatpush1.bf16.msra.mxu0 0
    %555 = vmatprep.subr.bf16.mxu0 0
    %556 = vmatpush1.bf16.msra.mxu0 0
    %557 = vmatprep.subr.bf16.mxu0 0
    %558 = vmatpush1.bf16.msra.mxu0 0
    %559 = vmatprep.subr.bf16.mxu0 0
    %560 = vmatpush1.bf16.msra.mxu0 0
    %561 = vmatprep.subr.bf16.mxu0 0
    %562 = vmatpush1.bf16.msra.mxu0 0
    %563 = vmatprep.subr.bf16.mxu0 0
    %564 = vmatpush1.bf16.msra.mxu0 0
    %565 = vmatprep.subr.bf16.mxu0 0
    %566 = vmatpush1.bf16.msra.mxu0 0
    %567 = vmatprep.subr.bf16.mxu0 0
    %568 = vmatpush1.bf16.msra.mxu0 0
    %569 = vmatprep.subr.bf16.mxu0 0
    %570 = vmatpush1.bf16.msra.mxu0 0
    %571 = vmatprep.subr.bf16.mxu0 0
    %572 = vmatpush1.bf16.msra.mxu0 0
    %573 = vmatprep.subr.bf16.mxu0 0
    %574 = vmatpush1.bf16.msra.mxu0 0
    %575 = vmatprep.mubr.bf16.mxu0 0
    %576 = vmatmul.mubr.bf16.gmra.mrb[0].mxu0 %v489
    %v577 = vpop.f32.mrb[0].mxu0
    %v578 = vadd.f32 0.0, %v577
    %v579 = vpop.f32.mrb[0].mxu0
    %v580 = vpop.f32.mrb[0].mxu0
    %v581 = vadd.f32 0.0, %v580
    %v582 = vpop.f32.mrb[0].mxu0
    %583 = vmatprep.mubr.bf16.mxu0 0
    %584 = vmatmul.mubr.bf16.gmra.mrb[0].mxu0 %v492
    %v585 = vpop.f32.mrb[0].mxu0
    %v586 = vadd.f32 0.0, %v585
    %v587 = vpop.f32.mrb[0].mxu0
    %v588 = vpop.f32.mrb[0].mxu0
    %v589 = vadd.f32 0.0, %v588
    %v590 = vpop.f32.mrb[0].mxu0
    %591 = vmatprep.mubr.bf16.mxu0 0
    %592 = vmatmul.mubr.bf16.gmra.mrb[0].mxu0 %v495
    %v593 = vpop.f32.mrb[0].mxu0
    %v594 = vadd.f32 0.0, %v593
    %v595 = vpop.f32.mrb[0].mxu0
    %v596 = vpop.f32.mrb[0].mxu0
    %v597 = vadd.f32 0.0, %v596
    %v598 = vpop.f32.mrb[0].mxu0
    %599 = vmatprep.mubr.bf16.mxu0 0
    %600 = vmatmul.mubr.bf16.gmra.mrb[0].mxu0 %v498
    %v601 = vpop.f32.mrb[0].mxu0
    %v602 = vadd.f32 0.0, %v601
    %v603 = vpop.f32.mrb[0].mxu0
    %v604 = vpop.f32.mrb[0].mxu0
    %v605 = vadd.f32 0.0, %v604
    %v606 = vpop.f32.mrb[0].mxu0
    %607 = vmatprep.mubr.bf16.mxu0 0
    %608 = vmatmul.mubr.bf16.gmra.mrb[0].mxu0 %v501
    %v609 = vpop.f32.mrb[0].mxu0
    %v610 = vadd.f32 0.0, %v609
    %v611 = vpop.f32.mrb[0].mxu0
    %v612 = vpop.f32.mrb[0].mxu0
    %v613 = vadd.f32 0.0, %v612
    %v614 = vpop.f32.mrb[0].mxu0
    %615 = vmatprep.mubr.bf16.mxu0 0
    %616 = vmatmul.mubr.bf16.gmra.mrb[0].mxu0 %v504
    %v617 = vpop.f32.mrb[0].mxu0
    %v618 = vadd.f32 0.0, %v617
    %v619 = vpop.f32.mrb[0].mxu0
    %v620 = vpop.f32.mrb[0].mxu0
    %v621 = vadd.f32 0.0, %v620
    %v622 = vpop.f32.mrb[0].mxu0
    %623 = vmatprep.mubr.bf16.mxu0 0
    %624 = vmatmul.mubr.bf16.gmra.mrb[0].mxu0 %v507
    %v625 = vpop.f32.mrb[0].mxu0
    %v626 = vadd.f32 0.0, %v625
    %v627 = vpop.f32.mrb[0].mxu0
    %v628 = vpop.f32.mrb[0].mxu0
    %v629 = vadd.f32 0.0, %v628
    %v630 = vpop.f32.mrb[0].mxu0
    %631 = vmatprep.mubr.bf16.mxu0 0
    %632 = vmatmul.mubr.bf16.gmra.mrb[0].mxu0 %v510
    %v633 = vpop.f32.mrb[0].mxu0
    %v634 = vadd.f32 0.0, %v633
    %v635 = vpop.f32.mrb[0].mxu0
    %v636 = vpop.f32.mrb[0].mxu0
    %v637 = vadd.f32 0.0, %v636
    %v638 = vpop.f32.mrb[0].mxu0
    %639 = vmatprep.mubr.bf16.mxu0 0
    %640 = vmatmul.mubr.bf16.gmra.mrb[0].mxu0 %v513
    %v641 = vpop.f32.mrb[0].mxu0
    %v642 = vadd.f32 0.0, %v641
    %v643 = vpop.f32.mrb[0].mxu0
    %v644 = vpop.f32.mrb[0].mxu0
    %v645 = vadd.f32 0.0, %v644
    %v646 = vpop.f32.mrb[0].mxu0
    %647 = vmatprep.mubr.bf16.mxu0 0
    %648 = vmatmul.mubr.bf16.gmra.mrb[0].mxu0 %v516
    %v649 = vpop.f32.mrb[0].mxu0
    %v650 = vadd.f32 0.0, %v649
    %v651 = vpop.f32.mrb[0].mxu0
    %v652 = vpop.f32.mrb[0].mxu0
    %v653 = vadd.f32 0.0, %v652
    %v654 = vpop.f32.mrb[0].mxu0
    %655 = vmatprep.mubr.bf16.mxu0 0
    %656 = vmatmul.mubr.bf16.gmra.mrb[0].mxu0 %v519
    %v657 = vpop.f32.mrb[0].mxu0
    %v658 = vadd.f32 0.0, %v657
    %v659 = vpop.f32.mrb[0].mxu0
    %v660 = vpop.f32.mrb[0].mxu0
    %v661 = vadd.f32 0.0, %v660
    %v662 = vpop.f32.mrb[0].mxu0
    %663 = vmatprep.mubr.bf16.mxu0 0
    %664 = vmatmul.mubr.bf16.gmra.mrb[0].mxu0 %v522
    %v665 = vpop.f32.mrb[0].mxu0
    %v666 = vadd.f32 0.0, %v665
    %v667 = vpop.f32.mrb[0].mxu0
    %v668 = vpop.f32.mrb[0].mxu0
    %v669 = vadd.f32 0.0, %v668
    %v670 = vpop.f32.mrb[0].mxu0
    %671 = vmatprep.mubr.bf16.mxu0 0
    %672 = vmatmul.mubr.bf16.gmra.mrb[0].mxu0 %v525
    %v673 = vpop.f32.mrb[0].mxu0
    %v674 = vadd.f32 0.0, %v673
    %v675 = vpop.f32.mrb[0].mxu0
    %v676 = vpop.f32.mrb[0].mxu0
    %v677 = vadd.f32 0.0, %v676
    %v678 = vpop.f32.mrb[0].mxu0
    %679 = vmatprep.mubr.bf16.mxu0 0
    %680 = vmatmul.mubr.bf16.gmra.mrb[0].mxu0 %v528
    %v681 = vpop.f32.mrb[0].mxu0
    %v682 = vadd.f32 0.0, %v681
    %v683 = vpop.f32.mrb[0].mxu0
    %v684 = vpop.f32.mrb[0].mxu0
    %v685 = vadd.f32 0.0, %v684
    %v686 = vpop.f32.mrb[0].mxu0
    %687 = vmatprep.mubr.bf16.mxu0 0
    %688 = vmatmul.mubr.bf16.gmra.mrb[0].mxu0 %v531
    %v689 = vpop.f32.mrb[0].mxu0
    %v690 = vadd.f32 0.0, %v689
    %v691 = vpop.f32.mrb[0].mxu0
    %v692 = vpop.f32.mrb[0].mxu0
    %v693 = vadd.f32 0.0, %v692
    %v694 = vpop.f32.mrb[0].mxu0
    %695 = vmatprep.mubr.bf16.mxu0 0
    %696 = vmatmul.mubr.bf16.gmra.mrb[0].mxu0 %v534
    %v697 = vpop.f32.mrb[0].mxu0
    %v698 = vadd.f32 0.0, %v697
    %v699 = vpop.f32.mrb[0].mxu0
    %v700 = vpop.f32.mrb[0].mxu0
    %v701 = vadd.f32 0.0, %v700
    %v702 = vpop.f32.mrb[0].mxu0
    %703 = vmatprep.mubr.bf16.mxu0 0
    %704 = vmatmul.mubr.bf16.gmra.mrb[0].mxu0 %v537
    %v705 = vpop.f32.mrb[0].mxu0
    %v706 = vadd.f32 0.0, %v705
    %v707 = vpop.f32.mrb[0].mxu0
    %v708 = vpop.f32.mrb[0].mxu0
    %v709 = vadd.f32 0.0, %v708
    %v710 = vpop.f32.mrb[0].mxu0
    %711 = vdwg.mxu0
    %v746 = vunpack.c.l.b16 %v46
    %v747 = vunpack.c.l.b16 %v47
    %v748 = vunpack.c.l.b16 %v48
    %v749 = vunpack.c.l.b16 %v49
    %v750 = vunpack.c.l.b16 %v50
    %v751 = vunpack.c.l.b16 %v51
    %v752 = vunpack.c.l.b16 %v52
    %v753 = vunpack.c.l.b16 %v53
    %v754 = vunpack.c.l.b16 %v54
    %v755 = vunpack.c.l.b16 %v55
    %v756 = vunpack.c.l.b16 %v56
    %v757 = vunpack.c.l.b16 %v57
    %v758 = vunpack.c.l.b16 %v58
    %v759 = vunpack.c.l.b16 %v59
    %v760 = vunpack.c.l.b16 %v60
    %v761 = vunpack.c.l.b16 %v61
    %v762 = vunpack.c.l.b16 %v62
    %v763 = vunpack.c.l.b16 %v64
    %v764 = vunpack.c.l.b16 %v65
    %v765 = vunpack.c.l.b16 %v66
    %v766 = vunpack.c.l.b16 %v67
    %v767 = vunpack.c.l.b16 %v68
    %v768 = vunpack.c.l.b16 %v69
    %v769 = vunpack.c.l.b16 %v70
    %v770 = vunpack.c.l.b16 %v71
    %v771 = vunpack.c.l.b16 %v72
    %v772 = vunpack.c.l.b16 %v73
    %v773 = vunpack.c.l.b16 %v74
    %v774 = vunpack.c.l.b16 %v75
    %v775 = vunpack.c.l.b16 %v76
    %v776 = vunpack.c.l.b16 %v77
    %v777 = vunpack.c.l.b16 %v78
    %v778 = vunpack.c.l.b16 %v79
    %v779 = vunpack.c.l.b16 %v80
    %v780 = vpack.c.b16 %v747, %v746
    %v781 = vpack.c.b16 %v749, %v748
    %v782 = vpack.c.b16 %v751, %v750
    %v783 = vpack.c.b16 %v753, %v752
    %v784 = vpack.c.b16 %v755, %v754
    %v785 = vpack.c.b16 %v757, %v756
    %v786 = vpack.c.b16 %v759, %v758
    %v787 = vpack.c.b16 %v761, %v760
    %v788 = vpack.c.b16 %v763, %v762
    %v789 = vpack.c.b16 %v765, %v764
    %v790 = vpack.c.b16 %v767, %v766
    %v791 = vpack.c.b16 %v769, %v768
    %v792 = vpack.c.b16 %v771, %v770
    %v793 = vpack.c.b16 %v773, %v772
    %v794 = vpack.c.b16 %v775, %v774
    %v795 = vpack.c.b16 %v777, %v776
    %v796 = vpack.c.b16 %v779, %v778
    %v798 = vsel %vm487, %v780, 0
    %v801 = vsel %vm487, %v781, 0
    %v804 = vsel %vm487, %v782, 0
    %v807 = vsel %vm487, %v783, 0
    %v810 = vsel %vm487, %v784, 0
    %v813 = vsel %vm487, %v785, 0
    %v816 = vsel %vm487, %v786, 0
    %v819 = vsel %vm487, %v787, 0
    %v822 = vsel %vm487, %v788, 0
    %v825 = vsel %vm487, %v789, 0
    %v828 = vsel %vm487, %v790, 0
    %v831 = vsel %vm487, %v791, 0
    %v834 = vsel %vm487, %v792, 0
    %v837 = vsel %vm487, %v793, 0
    %v840 = vsel %vm487, %v794, 0
    %v843 = vsel %vm487, %v795, 0
    %v846 = vsel %vm487, %v796, 0
    %v849 = vsel %vm539, %v82, 0
    %851 = vmatprep.subr.bf16.mxu0 0
    %852 = vmatpush1.bf16.msra.mxu0 %v849
    %853 = vmatprep.subr.bf16.mxu0 0
    %854 = vmatpush1.bf16.msra.mxu0 0
    %855 = vmatprep.subr.bf16.mxu0 0
    %856 = vmatpush1.bf16.msra.mxu0 0
    %857 = vmatprep.subr.bf16.mxu0 0
    %858 = vmatpush1.bf16.msra.mxu0 0
    %859 = vmatprep.subr.bf16.mxu0 0
    %860 = vmatpush1.bf16.msra.mxu0 0
    %861 = vmatprep.subr.bf16.mxu0 0
    %862 = vmatpush1.bf16.msra.mxu0 0
    %863 = vmatprep.subr.bf16.mxu0 0
    %864 = vmatpush1.bf16.msra.mxu0 0
    %865 = vmatprep.subr.bf16.mxu0 0
    %866 = vmatpush1.bf16.msra.mxu0 0
    %867 = vmatprep.subr.bf16.mxu0 0
    %868 = vmatpush1.bf16.msra.mxu0 0
    %869 = vmatprep.subr.bf16.mxu0 0
    %870 = vmatpush1.bf16.msra.mxu0 0
    %871 = vmatprep.subr.bf16.mxu0 0
    %872 = vmatpush1.bf16.msra.mxu0 0
    %873 = vmatprep.subr.bf16.mxu0 0
    %874 = vmatpush1.bf16.msra.mxu0 0
    %875 = vmatprep.subr.bf16.mxu0 0
    %876 = vmatpush1.bf16.msra.mxu0 0
    %877 = vmatprep.subr.bf16.mxu0 0
    %878 = vmatpush1.bf16.msra.mxu0 0
    %879 = vmatprep.subr.bf16.mxu0 0
    %880 = vmatpush1.bf16.msra.mxu0 0
    %881 = vmatprep.subr.bf16.mxu0 0
    %882 = vmatpush1.bf16.msra.mxu0 0
    %883 = vmatprep.mubr.bf16.mxu0 0
    %884 = vmatmul.mubr.bf16.gmra.mrb[0].mxu0 %v798
    %v885 = vpop.f32.mrb[0].mxu0
    %v886 = vadd.f32 %v578, %v885
    %v887 = vpop.f32.mrb[0].mxu0
    %v888 = vpop.f32.mrb[0].mxu0
    %v889 = vadd.f32 %v581, %v888
    %v890 = vpop.f32.mrb[0].mxu0
    %891 = vmatprep.mubr.bf16.mxu0 0
    %892 = vmatmul.mubr.bf16.gmra.mrb[0].mxu0 %v801
    %v893 = vpop.f32.mrb[0].mxu0
    %v894 = vadd.f32 %v586, %v893
    %v895 = vpop.f32.mrb[0].mxu0
    %v896 = vpop.f32.mrb[0].mxu0
    %v897 = vadd.f32 %v589, %v896
    %v898 = vpop.f32.mrb[0].mxu0
    %899 = vmatprep.mubr.bf16.mxu0 0
    %900 = vmatmul.mubr.bf16.gmra.mrb[0].mxu0 %v804
    %v901 = vpop.f32.mrb[0].mxu0
    %v902 = vadd.f32 %v594, %v901
    %v903 = vpop.f32.mrb[0].mxu0
    %v904 = vpop.f32.mrb[0].mxu0
    %v905 = vadd.f32 %v597, %v904
    %v906 = vpop.f32.mrb[0].mxu0
    %907 = vmatprep.mubr.bf16.mxu0 0
    %908 = vmatmul.mubr.bf16.gmra.mrb[0].mxu0 %v807
    %v909 = vpop.f32.mrb[0].mxu0
    %v910 = vadd.f32 %v602, %v909
    %v911 = vpop.f32.mrb[0].mxu0
    %v912 = vpop.f32.mrb[0].mxu0
    %v913 = vadd.f32 %v605, %v912
    %v914 = vpop.f32.mrb[0].mxu0
    %915 = vmatprep.mubr.bf16.mxu0 0
    %916 = vmatmul.mubr.bf16.gmra.mrb[0].mxu0 %v810
    %v917 = vpop.f32.mrb[0].mxu0
    %v918 = vadd.f32 %v610, %v917
    %v919 = vpop.f32.mrb[0].mxu0
    %v920 = vpop.f32.mrb[0].mxu0
    %v921 = vadd.f32 %v613, %v920
    %v922 = vpop.f32.mrb[0].mxu0
    %923 = vmatprep.mubr.bf16.mxu0 0
    %924 = vmatmul.mubr.bf16.gmra.mrb[0].mxu0 %v813
    %v925 = vpop.f32.mrb[0].mxu0
    %v926 = vadd.f32 %v618, %v925
    %v927 = vpop.f32.mrb[0].mxu0
    %v928 = vpop.f32.mrb[0].mxu0
    %v929 = vadd.f32 %v621, %v928
    %v930 = vpop.f32.mrb[0].mxu0
    %931 = vmatprep.mubr.bf16.mxu0 0
    %932 = vmatmul.mubr.bf16.gmra.mrb[0].mxu0 %v816
    %v933 = vpop.f32.mrb[0].mxu0
    %v934 = vadd.f32 %v626, %v933
    %v935 = vpop.f32.mrb[0].mxu0
    %v936 = vpop.f32.mrb[0].mxu0
    %v937 = vadd.f32 %v629, %v936
    %v938 = vpop.f32.mrb[0].mxu0
    %939 = vmatprep.mubr.bf16.mxu0 0
    %940 = vmatmul.mubr.bf16.gmra.mrb[0].mxu0 %v819
    %v941 = vpop.f32.mrb[0].mxu0
    %v942 = vadd.f32 %v634, %v941
    %v943 = vpop.f32.mrb[0].mxu0
    %v944 = vpop.f32.mrb[0].mxu0
    %v945 = vadd.f32 %v637, %v944
    %v946 = vpop.f32.mrb[0].mxu0
    %947 = vmatprep.mubr.bf16.mxu0 0
    %948 = vmatmul.mubr.bf16.gmra.mrb[0].mxu0 %v822
    %v949 = vpop.f32.mrb[0].mxu0
    %v950 = vadd.f32 %v642, %v949
    %v951 = vpop.f32.mrb[0].mxu0
    %v952 = vpop.f32.mrb[0].mxu0
    %v953 = vadd.f32 %v645, %v952
    %v954 = vpop.f32.mrb[0].mxu0
    %955 = vmatprep.mubr.bf16.mxu0 0
    %956 = vmatmul.mubr.bf16.gmra.mrb[0].mxu0 %v825
    %v957 = vpop.f32.mrb[0].mxu0
    %v958 = vadd.f32 %v650, %v957
    %v959 = vpop.f32.mrb[0].mxu0
    %v960 = vpop.f32.mrb[0].mxu0
    %v961 = vadd.f32 %v653, %v960
    %v962 = vpop.f32.mrb[0].mxu0
    %963 = vmatprep.mubr.bf16.mxu0 0
    %964 = vmatmul.mubr.bf16.gmra.mrb[0].mxu0 %v828
    %v965 = vpop.f32.mrb[0].mxu0
    %v966 = vadd.f32 %v658, %v965
    %v967 = vpop.f32.mrb[0].mxu0
    %v968 = vpop.f32.mrb[0].mxu0
    %v969 = vadd.f32 %v661, %v968
    %v970 = vpop.f32.mrb[0].mxu0
    %971 = vmatprep.mubr.bf16.mxu0 0
    %972 = vmatmul.mubr.bf16.gmra.mrb[0].mxu0 %v831
    %v973 = vpop.f32.mrb[0].mxu0
    %v974 = vadd.f32 %v666, %v973
    %v975 = vpop.f32.mrb[0].mxu0
    %v976 = vpop.f32.mrb[0].mxu0
    %v977 = vadd.f32 %v669, %v976
    %v978 = vpop.f32.mrb[0].mxu0
    %979 = vmatprep.mubr.bf16.mxu0 0
    %980 = vmatmul.mubr.bf16.gmra.mrb[0].mxu0 %v834
    %v981 = vpop.f32.mrb[0].mxu0
    %v982 = vadd.f32 %v674, %v981
    %v983 = vpop.f32.mrb[0].mxu0
    %v984 = vpop.f32.mrb[0].mxu0
    %v985 = vadd.f32 %v677, %v984
    %v986 = vpop.f32.mrb[0].mxu0
    %987 = vmatprep.mubr.bf16.mxu0 0
    %988 = vmatmul.mubr.bf16.gmra.mrb[0].mxu0 %v837
    %v989 = vpop.f32.mrb[0].mxu0
    %v990 = vadd.f32 %v682, %v989
    %v991 = vpop.f32.mrb[0].mxu0
    %v992 = vpop.f32.mrb[0].mxu0
    %v993 = vadd.f32 %v685, %v992
    %v994 = vpop.f32.mrb[0].mxu0
    %995 = vmatprep.mubr.bf16.mxu0 0
    %996 = vmatmul.mubr.bf16.gmra.mrb[0].mxu0 %v840
    %v997 = vpop.f32.mrb[0].mxu0
    %v998 = vadd.f32 %v690, %v997
    %v999 = vpop.f32.mrb[0].mxu0
    %v1000 = vpop.f32.mrb[0].mxu0
    %v1001 = vadd.f32 %v693, %v1000
    %v1002 = vpop.f32.mrb[0].mxu0
    %1003 = vmatprep.mubr.bf16.mxu0 0
    %1004 = vmatmul.mubr.bf16.gmra.mrb[0].mxu0 %v843
    %v1005 = vpop.f32.mrb[0].mxu0
    %v1006 = vadd.f32 %v698, %v1005
    %v1007 = vpop.f32.mrb[0].mxu0
    %v1008 = vpop.f32.mrb[0].mxu0
    %v1009 = vadd.f32 %v701, %v1008
    %v1010 = vpop.f32.mrb[0].mxu0
    %1011 = vmatprep.mubr.bf16.mxu0 0
    %1012 = vmatmul.mubr.bf16.gmra.mrb[0].mxu0 %v846
    %v1013 = vpop.f32.mrb[0].mxu0
    %v1014 = vadd.f32 %v706, %v1013
    %v1015 = vpop.f32.mrb[0].mxu0
    %v1016 = vpop.f32.mrb[0].mxu0
    %v1017 = vadd.f32 %v709, %v1016
    %v1018 = vpop.f32.mrb[0].mxu0
    %1019 = vdwg.mxu0
    %vm1022 = vcmask 1042432
    %vm1023 = vcmask 1046532
    %vm1024 = vmor %vm1022, %vm1023
    %v1025 = vrot.slane %v46, 5
    %v1026 = vrot.slane %v1025, 4
    %v1027 = vrot.slane %v47, 5
    %v1028 = vsel %vm1024, %v1026, %v1027
    %v1029 = vrot.slane %v1027, 4
    %v1030 = vrot.slane %v48, 5
    %v1031 = vsel %vm1024, %v1029, %v1030
    %v1032 = vrot.slane %v1030, 4
    %v1033 = vrot.slane %v49, 5
    %v1034 = vsel %vm1024, %v1032, %v1033
    %v1035 = vrot.slane %v1033, 4
    %v1036 = vrot.slane %v50, 5
    %v1037 = vsel %vm1024, %v1035, %v1036
    %v1038 = vrot.slane %v1036, 4
    %v1039 = vrot.slane %v51, 5
    %v1040 = vsel %vm1024, %v1038, %v1039
    %v1041 = vrot.slane %v1039, 4
    %v1042 = vrot.slane %v52, 5
    %v1043 = vsel %vm1024, %v1041, %v1042
    %v1044 = vrot.slane %v1042, 4
    %v1045 = vrot.slane %v53, 5
    %v1046 = vsel %vm1024, %v1044, %v1045
    %v1047 = vrot.slane %v1045, 4
    %v1048 = vrot.slane %v54, 5
    %v1049 = vsel %vm1024, %v1047, %v1048
    %v1050 = vrot.slane %v1048, 4
    %v1051 = vrot.slane %v55, 5
    %v1052 = vsel %vm1024, %v1050, %v1051
    %v1053 = vrot.slane %v1051, 4
    %v1054 = vrot.slane %v56, 5
    %v1055 = vsel %vm1024, %v1053, %v1054
    %v1056 = vrot.slane %v1054, 4
    %v1057 = vrot.slane %v57, 5
    %v1058 = vsel %vm1024, %v1056, %v1057
    %v1059 = vrot.slane %v1057, 4
    %v1060 = vrot.slane %v58, 5
    %v1061 = vsel %vm1024, %v1059, %v1060
    %v1062 = vrot.slane %v1060, 4
    %v1063 = vrot.slane %v59, 5
    %v1064 = vsel %vm1024, %v1062, %v1063
    %v1065 = vrot.slane %v1063, 4
    %v1066 = vrot.slane %v60, 5
    %v1067 = vsel %vm1024, %v1065, %v1066
    %v1068 = vrot.slane %v1066, 4
    %v1069 = vrot.slane %v61, 5
    %v1070 = vsel %vm1024, %v1068, %v1069
    %v1071 = vrot.slane %v1069, 4
    %v1072 = vrot.slane %v62, 5
    %v1073 = vsel %vm1024, %v1071, %v1072
    %v1074 = vrot.slane %v1072, 4
    %v1075 = vrot.slane %v63, 5
    %v1076 = vsel %vm1024, %v1074, %v1075
    %v1077 = vrot.slane %v64, 5
    %v1078 = vrot.slane %v1077, 4
    %v1079 = vrot.slane %v65, 5
    %v1080 = vsel %vm1024, %v1078, %v1079
    %v1081 = vrot.slane %v1079, 4
    %v1082 = vrot.slane %v66, 5
    %v1083 = vsel %vm1024, %v1081, %v1082
    %v1084 = vrot.slane %v1082, 4
    %v1085 = vrot.slane %v67, 5
    %v1086 = vsel %vm1024, %v1084, %v1085
    %v1087 = vrot.slane %v1085, 4
    %v1088 = vrot.slane %v68, 5
    %v1089 = vsel %vm1024, %v1087, %v1088
    %v1090 = vrot.slane %v1088, 4
    %v1091 = vrot.slane %v69, 5
    %v1092 = vsel %vm1024, %v1090, %v1091
    %v1093 = vrot.slane %v1091, 4
    %v1094 = vrot.slane %v70, 5
    %v1095 = vsel %vm1024, %v1093, %v1094
    %v1096 = vrot.slane %v1094, 4
    %v1097 = vrot.slane %v71, 5
    %v1098 = vsel %vm1024, %v1096, %v1097
    %v1099 = vrot.slane %v1097, 4
    %v1100 = vrot.slane %v72, 5
    %v1101 = vsel %vm1024, %v1099, %v1100
    %v1102 = vrot.slane %v1100, 4
    %v1103 = vrot.slane %v73, 5
    %v1104 = vsel %vm1024, %v1102, %v1103
    %v1105 = vrot.slane %v1103, 4
    %v1106 = vrot.slane %v74, 5
    %v1107 = vsel %vm1024, %v1105, %v1106
    %v1108 = vrot.slane %v1106, 4
    %v1109 = vrot.slane %v75, 5
    %v1110 = vsel %vm1024, %v1108, %v1109
    %v1111 = vrot.slane %v1109, 4
    %v1112 = vrot.slane %v76, 5
    %v1113 = vsel %vm1024, %v1111, %v1112
    %v1114 = vrot.slane %v1112, 4
    %v1115 = vrot.slane %v77, 5
    %v1116 = vsel %vm1024, %v1114, %v1115
    %v1117 = vrot.slane %v1115, 4
    %v1118 = vrot.slane %v78, 5
    %v1119 = vsel %vm1024, %v1117, %v1118
    %v1120 = vrot.slane %v1118, 4
    %v1121 = vrot.slane %v79, 5
    %v1122 = vsel %vm1024, %v1120, %v1121
    %v1123 = vrot.slane %v1121, 4
    %v1124 = vrot.slane %v80, 5
    %v1125 = vsel %vm1024, %v1123, %v1124
    %v1126 = vrot.slane %v1124, 4
    %v1127 = vrot.slane %v81, 5
    %v1128 = vsel %vm1024, %v1126, %v1127
    %s1129 = scalar_lea.vmem %s1, 4
    %v1130 = vld [vmem:[%s1129] sm:$0x3]
    %v1131 = vunpack.c.l.b16 %v1028
    %v1132 = vunpack.c.l.b16 %v1031
    %v1133 = vunpack.c.l.b16 %v1034
    %v1134 = vunpack.c.l.b16 %v1037
    %v1135 = vunpack.c.l.b16 %v1040
    %v1136 = vunpack.c.l.b16 %v1043
    %v1137 = vunpack.c.l.b16 %v1046
    %v1138 = vunpack.c.l.b16 %v1049
    %v1139 = vunpack.c.l.b16 %v1052
    %v1140 = vunpack.c.l.b16 %v1055
    %v1141 = vunpack.c.l.b16 %v1058
    %v1142 = vunpack.c.l.b16 %v1061
    %v1143 = vunpack.c.l.b16 %v1064
    %v1144 = vunpack.c.l.b16 %v1067
    %v1145 = vunpack.c.l.b16 %v1070
    %v1146 = vunpack.c.l.b16 %v1073
    %v1147 = vunpack.c.l.b16 %v1076
    %v1148 = vunpack.c.l.b16 %v1080
    %v1149 = vunpack.c.l.b16 %v1083
    %v1150 = vunpack.c.l.b16 %v1086
    %v1151 = vunpack.c.l.b16 %v1089
    %v1152 = vunpack.c.l.b16 %v1092
    %v1153 = vunpack.c.l.b16 %v1095
    %v1154 = vunpack.c.l.b16 %v1098
    %v1155 = vunpack.c.l.b16 %v1101
    %v1156 = vunpack.c.l.b16 %v1104
    %v1157 = vunpack.c.l.b16 %v1107
    %v1158 = vunpack.c.l.b16 %v1110
    %v1159 = vunpack.c.l.b16 %v1113
    %v1160 = vunpack.c.l.b16 %v1116
    %v1161 = vunpack.c.l.b16 %v1119
    %v1162 = vunpack.c.l.b16 %v1122
    %v1163 = vunpack.c.l.b16 %v1125
    %v1164 = vunpack.c.l.b16 %v1128
    %v1165 = vpack.c.b16 %v1132, %v1131
    %v1166 = vpack.c.b16 %v1134, %v1133
    %v1167 = vpack.c.b16 %v1136, %v1135
    %v1168 = vpack.c.b16 %v1138, %v1137
    %v1169 = vpack.c.b16 %v1140, %v1139
    %v1170 = vpack.c.b16 %v1142, %v1141
    %v1171 = vpack.c.b16 %v1144, %v1143
    %v1172 = vpack.c.b16 %v1146, %v1145
    %v1173 = vpack.c.b16 %v1148, %v1147
    %v1174 = vpack.c.b16 %v1150, %v1149
    %v1175 = vpack.c.b16 %v1152, %v1151
    %v1176 = vpack.c.b16 %v1154, %v1153
    %v1177 = vpack.c.b16 %v1156, %v1155
    %v1178 = vpack.c.b16 %v1158, %v1157
    %v1179 = vpack.c.b16 %v1160, %v1159
    %v1180 = vpack.c.b16 %v1162, %v1161
    %v1181 = vpack.c.b16 %v1164, %v1163
    %v1183 = vsel %vm487, %v1165, 0
    %v1186 = vsel %vm487, %v1166, 0
    %v1189 = vsel %vm487, %v1167, 0
    %v1192 = vsel %vm487, %v1168, 0
    %v1195 = vsel %vm487, %v1169, 0
    %v1198 = vsel %vm487, %v1170, 0
    %v1201 = vsel %vm487, %v1171, 0
    %v1204 = vsel %vm487, %v1172, 0
    %v1207 = vsel %vm487, %v1173, 0
    %v1210 = vsel %vm487, %v1174, 0
    %v1213 = vsel %vm487, %v1175, 0
    %v1216 = vsel %vm487, %v1176, 0
    %v1219 = vsel %vm487, %v1177, 0
    %v1222 = vsel %vm487, %v1178, 0
    %v1225 = vsel %vm487, %v1179, 0
    %v1228 = vsel %vm487, %v1180, 0
    %v1231 = vsel %vm487, %v1181, 0
    %v1234 = vsel %vm539, %v1130, 0
    %1236 = vmatprep.subr.bf16.mxu0 0
    %1237 = vmatpush1.bf16.msra.mxu0 %v1234
    %1238 = vmatprep.subr.bf16.mxu0 0
    %1239 = vmatpush1.bf16.msra.mxu0 0
    %1240 = vmatprep.subr.bf16.mxu0 0
    %1241 = vmatpush1.bf16.msra.mxu0 0
    %1242 = vmatprep.subr.bf16.mxu0 0
    %1243 = vmatpush1.bf16.msra.mxu0 0
    %1244 = vmatprep.subr.bf16.mxu0 0
    %1245 = vmatpush1.bf16.msra.mxu0 0
    %1246 = vmatprep.subr.bf16.mxu0 0
    %1247 = vmatpush1.bf16.msra.mxu0 0
    %1248 = vmatprep.subr.bf16.mxu0 0
    %1249 = vmatpush1.bf16.msra.mxu0 0
    %1250 = vmatprep.subr.bf16.mxu0 0
    %1251 = vmatpush1.bf16.msra.mxu0 0
    %1252 = vmatprep.subr.bf16.mxu0 0
    %1253 = vmatpush1.bf16.msra.mxu0 0
    %1254 = vmatprep.subr.bf16.mxu0 0
    %1255 = vmatpush1.bf16.msra.mxu0 0
    %1256 = vmatprep.subr.bf16.mxu0 0
    %1257 = vmatpush1.bf16.msra.mxu0 0
    %1258 = vmatprep.subr.bf16.mxu0 0
    %1259 = vmatpush1.bf16.msra.mxu0 0
    %1260 = vmatprep.subr.bf16.mxu0 0
    %1261 = vmatpush1.bf16.msra.mxu0 0
    %1262 = vmatprep.subr.bf16.mxu0 0
    %1263 = vmatpush1.bf16.msra.mxu0 0
    %1264 = vmatprep.subr.bf16.mxu0 0
    %1265 = vmatpush1.bf16.msra.mxu0 0
    %1266 = vmatprep.subr.bf16.mxu0 0
    %1267 = vmatpush1.bf16.msra.mxu0 0
    %1268 = vmatprep.mubr.bf16.mxu0 0
    %1269 = vmatmul.mubr.bf16.gmra.mrb[0].mxu0 %v1183
    %v1270 = vpop.f32.mrb[0].mxu0
    %v1271 = vadd.f32 0.0, %v1270
    %v1272 = vpop.f32.mrb[0].mxu0
    %v1273 = vpop.f32.mrb[0].mxu0
    %v1274 = vadd.f32 0.0, %v1273
    %v1275 = vpop.f32.mrb[0].mxu0
    %1276 = vmatprep.mubr.bf16.mxu0 0
    %1277 = vmatmul.mubr.bf16.gmra.mrb[0].mxu0 %v1186
    %v1278 = vpop.f32.mrb[0].mxu0
    %v1279 = vadd.f32 0.0, %v1278
    %v1280 = vpop.f32.mrb[0].mxu0
    %v1281 = vpop.f32.mrb[0].mxu0
    %v1282 = vadd.f32 0.0, %v1281
    %v1283 = vpop.f32.mrb[0].mxu0
    %1284 = vmatprep.mubr.bf16.mxu0 0
    %1285 = vmatmul.mubr.bf16.gmra.mrb[0].mxu0 %v1189
    %v1286 = vpop.f32.mrb[0].mxu0
    %v1287 = vadd.f32 0.0, %v1286
    %v1288 = vpop.f32.mrb[0].mxu0
    %v1289 = vpop.f32.mrb[0].mxu0
    %v1290 = vadd.f32 0.0, %v1289
    %v1291 = vpop.f32.mrb[0].mxu0
    %1292 = vmatprep.mubr.bf16.mxu0 0
    %1293 = vmatmul.mubr.bf16.gmra.mrb[0].mxu0 %v1192
    %v1294 = vpop.f32.mrb[0].mxu0
    %v1295 = vadd.f32 0.0, %v1294
    %v1296 = vpop.f32.mrb[0].mxu0
    %v1297 = vpop.f32.mrb[0].mxu0
    %v1298 = vadd.f32 0.0, %v1297
    %v1299 = vpop.f32.mrb[0].mxu0
    %1300 = vmatprep.mubr.bf16.mxu0 0
    %1301 = vmatmul.mubr.bf16.gmra.mrb[0].mxu0 %v1195
    %v1302 = vpop.f32.mrb[0].mxu0
    %v1303 = vadd.f32 0.0, %v1302
    %v1304 = vpop.f32.mrb[0].mxu0
    %v1305 = vpop.f32.mrb[0].mxu0
    %v1306 = vadd.f32 0.0, %v1305
    %v1307 = vpop.f32.mrb[0].mxu0
    %1308 = vmatprep.mubr.bf16.mxu0 0
    %1309 = vmatmul.mubr.bf16.gmra.mrb[0].mxu0 %v1198
    %v1310 = vpop.f32.mrb[0].mxu0
    %v1311 = vadd.f32 0.0, %v1310
    %v1312 = vpop.f32.mrb[0].mxu0
    %v1313 = vpop.f32.mrb[0].mxu0
    %v1314 = vadd.f32 0.0, %v1313
    %v1315 = vpop.f32.mrb[0].mxu0
    %1316 = vmatprep.mubr.bf16.mxu0 0
    %1317 = vmatmul.mubr.bf16.gmra.mrb[0].mxu0 %v1201
    %v1318 = vpop.f32.mrb[0].mxu0
    %v1319 = vadd.f32 0.0, %v1318
    %v1320 = vpop.f32.mrb[0].mxu0
    %v1321 = vpop.f32.mrb[0].mxu0
    %v1322 = vadd.f32 0.0, %v1321
    %v1323 = vpop.f32.mrb[0].mxu0
    %1324 = vmatprep.mubr.bf16.mxu0 0
    %1325 = vmatmul.mubr.bf16.gmra.mrb[0].mxu0 %v1204
    %v1326 = vpop.f32.mrb[0].mxu0
    %v1327 = vadd.f32 0.0, %v1326
    %v1328 = vpop.f32.mrb[0].mxu0
    %v1329 = vpop.f32.mrb[0].mxu0
    %v1330 = vadd.f32 0.0, %v1329
    %v1331 = vpop.f32.mrb[0].mxu0
    %1332 = vmatprep.mubr.bf16.mxu0 0
    %1333 = vmatmul.mubr.bf16.gmra.mrb[0].mxu0 %v1207
    %v1334 = vpop.f32.mrb[0].mxu0
    %v1335 = vadd.f32 0.0, %v1334
    %v1336 = vpop.f32.mrb[0].mxu0
    %v1337 = vpop.f32.mrb[0].mxu0
    %v1338 = vadd.f32 0.0, %v1337
    %v1339 = vpop.f32.mrb[0].mxu0
    %1340 = vmatprep.mubr.bf16.mxu0 0
    %1341 = vmatmul.mubr.bf16.gmra.mrb[0].mxu0 %v1210
    %v1342 = vpop.f32.mrb[0].mxu0
    %v1343 = vadd.f32 0.0, %v1342
    %v1344 = vpop.f32.mrb[0].mxu0
    %v1345 = vpop.f32.mrb[0].mxu0
    %v1346 = vadd.f32 0.0, %v1345
    %v1347 = vpop.f32.mrb[0].mxu0
    %1348 = vmatprep.mubr.bf16.mxu0 0
    %1349 = vmatmul.mubr.bf16.gmra.mrb[0].mxu0 %v1213
    %v1350 = vpop.f32.mrb[0].mxu0
    %v1351 = vadd.f32 0.0, %v1350
    %v1352 = vpop.f32.mrb[0].mxu0
    %v1353 = vpop.f32.mrb[0].mxu0
    %v1354 = vadd.f32 0.0, %v1353
    %v1355 = vpop.f32.mrb[0].mxu0
    %1356 = vmatprep.mubr.bf16.mxu0 0
    %1357 = vmatmul.mubr.bf16.gmra.mrb[0].mxu0 %v1216
    %v1358 = vpop.f32.mrb[0].mxu0
    %v1359 = vadd.f32 0.0, %v1358
    %v1360 = vpop.f32.mrb[0].mxu0
    %v1361 = vpop.f32.mrb[0].mxu0
    %v1362 = vadd.f32 0.0, %v1361
    %v1363 = vpop.f32.mrb[0].mxu0
    %1364 = vmatprep.mubr.bf16.mxu0 0
    %1365 = vmatmul.mubr.bf16.gmra.mrb[0].mxu0 %v1219
    %v1366 = vpop.f32.mrb[0].mxu0
    %v1367 = vadd.f32 0.0, %v1366
    %v1368 = vpop.f32.mrb[0].mxu0
    %v1369 = vpop.f32.mrb[0].mxu0
    %v1370 = vadd.f32 0.0, %v1369
    %v1371 = vpop.f32.mrb[0].mxu0
    %1372 = vmatprep.mubr.bf16.mxu0 0
    %1373 = vmatmul.mubr.bf16.gmra.mrb[0].mxu0 %v1222
    %v1374 = vpop.f32.mrb[0].mxu0
    %v1375 = vadd.f32 0.0, %v1374
    %v1376 = vpop.f32.mrb[0].mxu0
    %v1377 = vpop.f32.mrb[0].mxu0
    %v1378 = vadd.f32 0.0, %v1377
    %v1379 = vpop.f32.mrb[0].mxu0
    %1380 = vmatprep.mubr.bf16.mxu0 0
    %1381 = vmatmul.mubr.bf16.gmra.mrb[0].mxu0 %v1225
    %v1382 = vpop.f32.mrb[0].mxu0
    %v1383 = vadd.f32 0.0, %v1382
    %v1384 = vpop.f32.mrb[0].mxu0
    %v1385 = vpop.f32.mrb[0].mxu0
    %v1386 = vadd.f32 0.0, %v1385
    %v1387 = vpop.f32.mrb[0].mxu0
    %1388 = vmatprep.mubr.bf16.mxu0 0
    %1389 = vmatmul.mubr.bf16.gmra.mrb[0].mxu0 %v1228
    %v1390 = vpop.f32.mrb[0].mxu0
    %v1391 = vadd.f32 0.0, %v1390
    %v1392 = vpop.f32.mrb[0].mxu0
    %v1393 = vpop.f32.mrb[0].mxu0
    %v1394 = vadd.f32 0.0, %v1393
    %v1395 = vpop.f32.mrb[0].mxu0
    %1396 = vmatprep.mubr.bf16.mxu0 0
    %1397 = vmatmul.mubr.bf16.gmra.mrb[0].mxu0 %v1231
    %v1398 = vpop.f32.mrb[0].mxu0
    %v1399 = vadd.f32 0.0, %v1398
    %v1400 = vpop.f32.mrb[0].mxu0
    %v1401 = vpop.f32.mrb[0].mxu0
    %v1402 = vadd.f32 0.0, %v1401
    %v1403 = vpop.f32.mrb[0].mxu0
    %1404 = vdwg.mxu0
    %v1405 = vadd.f32 %v886, %v1271
    %v1406 = vadd.f32 %v889, %v1274
    %v1407 = vadd.f32 %v894, %v1279
    %v1408 = vadd.f32 %v897, %v1282
    %v1409 = vadd.f32 %v902, %v1287
    %v1410 = vadd.f32 %v905, %v1290
    %v1411 = vadd.f32 %v910, %v1295
    %v1412 = vadd.f32 %v913, %v1298
    %v1413 = vadd.f32 %v918, %v1303
    %v1414 = vadd.f32 %v921, %v1306
    %v1415 = vadd.f32 %v926, %v1311
    %v1416 = vadd.f32 %v929, %v1314
    %v1417 = vadd.f32 %v934, %v1319
    %v1418 = vadd.f32 %v937, %v1322
    %v1419 = vadd.f32 %v942, %v1327
    %v1420 = vadd.f32 %v945, %v1330
    %v1421 = vadd.f32 %v950, %v1335
    %v1422 = vadd.f32 %v953, %v1338
    %v1423 = vadd.f32 %v958, %v1343
    %v1424 = vadd.f32 %v961, %v1346
    %v1425 = vadd.f32 %v966, %v1351
    %v1426 = vadd.f32 %v969, %v1354
    %v1427 = vadd.f32 %v974, %v1359
    %v1428 = vadd.f32 %v977, %v1362
    %v1429 = vadd.f32 %v982, %v1367
    %v1430 = vadd.f32 %v985, %v1370
    %v1431 = vadd.f32 %v990, %v1375
    %v1432 = vadd.f32 %v993, %v1378
    %v1433 = vadd.f32 %v998, %v1383
    %v1434 = vadd.f32 %v1001, %v1386
    %v1435 = vadd.f32 %v1006, %v1391
    %v1436 = vadd.f32 %v1009, %v1394
    %v1437 = vadd.f32 %v1014, %v1399
    %v1438 = vadd.f32 %v1017, %v1402
    %vm1439 = vsmask.f32 2304
    %vm1440 = vsmask.f32 6416
    %vm1441 = vmor %vm1439, %vm1440
    %v1442 = vrot.slane %v87, 5
    %v1443 = vrot.slane %v90, 6
    %v1444 = vor.u32 %v1442, %v1443
    %v1445 = vrot.slane %v1444, 4
    %v1446 = vrot.slane %v100, 5
    %v1447 = vrot.slane %v96, 6
    %v1448 = vor.u32 %v1446, %v1447
    %v1449 = vsel %vm1441, %v1445, %v1448
    %v1450 = vrot.slane %v1448, 4
    %v1451 = vrot.slane %v110, 5
    %v1452 = vrot.slane %v106, 6
    %v1453 = vor.u32 %v1451, %v1452
    %v1454 = vsel %vm1441, %v1450, %v1453
    %v1455 = vrot.slane %v1453, 4
    %v1456 = vrot.slane %v120, 5
    %v1457 = vrot.slane %v116, 6
    %v1458 = vor.u32 %v1456, %v1457
    %v1459 = vsel %vm1441, %v1455, %v1458
    %v1460 = vrot.slane %v1458, 4
    %v1461 = vrot.slane %v130, 5
    %v1462 = vrot.slane %v126, 6
    %v1463 = vor.u32 %v1461, %v1462
    %v1464 = vsel %vm1441, %v1460, %v1463
    %v1465 = vrot.slane %v1463, 4
    %v1466 = vrot.slane %v140, 5
    %v1467 = vrot.slane %v136, 6
    %v1468 = vor.u32 %v1466, %v1467
    %v1469 = vsel %vm1441, %v1465, %v1468
    %v1470 = vrot.slane %v1468, 4
    %v1471 = vrot.slane %v150, 5
    %v1472 = vrot.slane %v146, 6
    %v1473 = vor.u32 %v1471, %v1472
    %v1474 = vsel %vm1441, %v1470, %v1473
    %v1475 = vrot.slane %v1473, 4
    %v1476 = vrot.slane %v160, 5
    %v1477 = vrot.slane %v156, 6
    %v1478 = vor.u32 %v1476, %v1477
    %v1479 = vsel %vm1441, %v1475, %v1478
    %v1480 = vrot.slane %v1478, 4
    %v1481 = vrot.slane %v170, 5
    %v1482 = vrot.slane %v166, 6
    %v1483 = vor.u32 %v1481, %v1482
    %v1484 = vsel %vm1441, %v1480, %v1483
    %v1485 = vrot.slane %v1483, 4
    %v1486 = vrot.slane %v180, 5
    %v1487 = vrot.slane %v176, 6
    %v1488 = vor.u32 %v1486, %v1487
    %v1489 = vsel %vm1441, %v1485, %v1488
    %v1490 = vrot.slane %v1488, 4
    %v1491 = vrot.slane %v190, 5
    %v1492 = vrot.slane %v186, 6
    %v1493 = vor.u32 %v1491, %v1492
    %v1494 = vsel %vm1441, %v1490, %v1493
    %v1495 = vrot.slane %v1493, 4
    %v1496 = vrot.slane %v200, 5
    %v1497 = vrot.slane %v196, 6
    %v1498 = vor.u32 %v1496, %v1497
    %v1499 = vsel %vm1441, %v1495, %v1498
    %v1500 = vrot.slane %v1498, 4
    %v1501 = vrot.slane %v210, 5
    %v1502 = vrot.slane %v206, 6
    %v1503 = vor.u32 %v1501, %v1502
    %v1504 = vsel %vm1441, %v1500, %v1503
    %v1505 = vrot.slane %v1503, 4
    %v1506 = vrot.slane %v220, 5
    %v1507 = vrot.slane %v216, 6
    %v1508 = vor.u32 %v1506, %v1507
    %v1509 = vsel %vm1441, %v1505, %v1508
    %v1510 = vrot.slane %v1508, 4
    %v1511 = vrot.slane %v230, 5
    %v1512 = vrot.slane %v226, 6
    %v1513 = vor.u32 %v1511, %v1512
    %v1514 = vsel %vm1441, %v1510, %v1513
    %v1515 = vrot.slane %v1513, 4
    %v1516 = vrot.slane %v240, 5
    %v1517 = vrot.slane %v236, 6
    %v1518 = vor.u32 %v1516, %v1517
    %v1519 = vsel %vm1441, %v1515, %v1518
    %v1520 = vrot.slane %v1518, 4
    %v1521 = vrot.slane %v250, 5
    %v1522 = vrot.slane %v246, 6
    %v1523 = vor.u32 %v1521, %v1522
    %v1524 = vsel %vm1441, %v1520, %v1523
    %v1525 = vrot.slane %v1523, 4
    %v1526 = vshrl.u32 %v63, 16
    %v1528 = vrot.slane %v1526, 5
    %v1529 = vrot.slane %v256, 6
    %v1530 = vor.u32 %v1528, %v1529
    %v1531 = vsel %vm1441, %v1525, %v1530
    %v1532 = vrot.slane %v261, 5
    %v1533 = vrot.slane %v264, 6
    %v1534 = vor.u32 %v1532, %v1533
    %v1535 = vrot.slane %v1534, 4
    %v1536 = vrot.slane %v274, 5
    %v1537 = vrot.slane %v270, 6
    %v1538 = vor.u32 %v1536, %v1537
    %v1539 = vsel %vm1441, %v1535, %v1538
    %v1540 = vrot.slane %v1538, 4
    %v1541 = vrot.slane %v284, 5
    %v1542 = vrot.slane %v280, 6
    %v1543 = vor.u32 %v1541, %v1542
    %v1544 = vsel %vm1441, %v1540, %v1543
    %v1545 = vrot.slane %v1543, 4
    %v1546 = vrot.slane %v294, 5
    %v1547 = vrot.slane %v290, 6
    %v1548 = vor.u32 %v1546, %v1547
    %v1549 = vsel %vm1441, %v1545, %v1548
    %v1550 = vrot.slane %v1548, 4
    %v1551 = vrot.slane %v304, 5
    %v1552 = vrot.slane %v300, 6
    %v1553 = vor.u32 %v1551, %v1552
    %v1554 = vsel %vm1441, %v1550, %v1553
    %v1555 = vrot.slane %v1553, 4
    %v1556 = vrot.slane %v314, 5
    %v1557 = vrot.slane %v310, 6
    %v1558 = vor.u32 %v1556, %v1557
    %v1559 = vsel %vm1441, %v1555, %v1558
    %v1560 = vrot.slane %v1558, 4
    %v1561 = vrot.slane %v324, 5
    %v1562 = vrot.slane %v320, 6
    %v1563 = vor.u32 %v1561, %v1562
    %v1564 = vsel %vm1441, %v1560, %v1563
    %v1565 = vrot.slane %v1563, 4
    %v1566 = vrot.slane %v334, 5
    %v1567 = vrot.slane %v330, 6
    %v1568 = vor.u32 %v1566, %v1567
    %v1569 = vsel %vm1441, %v1565, %v1568
    %v1570 = vrot.slane %v1568, 4
    %v1571 = vrot.slane %v344, 5
    %v1572 = vrot.slane %v340, 6
    %v1573 = vor.u32 %v1571, %v1572
    %v1574 = vsel %vm1441, %v1570, %v1573
    %v1575 = vrot.slane %v1573, 4
    %v1576 = vrot.slane %v354, 5
    %v1577 = vrot.slane %v350, 6
    %v1578 = vor.u32 %v1576, %v1577
    %v1579 = vsel %vm1441, %v1575, %v1578
    %v1580 = vrot.slane %v1578, 4
    %v1581 = vrot.slane %v364, 5
    %v1582 = vrot.slane %v360, 6
    %v1583 = vor.u32 %v1581, %v1582
    %v1584 = vsel %vm1441, %v1580, %v1583
    %v1585 = vrot.slane %v1583, 4
    %v1586 = vrot.slane %v374, 5
    %v1587 = vrot.slane %v370, 6
    %v1588 = vor.u32 %v1586, %v1587
    %v1589 = vsel %vm1441, %v1585, %v1588
    %v1590 = vrot.slane %v1588, 4
    %v1591 = vrot.slane %v384, 5
    %v1592 = vrot.slane %v380, 6
    %v1593 = vor.u32 %v1591, %v1592
    %v1594 = vsel %vm1441, %v1590, %v1593
    %v1595 = vrot.slane %v1593, 4
    %v1596 = vrot.slane %v394, 5
    %v1597 = vrot.slane %v390, 6
    %v1598 = vor.u32 %v1596, %v1597
    %v1599 = vsel %vm1441, %v1595, %v1598
    %v1600 = vrot.slane %v1598, 4
    %v1601 = vrot.slane %v404, 5
    %v1602 = vrot.slane %v400, 6
    %v1603 = vor.u32 %v1601, %v1602
    %v1604 = vsel %vm1441, %v1600, %v1603
    %v1605 = vrot.slane %v1603, 4
    %v1606 = vrot.slane %v414, 5
    %v1607 = vrot.slane %v410, 6
    %v1608 = vor.u32 %v1606, %v1607
    %v1609 = vsel %vm1441, %v1605, %v1608
    %v1610 = vrot.slane %v1608, 4
    %v1611 = vrot.slane %v424, 5
    %v1612 = vrot.slane %v420, 6
    %v1613 = vor.u32 %v1611, %v1612
    %v1614 = vsel %vm1441, %v1610, %v1613
    %v1615 = vrot.slane %v1613, 4
    %v1616 = vshrl.u32 %v81, 16
    %v1618 = vrot.slane %v1616, 5
    %v1619 = vrot.slane %v430, 6
    %v1620 = vor.u32 %v1618, %v1619
    %v1621 = vsel %vm1441, %v1615, %v1620
    %s1622 = scalar_lea.vmem %s1, 6
    %v1623 = vld [vmem:[%s1622] sm:$0x3]
    %v1624 = vunpack.c.l.b16 %v1449
    %v1625 = vunpack.c.l.b16 %v1454
    %v1626 = vunpack.c.l.b16 %v1459
    %v1627 = vunpack.c.l.b16 %v1464
    %v1628 = vunpack.c.l.b16 %v1469
    %v1629 = vunpack.c.l.b16 %v1474
    %v1630 = vunpack.c.l.b16 %v1479
    %v1631 = vunpack.c.l.b16 %v1484
    %v1632 = vunpack.c.l.b16 %v1489
    %v1633 = vunpack.c.l.b16 %v1494
    %v1634 = vunpack.c.l.b16 %v1499
    %v1635 = vunpack.c.l.b16 %v1504
    %v1636 = vunpack.c.l.b16 %v1509
    %v1637 = vunpack.c.l.b16 %v1514
    %v1638 = vunpack.c.l.b16 %v1519
    %v1639 = vunpack.c.l.b16 %v1524
    %v1640 = vunpack.c.l.b16 %v1531
    %v1641 = vunpack.c.l.b16 %v1539
    %v1642 = vunpack.c.l.b16 %v1544
    %v1643 = vunpack.c.l.b16 %v1549
    %v1644 = vunpack.c.l.b16 %v1554
    %v1645 = vunpack.c.l.b16 %v1559
    %v1646 = vunpack.c.l.b16 %v1564
    %v1647 = vunpack.c.l.b16 %v1569
    %v1648 = vunpack.c.l.b16 %v1574
    %v1649 = vunpack.c.l.b16 %v1579
    %v1650 = vunpack.c.l.b16 %v1584
    %v1651 = vunpack.c.l.b16 %v1589
    %v1652 = vunpack.c.l.b16 %v1594
    %v1653 = vunpack.c.l.b16 %v1599
    %v1654 = vunpack.c.l.b16 %v1604
    %v1655 = vunpack.c.l.b16 %v1609
    %v1656 = vunpack.c.l.b16 %v1614
    %v1657 = vunpack.c.l.b16 %v1621
    %v1658 = vpack.c.b16 %v1625, %v1624
    %v1659 = vpack.c.b16 %v1627, %v1626
    %v1660 = vpack.c.b16 %v1629, %v1628
    %v1661 = vpack.c.b16 %v1631, %v1630
    %v1662 = vpack.c.b16 %v1633, %v1632
    %v1663 = vpack.c.b16 %v1635, %v1634
    %v1664 = vpack.c.b16 %v1637, %v1636
    %v1665 = vpack.c.b16 %v1639, %v1638
    %v1666 = vpack.c.b16 %v1641, %v1640
    %v1667 = vpack.c.b16 %v1643, %v1642
    %v1668 = vpack.c.b16 %v1645, %v1644
    %v1669 = vpack.c.b16 %v1647, %v1646
    %v1670 = vpack.c.b16 %v1649, %v1648
    %v1671 = vpack.c.b16 %v1651, %v1650
    %v1672 = vpack.c.b16 %v1653, %v1652
    %v1673 = vpack.c.b16 %v1655, %v1654
    %v1674 = vpack.c.b16 %v1657, %v1656
    %v1676 = vsel %vm487, %v1658, 0
    %v1679 = vsel %vm487, %v1659, 0
    %v1682 = vsel %vm487, %v1660, 0
    %v1685 = vsel %vm487, %v1661, 0
    %v1688 = vsel %vm487, %v1662, 0
    %v1691 = vsel %vm487, %v1663, 0
    %v1694 = vsel %vm487, %v1664, 0
    %v1697 = vsel %vm487, %v1665, 0
    %v1700 = vsel %vm487, %v1666, 0
    %v1703 = vsel %vm487, %v1667, 0
    %v1706 = vsel %vm487, %v1668, 0
    %v1709 = vsel %vm487, %v1669, 0
    %v1712 = vsel %vm487, %v1670, 0
    %v1715 = vsel %vm487, %v1671, 0
    %v1718 = vsel %vm487, %v1672, 0
    %v1721 = vsel %vm487, %v1673, 0
    %v1724 = vsel %vm487, %v1674, 0
    %v1727 = vsel %vm539, %v1623, 0
    %1729 = vmatprep.subr.bf16.mxu0 0
    %1730 = vmatpush1.bf16.msra.mxu0 %v1727
    %1731 = vmatprep.subr.bf16.mxu0 0
    %1732 = vmatpush1.bf16.msra.mxu0 0
    %1733 = vmatprep.subr.bf16.mxu0 0
    %1734 = vmatpush1.bf16.msra.mxu0 0
    %1735 = vmatprep.subr.bf16.mxu0 0
    %1736 = vmatpush1.bf16.msra.mxu0 0
    %1737 = vmatprep.subr.bf16.mxu0 0
    %1738 = vmatpush1.bf16.msra.mxu0 0
    %1739 = vmatprep.subr.bf16.mxu0 0
    %1740 = vmatpush1.bf16.msra.mxu0 0
    %1741 = vmatprep.subr.bf16.mxu0 0
    %1742 = vmatpush1.bf16.msra.mxu0 0
    %1743 = vmatprep.subr.bf16.mxu0 0
    %1744 = vmatpush1.bf16.msra.mxu0 0
    %1745 = vmatprep.subr.bf16.mxu0 0
    %1746 = vmatpush1.bf16.msra.mxu0 0
    %1747 = vmatprep.subr.bf16.mxu0 0
    %1748 = vmatpush1.bf16.msra.mxu0 0
    %1749 = vmatprep.subr.bf16.mxu0 0
    %1750 = vmatpush1.bf16.msra.mxu0 0
    %1751 = vmatprep.subr.bf16.mxu0 0
    %1752 = vmatpush1.bf16.msra.mxu0 0
    %1753 = vmatprep.subr.bf16.mxu0 0
    %1754 = vmatpush1.bf16.msra.mxu0 0
    %1755 = vmatprep.subr.bf16.mxu0 0
    %1756 = vmatpush1.bf16.msra.mxu0 0
    %1757 = vmatprep.subr.bf16.mxu0 0
    %1758 = vmatpush1.bf16.msra.mxu0 0
    %1759 = vmatprep.subr.bf16.mxu0 0
    %1760 = vmatpush1.bf16.msra.mxu0 0
    %1761 = vmatprep.mubr.bf16.mxu0 0
    %1762 = vmatmul.mubr.bf16.gmra.mrb[0].mxu0 %v1676
    %v1763 = vpop.f32.mrb[0].mxu0
    %v1764 = vadd.f32 0.0, %v1763
    %v1765 = vpop.f32.mrb[0].mxu0
    %v1766 = vpop.f32.mrb[0].mxu0
    %v1767 = vadd.f32 0.0, %v1766
    %v1768 = vpop.f32.mrb[0].mxu0
    %1769 = vmatprep.mubr.bf16.mxu0 0
    %1770 = vmatmul.mubr.bf16.gmra.mrb[0].mxu0 %v1679
    %v1771 = vpop.f32.mrb[0].mxu0
    %v1772 = vadd.f32 0.0, %v1771
    %v1773 = vpop.f32.mrb[0].mxu0
    %v1774 = vpop.f32.mrb[0].mxu0
    %v1775 = vadd.f32 0.0, %v1774
    %v1776 = vpop.f32.mrb[0].mxu0
    %1777 = vmatprep.mubr.bf16.mxu0 0
    %1778 = vmatmul.mubr.bf16.gmra.mrb[0].mxu0 %v1682
    %v1779 = vpop.f32.mrb[0].mxu0
    %v1780 = vadd.f32 0.0, %v1779
    %v1781 = vpop.f32.mrb[0].mxu0
    %v1782 = vpop.f32.mrb[0].mxu0
    %v1783 = vadd.f32 0.0, %v1782
    %v1784 = vpop.f32.mrb[0].mxu0
    %1785 = vmatprep.mubr.bf16.mxu0 0
    %1786 = vmatmul.mubr.bf16.gmra.mrb[0].mxu0 %v1685
    %v1787 = vpop.f32.mrb[0].mxu0
    %v1788 = vadd.f32 0.0, %v1787
    %v1789 = vpop.f32.mrb[0].mxu0
    %v1790 = vpop.f32.mrb[0].mxu0
    %v1791 = vadd.f32 0.0, %v1790
    %v1792 = vpop.f32.mrb[0].mxu0
    %1793 = vmatprep.mubr.bf16.mxu0 0
    %1794 = vmatmul.mubr.bf16.gmra.mrb[0].mxu0 %v1688
    %v1795 = vpop.f32.mrb[0].mxu0
    %v1796 = vadd.f32 0.0, %v1795
    %v1797 = vpop.f32.mrb[0].mxu0
    %v1798 = vpop.f32.mrb[0].mxu0
    %v1799 = vadd.f32 0.0, %v1798
    %v1800 = vpop.f32.mrb[0].mxu0
    %1801 = vmatprep.mubr.bf16.mxu0 0
    %1802 = vmatmul.mubr.bf16.gmra.mrb[0].mxu0 %v1691
    %v1803 = vpop.f32.mrb[0].mxu0
    %v1804 = vadd.f32 0.0, %v1803
    %v1805 = vpop.f32.mrb[0].mxu0
    %v1806 = vpop.f32.mrb[0].mxu0
    %v1807 = vadd.f32 0.0, %v1806
    %v1808 = vpop.f32.mrb[0].mxu0
    %1809 = vmatprep.mubr.bf16.mxu0 0
    %1810 = vmatmul.mubr.bf16.gmra.mrb[0].mxu0 %v1694
    %v1811 = vpop.f32.mrb[0].mxu0
    %v1812 = vadd.f32 0.0, %v1811
    %v1813 = vpop.f32.mrb[0].mxu0
    %v1814 = vpop.f32.mrb[0].mxu0
    %v1815 = vadd.f32 0.0, %v1814
    %v1816 = vpop.f32.mrb[0].mxu0
    %1817 = vmatprep.mubr.bf16.mxu0 0
    %1818 = vmatmul.mubr.bf16.gmra.mrb[0].mxu0 %v1697
    %v1819 = vpop.f32.mrb[0].mxu0
    %v1820 = vadd.f32 0.0, %v1819
    %v1821 = vpop.f32.mrb[0].mxu0
    %v1822 = vpop.f32.mrb[0].mxu0
    %v1823 = vadd.f32 0.0, %v1822
    %v1824 = vpop.f32.mrb[0].mxu0
    %1825 = vmatprep.mubr.bf16.mxu0 0
    %1826 = vmatmul.mubr.bf16.gmra.mrb[0].mxu0 %v1700
    %v1827 = vpop.f32.mrb[0].mxu0
    %v1828 = vadd.f32 0.0, %v1827
    %v1829 = vpop.f32.mrb[0].mxu0
    %v1830 = vpop.f32.mrb[0].mxu0
    %v1831 = vadd.f32 0.0, %v1830
    %v1832 = vpop.f32.mrb[0].mxu0
    %1833 = vmatprep.mubr.bf16.mxu0 0
    %1834 = vmatmul.mubr.bf16.gmra.mrb[0].mxu0 %v1703
    %v1835 = vpop.f32.mrb[0].mxu0
    %v1836 = vadd.f32 0.0, %v1835
    %v1837 = vpop.f32.mrb[0].mxu0
    %v1838 = vpop.f32.mrb[0].mxu0
    %v1839 = vadd.f32 0.0, %v1838
    %v1840 = vpop.f32.mrb[0].mxu0
    %1841 = vmatprep.mubr.bf16.mxu0 0
    %1842 = vmatmul.mubr.bf16.gmra.mrb[0].mxu0 %v1706
    %v1843 = vpop.f32.mrb[0].mxu0
    %v1844 = vadd.f32 0.0, %v1843
    %v1845 = vpop.f32.mrb[0].mxu0
    %v1846 = vpop.f32.mrb[0].mxu0
    %v1847 = vadd.f32 0.0, %v1846
    %v1848 = vpop.f32.mrb[0].mxu0
    %1849 = vmatprep.mubr.bf16.mxu0 0
    %1850 = vmatmul.mubr.bf16.gmra.mrb[0].mxu0 %v1709
    %v1851 = vpop.f32.mrb[0].mxu0
    %v1852 = vadd.f32 0.0, %v1851
    %v1853 = vpop.f32.mrb[0].mxu0
    %v1854 = vpop.f32.mrb[0].mxu0
    %v1855 = vadd.f32 0.0, %v1854
    %v1856 = vpop.f32.mrb[0].mxu0
    %1857 = vmatprep.mubr.bf16.mxu0 0
    %1858 = vmatmul.mubr.bf16.gmra.mrb[0].mxu0 %v1712
    %v1859 = vpop.f32.mrb[0].mxu0
    %v1860 = vadd.f32 0.0, %v1859
    %v1861 = vpop.f32.mrb[0].mxu0
    %v1862 = vpop.f32.mrb[0].mxu0
    %v1863 = vadd.f32 0.0, %v1862
    %v1864 = vpop.f32.mrb[0].mxu0
    %1865 = vmatprep.mubr.bf16.mxu0 0
    %1866 = vmatmul.mubr.bf16.gmra.mrb[0].mxu0 %v1715
    %v1867 = vpop.f32.mrb[0].mxu0
    %v1868 = vadd.f32 0.0, %v1867
    %v1869 = vpop.f32.mrb[0].mxu0
    %v1870 = vpop.f32.mrb[0].mxu0
    %v1871 = vadd.f32 0.0, %v1870
    %v1872 = vpop.f32.mrb[0].mxu0
    %1873 = vmatprep.mubr.bf16.mxu0 0
    %1874 = vmatmul.mubr.bf16.gmra.mrb[0].mxu0 %v1718
    %v1875 = vpop.f32.mrb[0].mxu0
    %v1876 = vadd.f32 0.0, %v1875
    %v1877 = vpop.f32.mrb[0].mxu0
    %v1878 = vpop.f32.mrb[0].mxu0
    %v1879 = vadd.f32 0.0, %v1878
    %v1880 = vpop.f32.mrb[0].mxu0
    %1881 = vmatprep.mubr.bf16.mxu0 0
    %1882 = vmatmul.mubr.bf16.gmra.mrb[0].mxu0 %v1721
    %v1883 = vpop.f32.mrb[0].mxu0
    %v1884 = vadd.f32 0.0, %v1883
    %v1885 = vpop.f32.mrb[0].mxu0
    %v1886 = vpop.f32.mrb[0].mxu0
    %v1887 = vadd.f32 0.0, %v1886
    %v1888 = vpop.f32.mrb[0].mxu0
    %1889 = vmatprep.mubr.bf16.mxu0 0
    %1890 = vmatmul.mubr.bf16.gmra.mrb[0].mxu0 %v1724
    %v1891 = vpop.f32.mrb[0].mxu0
    %v1892 = vadd.f32 0.0, %v1891
    %v1893 = vpop.f32.mrb[0].mxu0
    %v1894 = vpop.f32.mrb[0].mxu0
    %v1895 = vadd.f32 0.0, %v1894
    %v1896 = vpop.f32.mrb[0].mxu0
    %1897 = vdwg.mxu0
    %v1898 = vadd.f32 %v1405, %v1764
    %v1899 = vadd.f32 %v1406, %v1767
    %v1900 = vadd.f32 %v1407, %v1772
    %v1901 = vadd.f32 %v1408, %v1775
    %v1902 = vadd.f32 %v1409, %v1780
    %v1903 = vadd.f32 %v1410, %v1783
    %v1904 = vadd.f32 %v1411, %v1788
    %v1905 = vadd.f32 %v1412, %v1791
    %v1906 = vadd.f32 %v1413, %v1796
    %v1907 = vadd.f32 %v1414, %v1799
    %v1908 = vadd.f32 %v1415, %v1804
    %v1909 = vadd.f32 %v1416, %v1807
    %v1910 = vadd.f32 %v1417, %v1812
    %v1911 = vadd.f32 %v1418, %v1815
    %v1912 = vadd.f32 %v1419, %v1820
    %v1913 = vadd.f32 %v1420, %v1823
    %v1914 = vadd.f32 %v1421, %v1828
    %v1915 = vadd.f32 %v1422, %v1831
    %v1916 = vadd.f32 %v1423, %v1836
    %v1917 = vadd.f32 %v1424, %v1839
    %v1918 = vadd.f32 %v1425, %v1844
    %v1919 = vadd.f32 %v1426, %v1847
    %v1920 = vadd.f32 %v1427, %v1852
    %v1921 = vadd.f32 %v1428, %v1855
    %v1922 = vadd.f32 %v1429, %v1860
    %v1923 = vadd.f32 %v1430, %v1863
    %v1924 = vadd.f32 %v1431, %v1868
    %v1925 = vadd.f32 %v1432, %v1871
    %v1926 = vadd.f32 %v1433, %v1876
    %v1927 = vadd.f32 %v1434, %v1879
    %v1928 = vadd.f32 %v1435, %v1884
    %v1929 = vadd.f32 %v1436, %v1887
    %v1930 = vadd.f32 %v1437, %v1892
    %v1931 = vadd.f32 %v1438, %v1895
    %vm1932 = vcmask 1041408
    %vm1933 = vcmask 1045508
    %vm1934 = vmor %vm1932, %vm1933
    %v1935 = vrot.slane %v46, 6
    %v1936 = vrot.slane %v1935, 4
    %v1937 = vrot.slane %v47, 6
    %v1938 = vsel %vm1934, %v1936, %v1937
    %v1939 = vrot.slane %v1937, 4
    %v1940 = vrot.slane %v48, 6
    %v1941 = vsel %vm1934, %v1939, %v1940
    %v1942 = vrot.slane %v1940, 4
    %v1943 = vrot.slane %v49, 6
    %v1944 = vsel %vm1934, %v1942, %v1943
    %v1945 = vrot.slane %v1943, 4
    %v1946 = vrot.slane %v50, 6
    %v1947 = vsel %vm1934, %v1945, %v1946
    %v1948 = vrot.slane %v1946, 4
    %v1949 = vrot.slane %v51, 6
    %v1950 = vsel %vm1934, %v1948, %v1949
    %v1951 = vrot.slane %v1949, 4
    %v1952 = vrot.slane %v52, 6
    %v1953 = vsel %vm1934, %v1951, %v1952
    %v1954 = vrot.slane %v1952, 4
    %v1955 = vrot.slane %v53, 6
    %v1956 = vsel %vm1934, %v1954, %v1955
    %v1957 = vrot.slane %v1955, 4
    %v1958 = vrot.slane %v54, 6
    %v1959 = vsel %vm1934, %v1957, %v1958
    %v1960 = vrot.slane %v1958, 4
    %v1961 = vrot.slane %v55, 6
    %v1962 = vsel %vm1934, %v1960, %v1961
    %v1963 = vrot.slane %v1961, 4
    %v1964 = vrot.slane %v56, 6
    %v1965 = vsel %vm1934, %v1963, %v1964
    %v1966 = vrot.slane %v1964, 4
    %v1967 = vrot.slane %v57, 6
    %v1968 = vsel %vm1934, %v1966, %v1967
    %v1969 = vrot.slane %v1967, 4
    %v1970 = vrot.slane %v58, 6
    %v1971 = vsel %vm1934, %v1969, %v1970
    %v1972 = vrot.slane %v1970, 4
    %v1973 = vrot.slane %v59, 6
    %v1974 = vsel %vm1934, %v1972, %v1973
    %v1975 = vrot.slane %v1973, 4
    %v1976 = vrot.slane %v60, 6
    %v1977 = vsel %vm1934, %v1975, %v1976
    %v1978 = vrot.slane %v1976, 4
    %v1979 = vrot.slane %v61, 6
    %v1980 = vsel %vm1934, %v1978, %v1979
    %v1981 = vrot.slane %v1979, 4
    %v1982 = vrot.slane %v62, 6
    %v1983 = vsel %vm1934, %v1981, %v1982
    %v1984 = vrot.slane %v1982, 4
    %v1985 = vrot.slane %v63, 6
    %v1986 = vsel %vm1934, %v1984, %v1985
    %v1987 = vrot.slane %v64, 6
    %v1988 = vrot.slane %v1987, 4
    %v1989 = vrot.slane %v65, 6
    %v1990 = vsel %vm1934, %v1988, %v1989
    %v1991 = vrot.slane %v1989, 4
    %v1992 = vrot.slane %v66, 6
    %v1993 = vsel %vm1934, %v1991, %v1992
    %v1994 = vrot.slane %v1992, 4
    %v1995 = vrot.slane %v67, 6
    %v1996 = vsel %vm1934, %v1994, %v1995
    %v1997 = vrot.slane %v1995, 4
    %v1998 = vrot.slane %v68, 6
    %v1999 = vsel %vm1934, %v1997, %v1998
    %v2000 = vrot.slane %v1998, 4
    %v2001 = vrot.slane %v69, 6
    %v2002 = vsel %vm1934, %v2000, %v2001
    %v2003 = vrot.slane %v2001, 4
    %v2004 = vrot.slane %v70, 6
    %v2005 = vsel %vm1934, %v2003, %v2004
    %v2006 = vrot.slane %v2004, 4
    %v2007 = vrot.slane %v71, 6
    %v2008 = vsel %vm1934, %v2006, %v2007
    %v2009 = vrot.slane %v2007, 4
    %v2010 = vrot.slane %v72, 6
    %v2011 = vsel %vm1934, %v2009, %v2010
    %v2012 = vrot.slane %v2010, 4
    %v2013 = vrot.slane %v73, 6
    %v2014 = vsel %vm1934, %v2012, %v2013
    %v2015 = vrot.slane %v2013, 4
    %v2016 = vrot.slane %v74, 6
    %v2017 = vsel %vm1934, %v2015, %v2016
    %v2018 = vrot.slane %v2016, 4
    %v2019 = vrot.slane %v75, 6
    %v2020 = vsel %vm1934, %v2018, %v2019
    %v2021 = vrot.slane %v2019, 4
    %v2022 = vrot.slane %v76, 6
    %v2023 = vsel %vm1934, %v2021, %v2022
    %v2024 = vrot.slane %v2022, 4
    %v2025 = vrot.slane %v77, 6
    %v2026 = vsel %vm1934, %v2024, %v2025
    %v2027 = vrot.slane %v2025, 4
    %v2028 = vrot.slane %v78, 6
    %v2029 = vsel %vm1934, %v2027, %v2028
    %v2030 = vrot.slane %v2028, 4
    %v2031 = vrot.slane %v79, 6
    %v2032 = vsel %vm1934, %v2030, %v2031
    %v2033 = vrot.slane %v2031, 4
    %v2034 = vrot.slane %v80, 6
    %v2035 = vsel %vm1934, %v2033, %v2034
    %v2036 = vrot.slane %v2034, 4
    %v2037 = vrot.slane %v81, 6
    %v2038 = vsel %vm1934, %v2036, %v2037
    %s2039 = scalar_lea.vmem %s1, 8
    %v2040 = vld [vmem:[%s2039] sm:$0x3]
    %v2041 = vunpack.c.l.b16 %v1938
    %v2042 = vunpack.c.l.b16 %v1941
    %v2043 = vunpack.c.l.b16 %v1944
    %v2044 = vunpack.c.l.b16 %v1947
    %v2045 = vunpack.c.l.b16 %v1950
    %v2046 = vunpack.c.l.b16 %v1953
    %v2047 = vunpack.c.l.b16 %v1956
    %v2048 = vunpack.c.l.b16 %v1959
    %v2049 = vunpack.c.l.b16 %v1962
    %v2050 = vunpack.c.l.b16 %v1965
    %v2051 = vunpack.c.l.b16 %v1968
    %v2052 = vunpack.c.l.b16 %v1971
    %v2053 = vunpack.c.l.b16 %v1974
    %v2054 = vunpack.c.l.b16 %v1977
    %v2055 = vunpack.c.l.b16 %v1980
    %v2056 = vunpack.c.l.b16 %v1983
    %v2057 = vunpack.c.l.b16 %v1986
    %v2058 = vunpack.c.l.b16 %v1990
    %v2059 = vunpack.c.l.b16 %v1993
    %v2060 = vunpack.c.l.b16 %v1996
    %v2061 = vunpack.c.l.b16 %v1999
    %v2062 = vunpack.c.l.b16 %v2002
    %v2063 = vunpack.c.l.b16 %v2005
    %v2064 = vunpack.c.l.b16 %v2008
    %v2065 = vunpack.c.l.b16 %v2011
    %v2066 = vunpack.c.l.b16 %v2014
    %v2067 = vunpack.c.l.b16 %v2017
    %v2068 = vunpack.c.l.b16 %v2020
    %v2069 = vunpack.c.l.b16 %v2023
    %v2070 = vunpack.c.l.b16 %v2026
    %v2071 = vunpack.c.l.b16 %v2029
    %v2072 = vunpack.c.l.b16 %v2032
    %v2073 = vunpack.c.l.b16 %v2035
    %v2074 = vunpack.c.l.b16 %v2038
    %v2075 = vpack.c.b16 %v2042, %v2041
    %v2076 = vpack.c.b16 %v2044, %v2043
    %v2077 = vpack.c.b16 %v2046, %v2045
    %v2078 = vpack.c.b16 %v2048, %v2047
    %v2079 = vpack.c.b16 %v2050, %v2049
    %v2080 = vpack.c.b16 %v2052, %v2051
    %v2081 = vpack.c.b16 %v2054, %v2053
    %v2082 = vpack.c.b16 %v2056, %v2055
    %v2083 = vpack.c.b16 %v2058, %v2057
    %v2084 = vpack.c.b16 %v2060, %v2059
    %v2085 = vpack.c.b16 %v2062, %v2061
    %v2086 = vpack.c.b16 %v2064, %v2063
    %v2087 = vpack.c.b16 %v2066, %v2065
    %v2088 = vpack.c.b16 %v2068, %v2067
    %v2089 = vpack.c.b16 %v2070, %v2069
    %v2090 = vpack.c.b16 %v2072, %v2071
    %v2091 = vpack.c.b16 %v2074, %v2073
    %v2093 = vsel %vm487, %v2075, 0
    %v2096 = vsel %vm487, %v2076, 0
    %v2099 = vsel %vm487, %v2077, 0
    %v2102 = vsel %vm487, %v2078, 0
    %v2105 = vsel %vm487, %v2079, 0
    %v2108 = vsel %vm487, %v2080, 0
    %v2111 = vsel %vm487, %v2081, 0
    %v2114 = vsel %vm487, %v2082, 0
    %v2117 = vsel %vm487, %v2083, 0
    %v2120 = vsel %vm487, %v2084, 0
    %v2123 = vsel %vm487, %v2085, 0
    %v2126 = vsel %vm487, %v2086, 0
    %v2129 = vsel %vm487, %v2087, 0
    %v2132 = vsel %vm487, %v2088, 0
    %v2135 = vsel %vm487, %v2089, 0
    %v2138 = vsel %vm487, %v2090, 0
    %v2141 = vsel %vm487, %v2091, 0
    %v2144 = vsel %vm539, %v2040, 0
    %2146 = vmatprep.subr.bf16.mxu0 0
    %2147 = vmatpush1.bf16.msra.mxu0 %v2144
    %2148 = vmatprep.subr.bf16.mxu0 0
    %2149 = vmatpush1.bf16.msra.mxu0 0
    %2150 = vmatprep.subr.bf16.mxu0 0
    %2151 = vmatpush1.bf16.msra.mxu0 0
    %2152 = vmatprep.subr.bf16.mxu0 0
    %2153 = vmatpush1.bf16.msra.mxu0 0
    %2154 = vmatprep.subr.bf16.mxu0 0
    %2155 = vmatpush1.bf16.msra.mxu0 0
    %2156 = vmatprep.subr.bf16.mxu0 0
    %2157 = vmatpush1.bf16.msra.mxu0 0
    %2158 = vmatprep.subr.bf16.mxu0 0
    %2159 = vmatpush1.bf16.msra.mxu0 0
    %2160 = vmatprep.subr.bf16.mxu0 0
    %2161 = vmatpush1.bf16.msra.mxu0 0
    %2162 = vmatprep.subr.bf16.mxu0 0
    %2163 = vmatpush1.bf16.msra.mxu0 0
    %2164 = vmatprep.subr.bf16.mxu0 0
    %2165 = vmatpush1.bf16.msra.mxu0 0
    %2166 = vmatprep.subr.bf16.mxu0 0
    %2167 = vmatpush1.bf16.msra.mxu0 0
    %2168 = vmatprep.subr.bf16.mxu0 0
    %2169 = vmatpush1.bf16.msra.mxu0 0
    %2170 = vmatprep.subr.bf16.mxu0 0
    %2171 = vmatpush1.bf16.msra.mxu0 0
    %2172 = vmatprep.subr.bf16.mxu0 0
    %2173 = vmatpush1.bf16.msra.mxu0 0
    %2174 = vmatprep.subr.bf16.mxu0 0
    %2175 = vmatpush1.bf16.msra.mxu0 0
    %2176 = vmatprep.subr.bf16.mxu0 0
    %2177 = vmatpush1.bf16.msra.mxu0 0
    %2178 = vmatprep.mubr.bf16.mxu0 0
    %2179 = vmatmul.mubr.bf16.gmra.mrb[0].mxu0 %v2093
    %v2180 = vpop.f32.mrb[0].mxu0
    %v2181 = vadd.f32 0.0, %v2180
    %v2182 = vpop.f32.mrb[0].mxu0
    %v2183 = vpop.f32.mrb[0].mxu0
    %v2184 = vadd.f32 0.0, %v2183
    %v2185 = vpop.f32.mrb[0].mxu0
    %2186 = vmatprep.mubr.bf16.mxu0 0
    %2187 = vmatmul.mubr.bf16.gmra.mrb[0].mxu0 %v2096
    %v2188 = vpop.f32.mrb[0].mxu0
    %v2189 = vadd.f32 0.0, %v2188
    %v2190 = vpop.f32.mrb[0].mxu0
    %v2191 = vpop.f32.mrb[0].mxu0
    %v2192 = vadd.f32 0.0, %v2191
    %v2193 = vpop.f32.mrb[0].mxu0
    %2194 = vmatprep.mubr.bf16.mxu0 0
    %2195 = vmatmul.mubr.bf16.gmra.mrb[0].mxu0 %v2099
    %v2196 = vpop.f32.mrb[0].mxu0
    %v2197 = vadd.f32 0.0, %v2196
    %v2198 = vpop.f32.mrb[0].mxu0
    %v2199 = vpop.f32.mrb[0].mxu0
    %v2200 = vadd.f32 0.0, %v2199
    %v2201 = vpop.f32.mrb[0].mxu0
    %2202 = vmatprep.mubr.bf16.mxu0 0
    %2203 = vmatmul.mubr.bf16.gmra.mrb[0].mxu0 %v2102
    %v2204 = vpop.f32.mrb[0].mxu0
    %v2205 = vadd.f32 0.0, %v2204
    %v2206 = vpop.f32.mrb[0].mxu0
    %v2207 = vpop.f32.mrb[0].mxu0
    %v2208 = vadd.f32 0.0, %v2207
    %v2209 = vpop.f32.mrb[0].mxu0
    %2210 = vmatprep.mubr.bf16.mxu0 0
    %2211 = vmatmul.mubr.bf16.gmra.mrb[0].mxu0 %v2105
    %v2212 = vpop.f32.mrb[0].mxu0
    %v2213 = vadd.f32 0.0, %v2212
    %v2214 = vpop.f32.mrb[0].mxu0
    %v2215 = vpop.f32.mrb[0].mxu0
    %v2216 = vadd.f32 0.0, %v2215
    %v2217 = vpop.f32.mrb[0].mxu0
    %2218 = vmatprep.mubr.bf16.mxu0 0
    %2219 = vmatmul.mubr.bf16.gmra.mrb[0].mxu0 %v2108
    %v2220 = vpop.f32.mrb[0].mxu0
    %v2221 = vadd.f32 0.0, %v2220
    %v2222 = vpop.f32.mrb[0].mxu0
    %v2223 = vpop.f32.mrb[0].mxu0
    %v2224 = vadd.f32 0.0, %v2223
    %v2225 = vpop.f32.mrb[0].mxu0
    %2226 = vmatprep.mubr.bf16.mxu0 0
    %2227 = vmatmul.mubr.bf16.gmra.mrb[0].mxu0 %v2111
    %v2228 = vpop.f32.mrb[0].mxu0
    %v2229 = vadd.f32 0.0, %v2228
    %v2230 = vpop.f32.mrb[0].mxu0
    %v2231 = vpop.f32.mrb[0].mxu0
    %v2232 = vadd.f32 0.0, %v2231
    %v2233 = vpop.f32.mrb[0].mxu0
    %2234 = vmatprep.mubr.bf16.mxu0 0
    %2235 = vmatmul.mubr.bf16.gmra.mrb[0].mxu0 %v2114
    %v2236 = vpop.f32.mrb[0].mxu0
    %v2237 = vadd.f32 0.0, %v2236
    %v2238 = vpop.f32.mrb[0].mxu0
    %v2239 = vpop.f32.mrb[0].mxu0
    %v2240 = vadd.f32 0.0, %v2239
    %v2241 = vpop.f32.mrb[0].mxu0
    %2242 = vmatprep.mubr.bf16.mxu0 0
    %2243 = vmatmul.mubr.bf16.gmra.mrb[0].mxu0 %v2117
    %v2244 = vpop.f32.mrb[0].mxu0
    %v2245 = vadd.f32 0.0, %v2244
    %v2246 = vpop.f32.mrb[0].mxu0
    %v2247 = vpop.f32.mrb[0].mxu0
    %v2248 = vadd.f32 0.0, %v2247
    %v2249 = vpop.f32.mrb[0].mxu0
    %2250 = vmatprep.mubr.bf16.mxu0 0
    %2251 = vmatmul.mubr.bf16.gmra.mrb[0].mxu0 %v2120
    %v2252 = vpop.f32.mrb[0].mxu0
    %v2253 = vadd.f32 0.0, %v2252
    %v2254 = vpop.f32.mrb[0].mxu0
    %v2255 = vpop.f32.mrb[0].mxu0
    %v2256 = vadd.f32 0.0, %v2255
    %v2257 = vpop.f32.mrb[0].mxu0
    %2258 = vmatprep.mubr.bf16.mxu0 0
    %2259 = vmatmul.mubr.bf16.gmra.mrb[0].mxu0 %v2123
    %v2260 = vpop.f32.mrb[0].mxu0
    %v2261 = vadd.f32 0.0, %v2260
    %v2262 = vpop.f32.mrb[0].mxu0
    %v2263 = vpop.f32.mrb[0].mxu0
    %v2264 = vadd.f32 0.0, %v2263
    %v2265 = vpop.f32.mrb[0].mxu0
    %2266 = vmatprep.mubr.bf16.mxu0 0
    %2267 = vmatmul.mubr.bf16.gmra.mrb[0].mxu0 %v2126
    %v2268 = vpop.f32.mrb[0].mxu0
    %v2269 = vadd.f32 0.0, %v2268
    %v2270 = vpop.f32.mrb[0].mxu0
    %v2271 = vpop.f32.mrb[0].mxu0
    %v2272 = vadd.f32 0.0, %v2271
    %v2273 = vpop.f32.mrb[0].mxu0
    %2274 = vmatprep.mubr.bf16.mxu0 0
    %2275 = vmatmul.mubr.bf16.gmra.mrb[0].mxu0 %v2129
    %v2276 = vpop.f32.mrb[0].mxu0
    %v2277 = vadd.f32 0.0, %v2276
    %v2278 = vpop.f32.mrb[0].mxu0
    %v2279 = vpop.f32.mrb[0].mxu0
    %v2280 = vadd.f32 0.0, %v2279
    %v2281 = vpop.f32.mrb[0].mxu0
    %2282 = vmatprep.mubr.bf16.mxu0 0
    %2283 = vmatmul.mubr.bf16.gmra.mrb[0].mxu0 %v2132
    %v2284 = vpop.f32.mrb[0].mxu0
    %v2285 = vadd.f32 0.0, %v2284
    %v2286 = vpop.f32.mrb[0].mxu0
    %v2287 = vpop.f32.mrb[0].mxu0
    %v2288 = vadd.f32 0.0, %v2287
    %v2289 = vpop.f32.mrb[0].mxu0
    %2290 = vmatprep.mubr.bf16.mxu0 0
    %2291 = vmatmul.mubr.bf16.gmra.mrb[0].mxu0 %v2135
    %v2292 = vpop.f32.mrb[0].mxu0
    %v2293 = vadd.f32 0.0, %v2292
    %v2294 = vpop.f32.mrb[0].mxu0
    %v2295 = vpop.f32.mrb[0].mxu0
    %v2296 = vadd.f32 0.0, %v2295
    %v2297 = vpop.f32.mrb[0].mxu0
    %2298 = vmatprep.mubr.bf16.mxu0 0
    %2299 = vmatmul.mubr.bf16.gmra.mrb[0].mxu0 %v2138
    %v2300 = vpop.f32.mrb[0].mxu0
    %v2301 = vadd.f32 0.0, %v2300
    %v2302 = vpop.f32.mrb[0].mxu0
    %v2303 = vpop.f32.mrb[0].mxu0
    %v2304 = vadd.f32 0.0, %v2303
    %v2305 = vpop.f32.mrb[0].mxu0
    %2306 = vmatprep.mubr.bf16.mxu0 0
    %2307 = vmatmul.mubr.bf16.gmra.mrb[0].mxu0 %v2141
    %v2308 = vpop.f32.mrb[0].mxu0
    %v2309 = vadd.f32 0.0, %v2308
    %v2310 = vpop.f32.mrb[0].mxu0
    %v2311 = vpop.f32.mrb[0].mxu0
    %v2312 = vadd.f32 0.0, %v2311
    %v2313 = vpop.f32.mrb[0].mxu0
    %2314 = vdwg.mxu0
    %v2315 = vadd.f32 %v1898, %v2181
    %v2316 = vadd.f32 %v1899, %v2184
    %v2317 = vadd.f32 %v1900, %v2189
    %v2318 = vadd.f32 %v1901, %v2192
    %v2319 = vadd.f32 %v1902, %v2197
    %v2320 = vadd.f32 %v1903, %v2200
    %v2321 = vadd.f32 %v1904, %v2205
    %v2322 = vadd.f32 %v1905, %v2208
    %v2323 = vadd.f32 %v1906, %v2213
    %v2324 = vadd.f32 %v1907, %v2216
    %v2325 = vadd.f32 %v1908, %v2221
    %v2326 = vadd.f32 %v1909, %v2224
    %v2327 = vadd.f32 %v1910, %v2229
    %v2328 = vadd.f32 %v1911, %v2232
    %v2329 = vadd.f32 %v1912, %v2237
    %v2330 = vadd.f32 %v1913, %v2240
    %v2331 = vadd.f32 %v1914, %v2245
    %v2332 = vadd.f32 %v1915, %v2248
    %v2333 = vadd.f32 %v1916, %v2253
    %v2334 = vadd.f32 %v1917, %v2256
    %v2335 = vadd.f32 %v1918, %v2261
    %v2336 = vadd.f32 %v1919, %v2264
    %v2337 = vadd.f32 %v1920, %v2269
    %v2338 = vadd.f32 %v1921, %v2272
    %v2339 = vadd.f32 %v1922, %v2277
    %v2340 = vadd.f32 %v1923, %v2280
    %v2341 = vadd.f32 %v1924, %v2285
    %v2342 = vadd.f32 %v1925, %v2288
    %v2343 = vadd.f32 %v1926, %v2293
    %v2344 = vadd.f32 %v1927, %v2296
    %v2345 = vadd.f32 %v1928, %v2301
    %v2346 = vadd.f32 %v1929, %v2304
    %v2347 = vadd.f32 %v1930, %v2309
    %v2348 = vadd.f32 %v1931, %v2312
    %v2349 = vld [vmem:[%s2] sm:$0x1]
    %v2351 = vlaneseq
    %v2352 = vshrl.u32 %v2351, 7
    %v2353 = vsub.s32 0, %v2352
    %v2354 = vrot.slane %v2349, %v2353
    %v2356 = vadd.f32 %v2315, %v2354
    %v2357 = vadd.f32 %v2316, %v2354
    %v2358 = vadd.f32 %v2317, %v2354
    %v2359 = vadd.f32 %v2318, %v2354
    %v2360 = vadd.f32 %v2319, %v2354
    %v2361 = vadd.f32 %v2320, %v2354
    %v2362 = vadd.f32 %v2321, %v2354
    %v2363 = vadd.f32 %v2322, %v2354
    %v2364 = vadd.f32 %v2323, %v2354
    %v2365 = vadd.f32 %v2324, %v2354
    %v2366 = vadd.f32 %v2325, %v2354
    %v2367 = vadd.f32 %v2326, %v2354
    %v2368 = vadd.f32 %v2327, %v2354
    %v2369 = vadd.f32 %v2328, %v2354
    %v2370 = vadd.f32 %v2329, %v2354
    %v2371 = vadd.f32 %v2330, %v2354
    %v2372 = vadd.f32 %v2331, %v2354
    %v2373 = vadd.f32 %v2332, %v2354
    %v2374 = vadd.f32 %v2333, %v2354
    %v2375 = vadd.f32 %v2334, %v2354
    %v2376 = vadd.f32 %v2335, %v2354
    %v2377 = vadd.f32 %v2336, %v2354
    %v2378 = vadd.f32 %v2337, %v2354
    %v2379 = vadd.f32 %v2338, %v2354
    %v2380 = vadd.f32 %v2339, %v2354
    %v2381 = vadd.f32 %v2340, %v2354
    %v2382 = vadd.f32 %v2341, %v2354
    %v2383 = vadd.f32 %v2342, %v2354
    %v2384 = vadd.f32 %v2343, %v2354
    %v2385 = vadd.f32 %v2344, %v2354
    %v2386 = vadd.f32 %v2345, %v2354
    %v2387 = vadd.f32 %v2346, %v2354
    %v2388 = vadd.f32 %v2347, %v2354
    %v2389 = vadd.f32 %v2348, %v2354
    %v2390 = vmax.f32 %v2356, 0.0
    %v2391 = vmax.f32 %v2357, 0.0
    %v2392 = vmax.f32 %v2358, 0.0
    %v2393 = vmax.f32 %v2359, 0.0
    %v2394 = vmax.f32 %v2360, 0.0
    %v2395 = vmax.f32 %v2361, 0.0
    %v2396 = vmax.f32 %v2362, 0.0
    %v2397 = vmax.f32 %v2363, 0.0
    %v2398 = vmax.f32 %v2364, 0.0
    %v2399 = vmax.f32 %v2365, 0.0
    %v2400 = vmax.f32 %v2366, 0.0
    %v2401 = vmax.f32 %v2367, 0.0
    %v2402 = vmax.f32 %v2368, 0.0
    %v2403 = vmax.f32 %v2369, 0.0
    %v2404 = vmax.f32 %v2370, 0.0
    %v2405 = vmax.f32 %v2371, 0.0
    %v2406 = vmax.f32 %v2372, 0.0
    %v2407 = vmax.f32 %v2373, 0.0
    %v2408 = vmax.f32 %v2374, 0.0
    %v2409 = vmax.f32 %v2375, 0.0
    %v2410 = vmax.f32 %v2376, 0.0
    %v2411 = vmax.f32 %v2377, 0.0
    %v2412 = vmax.f32 %v2378, 0.0
    %v2413 = vmax.f32 %v2379, 0.0
    %v2414 = vmax.f32 %v2380, 0.0
    %v2415 = vmax.f32 %v2381, 0.0
    %v2416 = vmax.f32 %v2382, 0.0
    %v2417 = vmax.f32 %v2383, 0.0
    %v2418 = vmax.f32 %v2384, 0.0
    %v2419 = vmax.f32 %v2385, 0.0
    %v2420 = vmax.f32 %v2386, 0.0
    %v2421 = vmax.f32 %v2387, 0.0
    %v2422 = vmax.f32 %v2388, 0.0
    %v2423 = vmax.f32 %v2389, 0.0
    %v2424 = vlaneseq
    %v2425 = vshrl.u32 %v2424, 7
    %v2426 = vadd.s32 %v2425, 8
    %v2427 = vadd.s32 %v2425, 16
    %v2428 = vadd.s32 %v2425, 24
    %v2429 = vadd.s32 %v2425, 32
    %v2430 = vadd.s32 %v2425, 40
    %v2431 = vadd.s32 %v2425, 48
    %v2432 = vadd.s32 %v2425, 56
    %v2433 = vadd.s32 %v2425, 64
    %v2434 = vadd.s32 %v2425, 72
    %v2435 = vadd.s32 %v2425, 80
    %v2436 = vadd.s32 %v2425, 88
    %v2437 = vadd.s32 %v2425, 96
    %v2438 = vadd.s32 %v2425, 104
    %v2439 = vadd.s32 %v2425, 112
    %v2440 = vadd.s32 %v2425, 120
    %v2441 = vadd.s32 %v2425, 128
    %v2442 = vadd.s32 %v2425, 136
    %v2443 = vadd.s32 %v2425, 144
    %v2444 = vadd.s32 %v2425, 152
    %v2445 = vadd.s32 %v2425, 160
    %v2446 = vadd.s32 %v2425, 168
    %v2447 = vadd.s32 %v2425, 176
    %v2448 = vadd.s32 %v2425, 184
    %v2449 = vadd.s32 %v2425, 192
    %v2450 = vadd.s32 %v2425, 200
    %v2451 = vadd.s32 %v2425, 208
    %v2452 = vadd.s32 %v2425, 216
    %v2453 = vadd.s32 %v2425, 224
    %v2454 = vadd.s32 %v2425, 232
    %v2455 = vadd.s32 %v2425, 240
    %v2456 = vadd.s32 %v2425, 248
    %v2457 = vadd.s32 %v2425, 256
    %v2458 = vadd.s32 %v2425, 264
    %vm2459 = vcmp.lt.s32.totalorder %v2425, 0
    %v2460 = vsub.s32 0, %v2425
    %v2461 = vsel %vm2459, %v2460, %v2425
    %v2462 = vmul.u32.u64.compose %v2461, 4042322161
    %v2463 = vextract.low.u32 %v2462
    %v2464 = vextract.high.u32 %v2462
    %v2465 = vshrl.u32 %v2464, 7
    %v2466 = vmul.u32 %v2465, 136
    %v2467 = vsub.s32 %v2461, %v2466
    %v2468 = vsub.s32 0, %v2467
    %v2469 = vsel %vm2459, %v2468, %v2467
    %vm2470 = vcmp.lt.s32.totalorder %v2426, 0
    %v2471 = vsub.s32 0, %v2426
    %v2472 = vsel %vm2470, %v2471, %v2426
    %v2473 = vmul.u32.u64.compose %v2472, 4042322161
    %v2474 = vextract.low.u32 %v2473
    %v2475 = vextract.high.u32 %v2473
    %v2476 = vshrl.u32 %v2475, 7
    %v2477 = vmul.u32 %v2476, 136
    %v2478 = vsub.s32 %v2472, %v2477
    %v2479 = vsub.s32 0, %v2478
    %v2480 = vsel %vm2470, %v2479, %v2478
    %vm2481 = vcmp.lt.s32.totalorder %v2427, 0
    %v2482 = vsub.s32 0, %v2427
    %v2483 = vsel %vm2481, %v2482, %v2427
    %v2484 = vmul.u32.u64.compose %v2483, 4042322161
    %v2485 = vextract.low.u32 %v2484
    %v2486 = vextract.high.u32 %v2484
    %v2487 = vshrl.u32 %v2486, 7
    %v2488 = vmul.u32 %v2487, 136
    %v2489 = vsub.s32 %v2483, %v2488
    %v2490 = vsub.s32 0, %v2489
    %v2491 = vsel %vm2481, %v2490, %v2489
    %vm2492 = vcmp.lt.s32.totalorder %v2428, 0
    %v2493 = vsub.s32 0, %v2428
    %v2494 = vsel %vm2492, %v2493, %v2428
    %v2495 = vmul.u32.u64.compose %v2494, 4042322161
    %v2496 = vextract.low.u32 %v2495
    %v2497 = vextract.high.u32 %v2495
    %v2498 = vshrl.u32 %v2497, 7
    %v2499 = vmul.u32 %v2498, 136
    %v2500 = vsub.s32 %v2494, %v2499
    %v2501 = vsub.s32 0, %v2500
    %v2502 = vsel %vm2492, %v2501, %v2500
    %vm2503 = vcmp.lt.s32.totalorder %v2429, 0
    %v2504 = vsub.s32 0, %v2429
    %v2505 = vsel %vm2503, %v2504, %v2429
    %v2506 = vmul.u32.u64.compose %v2505, 4042322161
    %v2507 = vextract.low.u32 %v2506
    %v2508 = vextract.high.u32 %v2506
    %v2509 = vshrl.u32 %v2508, 7
    %v2510 = vmul.u32 %v2509, 136
    %v2511 = vsub.s32 %v2505, %v2510
    %v2512 = vsub.s32 0, %v2511
    %v2513 = vsel %vm2503, %v2512, %v2511
    %vm2514 = vcmp.lt.s32.totalorder %v2430, 0
    %v2515 = vsub.s32 0, %v2430
    %v2516 = vsel %vm2514, %v2515, %v2430
    %v2517 = vmul.u32.u64.compose %v2516, 4042322161
    %v2518 = vextract.low.u32 %v2517
    %v2519 = vextract.high.u32 %v2517
    %v2520 = vshrl.u32 %v2519, 7
    %v2521 = vmul.u32 %v2520, 136
    %v2522 = vsub.s32 %v2516, %v2521
    %v2523 = vsub.s32 0, %v2522
    %v2524 = vsel %vm2514, %v2523, %v2522
    %vm2525 = vcmp.lt.s32.totalorder %v2431, 0
    %v2526 = vsub.s32 0, %v2431
    %v2527 = vsel %vm2525, %v2526, %v2431
    %v2528 = vmul.u32.u64.compose %v2527, 4042322161
    %v2529 = vextract.low.u32 %v2528
    %v2530 = vextract.high.u32 %v2528
    %v2531 = vshrl.u32 %v2530, 7
    %v2532 = vmul.u32 %v2531, 136
    %v2533 = vsub.s32 %v2527, %v2532
    %v2534 = vsub.s32 0, %v2533
    %v2535 = vsel %vm2525, %v2534, %v2533
    %vm2536 = vcmp.lt.s32.totalorder %v2432, 0
    %v2537 = vsub.s32 0, %v2432
    %v2538 = vsel %vm2536, %v2537, %v2432
    %v2539 = vmul.u32.u64.compose %v2538, 4042322161
    %v2540 = vextract.low.u32 %v2539
    %v2541 = vextract.high.u32 %v2539
    %v2542 = vshrl.u32 %v2541, 7
    %v2543 = vmul.u32 %v2542, 136
    %v2544 = vsub.s32 %v2538, %v2543
    %v2545 = vsub.s32 0, %v2544
    %v2546 = vsel %vm2536, %v2545, %v2544
    %vm2547 = vcmp.lt.s32.totalorder %v2433, 0
    %v2548 = vsub.s32 0, %v2433
    %v2549 = vsel %vm2547, %v2548, %v2433
    %v2550 = vmul.u32.u64.compose %v2549, 4042322161
    %v2551 = vextract.low.u32 %v2550
    %v2552 = vextract.high.u32 %v2550
    %v2553 = vshrl.u32 %v2552, 7
    %v2554 = vmul.u32 %v2553, 136
    %v2555 = vsub.s32 %v2549, %v2554
    %v2556 = vsub.s32 0, %v2555
    %v2557 = vsel %vm2547, %v2556, %v2555
    %vm2558 = vcmp.lt.s32.totalorder %v2434, 0
    %v2559 = vsub.s32 0, %v2434
    %v2560 = vsel %vm2558, %v2559, %v2434
    %v2561 = vmul.u32.u64.compose %v2560, 4042322161
    %v2562 = vextract.low.u32 %v2561
    %v2563 = vextract.high.u32 %v2561
    %v2564 = vshrl.u32 %v2563, 7
    %v2565 = vmul.u32 %v2564, 136
    %v2566 = vsub.s32 %v2560, %v2565
    %v2567 = vsub.s32 0, %v2566
    %v2568 = vsel %vm2558, %v2567, %v2566
    %vm2569 = vcmp.lt.s32.totalorder %v2435, 0
    %v2570 = vsub.s32 0, %v2435
    %v2571 = vsel %vm2569, %v2570, %v2435
    %v2572 = vmul.u32.u64.compose %v2571, 4042322161
    %v2573 = vextract.low.u32 %v2572
    %v2574 = vextract.high.u32 %v2572
    %v2575 = vshrl.u32 %v2574, 7
    %v2576 = vmul.u32 %v2575, 136
    %v2577 = vsub.s32 %v2571, %v2576
    %v2578 = vsub.s32 0, %v2577
    %v2579 = vsel %vm2569, %v2578, %v2577
    %vm2580 = vcmp.lt.s32.totalorder %v2436, 0
    %v2581 = vsub.s32 0, %v2436
    %v2582 = vsel %vm2580, %v2581, %v2436
    %v2583 = vmul.u32.u64.compose %v2582, 4042322161
    %v2584 = vextract.low.u32 %v2583
    %v2585 = vextract.high.u32 %v2583
    %v2586 = vshrl.u32 %v2585, 7
    %v2587 = vmul.u32 %v2586, 136
    %v2588 = vsub.s32 %v2582, %v2587
    %v2589 = vsub.s32 0, %v2588
    %v2590 = vsel %vm2580, %v2589, %v2588
    %vm2591 = vcmp.lt.s32.totalorder %v2437, 0
    %v2592 = vsub.s32 0, %v2437
    %v2593 = vsel %vm2591, %v2592, %v2437
    %v2594 = vmul.u32.u64.compose %v2593, 4042322161
    %v2595 = vextract.low.u32 %v2594
    %v2596 = vextract.high.u32 %v2594
    %v2597 = vshrl.u32 %v2596, 7
    %v2598 = vmul.u32 %v2597, 136
    %v2599 = vsub.s32 %v2593, %v2598
    %v2600 = vsub.s32 0, %v2599
    %v2601 = vsel %vm2591, %v2600, %v2599
    %vm2602 = vcmp.lt.s32.totalorder %v2438, 0
    %v2603 = vsub.s32 0, %v2438
    %v2604 = vsel %vm2602, %v2603, %v2438
    %v2605 = vmul.u32.u64.compose %v2604, 4042322161
    %v2606 = vextract.low.u32 %v2605
    %v2607 = vextract.high.u32 %v2605
    %v2608 = vshrl.u32 %v2607, 7
    %v2609 = vmul.u32 %v2608, 136
    %v2610 = vsub.s32 %v2604, %v2609
    %v2611 = vsub.s32 0, %v2610
    %v2612 = vsel %vm2602, %v2611, %v2610
    %vm2613 = vcmp.lt.s32.totalorder %v2439, 0
    %v2614 = vsub.s32 0, %v2439
    %v2615 = vsel %vm2613, %v2614, %v2439
    %v2616 = vmul.u32.u64.compose %v2615, 4042322161
    %v2617 = vextract.low.u32 %v2616
    %v2618 = vextract.high.u32 %v2616
    %v2619 = vshrl.u32 %v2618, 7
    %v2620 = vmul.u32 %v2619, 136
    %v2621 = vsub.s32 %v2615, %v2620
    %v2622 = vsub.s32 0, %v2621
    %v2623 = vsel %vm2613, %v2622, %v2621
    %vm2624 = vcmp.lt.s32.totalorder %v2440, 0
    %v2625 = vsub.s32 0, %v2440
    %v2626 = vsel %vm2624, %v2625, %v2440
    %v2627 = vmul.u32.u64.compose %v2626, 4042322161
    %v2628 = vextract.low.u32 %v2627
    %v2629 = vextract.high.u32 %v2627
    %v2630 = vshrl.u32 %v2629, 7
    %v2631 = vmul.u32 %v2630, 136
    %v2632 = vsub.s32 %v2626, %v2631
    %v2633 = vsub.s32 0, %v2632
    %v2634 = vsel %vm2624, %v2633, %v2632
    %vm2635 = vcmp.lt.s32.totalorder %v2441, 0
    %v2636 = vsub.s32 0, %v2441
    %v2637 = vsel %vm2635, %v2636, %v2441
    %v2638 = vmul.u32.u64.compose %v2637, 4042322161
    %v2639 = vextract.low.u32 %v2638
    %v2640 = vextract.high.u32 %v2638
    %v2641 = vshrl.u32 %v2640, 7
    %v2642 = vmul.u32 %v2641, 136
    %v2643 = vsub.s32 %v2637, %v2642
    %v2644 = vsub.s32 0, %v2643
    %v2645 = vsel %vm2635, %v2644, %v2643
    %vm2646 = vcmp.lt.s32.totalorder %v2442, 0
    %v2647 = vsub.s32 0, %v2442
    %v2648 = vsel %vm2646, %v2647, %v2442
    %v2649 = vmul.u32.u64.compose %v2648, 4042322161
    %v2650 = vextract.low.u32 %v2649
    %v2651 = vextract.high.u32 %v2649
    %v2652 = vshrl.u32 %v2651, 7
    %v2653 = vmul.u32 %v2652, 136
    %v2654 = vsub.s32 %v2648, %v2653
    %v2655 = vsub.s32 0, %v2654
    %v2656 = vsel %vm2646, %v2655, %v2654
    %vm2657 = vcmp.lt.s32.totalorder %v2443, 0
    %v2658 = vsub.s32 0, %v2443
    %v2659 = vsel %vm2657, %v2658, %v2443
    %v2660 = vmul.u32.u64.compose %v2659, 4042322161
    %v2661 = vextract.low.u32 %v2660
    %v2662 = vextract.high.u32 %v2660
    %v2663 = vshrl.u32 %v2662, 7
    %v2664 = vmul.u32 %v2663, 136
    %v2665 = vsub.s32 %v2659, %v2664
    %v2666 = vsub.s32 0, %v2665
    %v2667 = vsel %vm2657, %v2666, %v2665
    %vm2668 = vcmp.lt.s32.totalorder %v2444, 0
    %v2669 = vsub.s32 0, %v2444
    %v2670 = vsel %vm2668, %v2669, %v2444
    %v2671 = vmul.u32.u64.compose %v2670, 4042322161
    %v2672 = vextract.low.u32 %v2671
    %v2673 = vextract.high.u32 %v2671
    %v2674 = vshrl.u32 %v2673, 7
    %v2675 = vmul.u32 %v2674, 136
    %v2676 = vsub.s32 %v2670, %v2675
    %v2677 = vsub.s32 0, %v2676
    %v2678 = vsel %vm2668, %v2677, %v2676
    %vm2679 = vcmp.lt.s32.totalorder %v2445, 0
    %v2680 = vsub.s32 0, %v2445
    %v2681 = vsel %vm2679, %v2680, %v2445
    %v2682 = vmul.u32.u64.compose %v2681, 4042322161
    %v2683 = vextract.low.u32 %v2682
    %v2684 = vextract.high.u32 %v2682
    %v2685 = vshrl.u32 %v2684, 7
    %v2686 = vmul.u32 %v2685, 136
    %v2687 = vsub.s32 %v2681, %v2686
    %v2688 = vsub.s32 0, %v2687
    %v2689 = vsel %vm2679, %v2688, %v2687
    %vm2690 = vcmp.lt.s32.totalorder %v2446, 0
    %v2691 = vsub.s32 0, %v2446
    %v2692 = vsel %vm2690, %v2691, %v2446
    %v2693 = vmul.u32.u64.compose %v2692, 4042322161
    %v2694 = vextract.low.u32 %v2693
    %v2695 = vextract.high.u32 %v2693
    %v2696 = vshrl.u32 %v2695, 7
    %v2697 = vmul.u32 %v2696, 136
    %v2698 = vsub.s32 %v2692, %v2697
    %v2699 = vsub.s32 0, %v2698
    %v2700 = vsel %vm2690, %v2699, %v2698
    %vm2701 = vcmp.lt.s32.totalorder %v2447, 0
    %v2702 = vsub.s32 0, %v2447
    %v2703 = vsel %vm2701, %v2702, %v2447
    %v2704 = vmul.u32.u64.compose %v2703, 4042322161
    %v2705 = vextract.low.u32 %v2704
    %v2706 = vextract.high.u32 %v2704
    %v2707 = vshrl.u32 %v2706, 7
    %v2708 = vmul.u32 %v2707, 136
    %v2709 = vsub.s32 %v2703, %v2708
    %v2710 = vsub.s32 0, %v2709
    %v2711 = vsel %vm2701, %v2710, %v2709
    %vm2712 = vcmp.lt.s32.totalorder %v2448, 0
    %v2713 = vsub.s32 0, %v2448
    %v2714 = vsel %vm2712, %v2713, %v2448
    %v2715 = vmul.u32.u64.compose %v2714, 4042322161
    %v2716 = vextract.low.u32 %v2715
    %v2717 = vextract.high.u32 %v2715
    %v2718 = vshrl.u32 %v2717, 7
    %v2719 = vmul.u32 %v2718, 136
    %v2720 = vsub.s32 %v2714, %v2719
    %v2721 = vsub.s32 0, %v2720
    %v2722 = vsel %vm2712, %v2721, %v2720
    %vm2723 = vcmp.lt.s32.totalorder %v2449, 0
    %v2724 = vsub.s32 0, %v2449
    %v2725 = vsel %vm2723, %v2724, %v2449
    %v2726 = vmul.u32.u64.compose %v2725, 4042322161
    %v2727 = vextract.low.u32 %v2726
    %v2728 = vextract.high.u32 %v2726
    %v2729 = vshrl.u32 %v2728, 7
    %v2730 = vmul.u32 %v2729, 136
    %v2731 = vsub.s32 %v2725, %v2730
    %v2732 = vsub.s32 0, %v2731
    %v2733 = vsel %vm2723, %v2732, %v2731
    %vm2734 = vcmp.lt.s32.totalorder %v2450, 0
    %v2735 = vsub.s32 0, %v2450
    %v2736 = vsel %vm2734, %v2735, %v2450
    %v2737 = vmul.u32.u64.compose %v2736, 4042322161
    %v2738 = vextract.low.u32 %v2737
    %v2739 = vextract.high.u32 %v2737
    %v2740 = vshrl.u32 %v2739, 7
    %v2741 = vmul.u32 %v2740, 136
    %v2742 = vsub.s32 %v2736, %v2741
    %v2743 = vsub.s32 0, %v2742
    %v2744 = vsel %vm2734, %v2743, %v2742
    %vm2745 = vcmp.lt.s32.totalorder %v2451, 0
    %v2746 = vsub.s32 0, %v2451
    %v2747 = vsel %vm2745, %v2746, %v2451
    %v2748 = vmul.u32.u64.compose %v2747, 4042322161
    %v2749 = vextract.low.u32 %v2748
    %v2750 = vextract.high.u32 %v2748
    %v2751 = vshrl.u32 %v2750, 7
    %v2752 = vmul.u32 %v2751, 136
    %v2753 = vsub.s32 %v2747, %v2752
    %v2754 = vsub.s32 0, %v2753
    %v2755 = vsel %vm2745, %v2754, %v2753
    %vm2756 = vcmp.lt.s32.totalorder %v2452, 0
    %v2757 = vsub.s32 0, %v2452
    %v2758 = vsel %vm2756, %v2757, %v2452
    %v2759 = vmul.u32.u64.compose %v2758, 4042322161
    %v2760 = vextract.low.u32 %v2759
    %v2761 = vextract.high.u32 %v2759
    %v2762 = vshrl.u32 %v2761, 7
    %v2763 = vmul.u32 %v2762, 136
    %v2764 = vsub.s32 %v2758, %v2763
    %v2765 = vsub.s32 0, %v2764
    %v2766 = vsel %vm2756, %v2765, %v2764
    %vm2767 = vcmp.lt.s32.totalorder %v2453, 0
    %v2768 = vsub.s32 0, %v2453
    %v2769 = vsel %vm2767, %v2768, %v2453
    %v2770 = vmul.u32.u64.compose %v2769, 4042322161
    %v2771 = vextract.low.u32 %v2770
    %v2772 = vextract.high.u32 %v2770
    %v2773 = vshrl.u32 %v2772, 7
    %v2774 = vmul.u32 %v2773, 136
    %v2775 = vsub.s32 %v2769, %v2774
    %v2776 = vsub.s32 0, %v2775
    %v2777 = vsel %vm2767, %v2776, %v2775
    %vm2778 = vcmp.lt.s32.totalorder %v2454, 0
    %v2779 = vsub.s32 0, %v2454
    %v2780 = vsel %vm2778, %v2779, %v2454
    %v2781 = vmul.u32.u64.compose %v2780, 4042322161
    %v2782 = vextract.low.u32 %v2781
    %v2783 = vextract.high.u32 %v2781
    %v2784 = vshrl.u32 %v2783, 7
    %v2785 = vmul.u32 %v2784, 136
    %v2786 = vsub.s32 %v2780, %v2785
    %v2787 = vsub.s32 0, %v2786
    %v2788 = vsel %vm2778, %v2787, %v2786
    %vm2789 = vcmp.lt.s32.totalorder %v2455, 0
    %v2790 = vsub.s32 0, %v2455
    %v2791 = vsel %vm2789, %v2790, %v2455
    %v2792 = vmul.u32.u64.compose %v2791, 4042322161
    %v2793 = vextract.low.u32 %v2792
    %v2794 = vextract.high.u32 %v2792
    %v2795 = vshrl.u32 %v2794, 7
    %v2796 = vmul.u32 %v2795, 136
    %v2797 = vsub.s32 %v2791, %v2796
    %v2798 = vsub.s32 0, %v2797
    %v2799 = vsel %vm2789, %v2798, %v2797
    %vm2800 = vcmp.lt.s32.totalorder %v2456, 0
    %v2801 = vsub.s32 0, %v2456
    %v2802 = vsel %vm2800, %v2801, %v2456
    %v2803 = vmul.u32.u64.compose %v2802, 4042322161
    %v2804 = vextract.low.u32 %v2803
    %v2805 = vextract.high.u32 %v2803
    %v2806 = vshrl.u32 %v2805, 7
    %v2807 = vmul.u32 %v2806, 136
    %v2808 = vsub.s32 %v2802, %v2807
    %v2809 = vsub.s32 0, %v2808
    %v2810 = vsel %vm2800, %v2809, %v2808
    %vm2811 = vcmp.lt.s32.totalorder %v2457, 0
    %v2812 = vsub.s32 0, %v2457
    %v2813 = vsel %vm2811, %v2812, %v2457
    %v2814 = vmul.u32.u64.compose %v2813, 4042322161
    %v2815 = vextract.low.u32 %v2814
    %v2816 = vextract.high.u32 %v2814
    %v2817 = vshrl.u32 %v2816, 7
    %v2818 = vmul.u32 %v2817, 136
    %v2819 = vsub.s32 %v2813, %v2818
    %v2820 = vsub.s32 0, %v2819
    %v2821 = vsel %vm2811, %v2820, %v2819
    %vm2822 = vcmp.lt.s32.totalorder %v2458, 0
    %v2823 = vsub.s32 0, %v2458
    %v2824 = vsel %vm2822, %v2823, %v2458
    %v2825 = vmul.u32.u64.compose %v2824, 4042322161
    %v2826 = vextract.low.u32 %v2825
    %v2827 = vextract.high.u32 %v2825
    %v2828 = vshrl.u32 %v2827, 7
    %v2829 = vmul.u32 %v2828, 136
    %v2830 = vsub.s32 %v2824, %v2829
    %v2831 = vsub.s32 0, %v2830
    %v2832 = vsel %vm2822, %v2831, %v2830
    %vm2833 = vcmp.ne.s32.totalorder %v2469, 0
    %vm2834 = vcmp.ne.s32.totalorder %v2480, 0
    %vm2835 = vcmp.ne.s32.totalorder %v2491, 0
    %vm2836 = vcmp.ne.s32.totalorder %v2502, 0
    %vm2837 = vcmp.ne.s32.totalorder %v2513, 0
    %vm2838 = vcmp.ne.s32.totalorder %v2524, 0
    %vm2839 = vcmp.ne.s32.totalorder %v2535, 0
    %vm2840 = vcmp.ne.s32.totalorder %v2546, 0
    %vm2841 = vcmp.ne.s32.totalorder %v2557, 0
    %vm2842 = vcmp.ne.s32.totalorder %v2568, 0
    %vm2843 = vcmp.ne.s32.totalorder %v2579, 0
    %vm2844 = vcmp.ne.s32.totalorder %v2590, 0
    %vm2845 = vcmp.ne.s32.totalorder %v2601, 0
    %vm2846 = vcmp.ne.s32.totalorder %v2612, 0
    %vm2847 = vcmp.ne.s32.totalorder %v2623, 0
    %vm2848 = vcmp.ne.s32.totalorder %v2634, 0
    %vm2849 = vcmp.ne.s32.totalorder %v2645, 0
    %vm2850 = vcmp.ne.s32.totalorder %v2656, 0
    %vm2851 = vcmp.ne.s32.totalorder %v2667, 0
    %vm2852 = vcmp.ne.s32.totalorder %v2678, 0
    %vm2853 = vcmp.ne.s32.totalorder %v2689, 0
    %vm2854 = vcmp.ne.s32.totalorder %v2700, 0
    %vm2855 = vcmp.ne.s32.totalorder %v2711, 0
    %vm2856 = vcmp.ne.s32.totalorder %v2722, 0
    %vm2857 = vcmp.ne.s32.totalorder %v2733, 0
    %vm2858 = vcmp.ne.s32.totalorder %v2744, 0
    %vm2859 = vcmp.ne.s32.totalorder %v2755, 0
    %vm2860 = vcmp.ne.s32.totalorder %v2766, 0
    %vm2861 = vcmp.ne.s32.totalorder %v2777, 0
    %vm2862 = vcmp.ne.s32.totalorder %v2788, 0
    %vm2863 = vcmp.ne.s32.totalorder %v2799, 0
    %vm2864 = vcmp.ne.s32.totalorder %v2810, 0
    %vm2865 = vcmp.ne.s32.totalorder %v2821, 0
    %vm2866 = vcmp.ne.s32.totalorder %v2832, 0
    %vm2867 = vcmp.lt.s32.totalorder %v2469, 0
    %vm2868 = vcmp.lt.s32.totalorder %v2480, 0
    %vm2869 = vcmp.lt.s32.totalorder %v2491, 0
    %vm2870 = vcmp.lt.s32.totalorder %v2502, 0
    %vm2871 = vcmp.lt.s32.totalorder %v2513, 0
    %vm2872 = vcmp.lt.s32.totalorder %v2524, 0
    %vm2873 = vcmp.lt.s32.totalorder %v2535, 0
    %vm2874 = vcmp.lt.s32.totalorder %v2546, 0
    %vm2875 = vcmp.lt.s32.totalorder %v2557, 0
    %vm2876 = vcmp.lt.s32.totalorder %v2568, 0
    %vm2877 = vcmp.lt.s32.totalorder %v2579, 0
    %vm2878 = vcmp.lt.s32.totalorder %v2590, 0
    %vm2879 = vcmp.lt.s32.totalorder %v2601, 0
    %vm2880 = vcmp.lt.s32.totalorder %v2612, 0
    %vm2881 = vcmp.lt.s32.totalorder %v2623, 0
    %vm2882 = vcmp.lt.s32.totalorder %v2634, 0
    %vm2883 = vcmp.lt.s32.totalorder %v2645, 0
    %vm2884 = vcmp.lt.s32.totalorder %v2656, 0
    %vm2885 = vcmp.lt.s32.totalorder %v2667, 0
    %vm2886 = vcmp.lt.s32.totalorder %v2678, 0
    %vm2887 = vcmp.lt.s32.totalorder %v2689, 0
    %vm2888 = vcmp.lt.s32.totalorder %v2700, 0
    %vm2889 = vcmp.lt.s32.totalorder %v2711, 0
    %vm2890 = vcmp.lt.s32.totalorder %v2722, 0
    %vm2891 = vcmp.lt.s32.totalorder %v2733, 0
    %vm2892 = vcmp.lt.s32.totalorder %v2744, 0
    %vm2893 = vcmp.lt.s32.totalorder %v2755, 0
    %vm2894 = vcmp.lt.s32.totalorder %v2766, 0
    %vm2895 = vcmp.lt.s32.totalorder %v2777, 0
    %vm2896 = vcmp.lt.s32.totalorder %v2788, 0
    %vm2897 = vcmp.lt.s32.totalorder %v2799, 0
    %vm2898 = vcmp.lt.s32.totalorder %v2810, 0
    %vm2899 = vcmp.lt.s32.totalorder %v2821, 0
    %vm2900 = vcmp.lt.s32.totalorder %v2832, 0
    %vm2901 = vmand %vm2867, %vm2833
    %vm2902 = vmand %vm2868, %vm2834
    %vm2903 = vmand %vm2869, %vm2835
    %vm2904 = vmand %vm2870, %vm2836
    %vm2905 = vmand %vm2871, %vm2837
    %vm2906 = vmand %vm2872, %vm2838
    %vm2907 = vmand %vm2873, %vm2839
    %vm2908 = vmand %vm2874, %vm2840
    %vm2909 = vmand %vm2875, %vm2841
    %vm2910 = vmand %vm2876, %vm2842
    %vm2911 = vmand %vm2877, %vm2843
    %vm2912 = vmand %vm2878, %vm2844
    %vm2913 = vmand %vm2879, %vm2845
    %vm2914 = vmand %vm2880, %vm2846
    %vm2915 = vmand %vm2881, %vm2847
    %vm2916 = vmand %vm2882, %vm2848
    %vm2917 = vmand %vm2883, %vm2849
    %vm2918 = vmand %vm2884, %vm2850
    %vm2919 = vmand %vm2885, %vm2851
    %vm2920 = vmand %vm2886, %vm2852
    %vm2921 = vmand %vm2887, %vm2853
    %vm2922 = vmand %vm2888, %vm2854
    %vm2923 = vmand %vm2889, %vm2855
    %vm2924 = vmand %vm2890, %vm2856
    %vm2925 = vmand %vm2891, %vm2857
    %vm2926 = vmand %vm2892, %vm2858
    %vm2927 = vmand %vm2893, %vm2859
    %vm2928 = vmand %vm2894, %vm2860
    %vm2929 = vmand %vm2895, %vm2861
    %vm2930 = vmand %vm2896, %vm2862
    %vm2931 = vmand %vm2897, %vm2863
    %vm2932 = vmand %vm2898, %vm2864
    %vm2933 = vmand %vm2899, %vm2865
    %vm2934 = vmand %vm2900, %vm2866
    %v2935 = vadd.s32 %v2469, 136
    %v2936 = vadd.s32 %v2480, 136
    %v2937 = vadd.s32 %v2491, 136
    %v2938 = vadd.s32 %v2502, 136
    %v2939 = vadd.s32 %v2513, 136
    %v2940 = vadd.s32 %v2524, 136
    %v2941 = vadd.s32 %v2535, 136
    %v2942 = vadd.s32 %v2546, 136
    %v2943 = vadd.s32 %v2557, 136
    %v2944 = vadd.s32 %v2568, 136
    %v2945 = vadd.s32 %v2579, 136
    %v2946 = vadd.s32 %v2590, 136
    %v2947 = vadd.s32 %v2601, 136
    %v2948 = vadd.s32 %v2612, 136
    %v2949 = vadd.s32 %v2623, 136
    %v2950 = vadd.s32 %v2634, 136
    %v2951 = vadd.s32 %v2645, 136
    %v2952 = vadd.s32 %v2656, 136
    %v2953 = vadd.s32 %v2667, 136
    %v2954 = vadd.s32 %v2678, 136
    %v2955 = vadd.s32 %v2689, 136
    %v2956 = vadd.s32 %v2700, 136
    %v2957 = vadd.s32 %v2711, 136
    %v2958 = vadd.s32 %v2722, 136
    %v2959 = vadd.s32 %v2733, 136
    %v2960 = vadd.s32 %v2744, 136
    %v2961 = vadd.s32 %v2755, 136
    %v2962 = vadd.s32 %v2766, 136
    %v2963 = vadd.s32 %v2777, 136
    %v2964 = vadd.s32 %v2788, 136
    %v2965 = vadd.s32 %v2799, 136
    %v2966 = vadd.s32 %v2810, 136
    %v2967 = vadd.s32 %v2821, 136
    %v2968 = vadd.s32 %v2832, 136
    %v2969 = vsel %vm2901, %v2935, %v2469
    %v2970 = vsel %vm2902, %v2936, %v2480
    %v2971 = vsel %vm2903, %v2937, %v2491
    %v2972 = vsel %vm2904, %v2938, %v2502
    %v2973 = vsel %vm2905, %v2939, %v2513
    %v2974 = vsel %vm2906, %v2940, %v2524
    %v2975 = vsel %vm2907, %v2941, %v2535
    %v2976 = vsel %vm2908, %v2942, %v2546
    %v2977 = vsel %vm2909, %v2943, %v2557
    %v2978 = vsel %vm2910, %v2944, %v2568
    %v2979 = vsel %vm2911, %v2945, %v2579
    %v2980 = vsel %vm2912, %v2946, %v2590
    %v2981 = vsel %vm2913, %v2947, %v2601
    %v2982 = vsel %vm2914, %v2948, %v2612
    %v2983 = vsel %vm2915, %v2949, %v2623
    %v2984 = vsel %vm2916, %v2950, %v2634
    %v2985 = vsel %vm2917, %v2951, %v2645
    %v2986 = vsel %vm2918, %v2952, %v2656
    %v2987 = vsel %vm2919, %v2953, %v2667
    %v2988 = vsel %vm2920, %v2954, %v2678
    %v2989 = vsel %vm2921, %v2955, %v2689
    %v2990 = vsel %vm2922, %v2956, %v2700
    %v2991 = vsel %vm2923, %v2957, %v2711
    %v2992 = vsel %vm2924, %v2958, %v2722
    %v2993 = vsel %vm2925, %v2959, %v2733
    %v2994 = vsel %vm2926, %v2960, %v2744
    %v2995 = vsel %vm2927, %v2961, %v2755
    %v2996 = vsel %vm2928, %v2962, %v2766
    %v2997 = vsel %vm2929, %v2963, %v2777
    %v2998 = vsel %vm2930, %v2964, %v2788
    %v2999 = vsel %vm2931, %v2965, %v2799
    %v3000 = vsel %vm2932, %v2966, %v2810
    %v3001 = vsel %vm2933, %v2967, %v2821
    %v3002 = vsel %vm2934, %v2968, %v2832
    %s3003 = ssub.s32 %s41, 1
    %v3004 = vstv %s3003
    %v3005 = vadd.s32 %v2969, %v3004
    %v3006 = vadd.s32 %v2970, %v3004
    %v3007 = vadd.s32 %v2971, %v3004
    %v3008 = vadd.s32 %v2972, %v3004
    %v3009 = vadd.s32 %v2973, %v3004
    %v3010 = vadd.s32 %v2974, %v3004
    %v3011 = vadd.s32 %v2975, %v3004
    %v3012 = vadd.s32 %v2976, %v3004
    %v3013 = vadd.s32 %v2977, %v3004
    %v3014 = vadd.s32 %v2978, %v3004
    %v3015 = vadd.s32 %v2979, %v3004
    %v3016 = vadd.s32 %v2980, %v3004
    %v3017 = vadd.s32 %v2981, %v3004
    %v3018 = vadd.s32 %v2982, %v3004
    %v3019 = vadd.s32 %v2983, %v3004
    %v3020 = vadd.s32 %v2984, %v3004
    %v3021 = vadd.s32 %v2985, %v3004
    %v3022 = vadd.s32 %v2986, %v3004
    %v3023 = vadd.s32 %v2987, %v3004
    %v3024 = vadd.s32 %v2988, %v3004
    %v3025 = vadd.s32 %v2989, %v3004
    %v3026 = vadd.s32 %v2990, %v3004
    %v3027 = vadd.s32 %v2991, %v3004
    %v3028 = vadd.s32 %v2992, %v3004
    %v3029 = vadd.s32 %v2993, %v3004
    %v3030 = vadd.s32 %v2994, %v3004
    %v3031 = vadd.s32 %v2995, %v3004
    %v3032 = vadd.s32 %v2996, %v3004
    %v3033 = vadd.s32 %v2997, %v3004
    %v3034 = vadd.s32 %v2998, %v3004
    %v3035 = vadd.s32 %v2999, %v3004
    %v3036 = vadd.s32 %v3000, %v3004
    %v3037 = vadd.s32 %v3001, %v3004
    %v3038 = vadd.s32 %v3002, %v3004
    %vm3039 = vcmp.ge.s32.totalorder %v3005, 0
    %vm3040 = vcmp.ge.s32.totalorder %v3006, 0
    %vm3041 = vcmp.ge.s32.totalorder %v3007, 0
    %vm3042 = vcmp.ge.s32.totalorder %v3008, 0
    %vm3043 = vcmp.ge.s32.totalorder %v3009, 0
    %vm3044 = vcmp.ge.s32.totalorder %v3010, 0
    %vm3045 = vcmp.ge.s32.totalorder %v3011, 0
    %vm3046 = vcmp.ge.s32.totalorder %v3012, 0
    %vm3047 = vcmp.ge.s32.totalorder %v3013, 0
    %vm3048 = vcmp.ge.s32.totalorder %v3014, 0
    %vm3049 = vcmp.ge.s32.totalorder %v3015, 0
    %vm3050 = vcmp.ge.s32.totalorder %v3016, 0
    %vm3051 = vcmp.ge.s32.totalorder %v3017, 0
    %vm3052 = vcmp.ge.s32.totalorder %v3018, 0
    %vm3053 = vcmp.ge.s32.totalorder %v3019, 0
    %vm3054 = vcmp.ge.s32.totalorder %v3020, 0
    %vm3055 = vcmp.ge.s32.totalorder %v3021, 0
    %vm3056 = vcmp.ge.s32.totalorder %v3022, 0
    %vm3057 = vcmp.ge.s32.totalorder %v3023, 0
    %vm3058 = vcmp.ge.s32.totalorder %v3024, 0
    %vm3059 = vcmp.ge.s32.totalorder %v3025, 0
    %vm3060 = vcmp.ge.s32.totalorder %v3026, 0
    %vm3061 = vcmp.ge.s32.totalorder %v3027, 0
    %vm3062 = vcmp.ge.s32.totalorder %v3028, 0
    %vm3063 = vcmp.ge.s32.totalorder %v3029, 0
    %vm3064 = vcmp.ge.s32.totalorder %v3030, 0
    %vm3065 = vcmp.ge.s32.totalorder %v3031, 0
    %vm3066 = vcmp.ge.s32.totalorder %v3032, 0
    %vm3067 = vcmp.ge.s32.totalorder %v3033, 0
    %vm3068 = vcmp.ge.s32.totalorder %v3034, 0
    %vm3069 = vcmp.ge.s32.totalorder %v3035, 0
    %vm3070 = vcmp.ge.s32.totalorder %v3036, 0
    %vm3071 = vcmp.ge.s32.totalorder %v3037, 0
    %vm3072 = vcmp.ge.s32.totalorder %v3038, 0
    %vm3073 = vcmp.lt.s32.totalorder %v3005, 8
    %vm3074 = vcmp.lt.s32.totalorder %v3006, 8
    %vm3075 = vcmp.lt.s32.totalorder %v3007, 8
    %vm3076 = vcmp.lt.s32.totalorder %v3008, 8
    %vm3077 = vcmp.lt.s32.totalorder %v3009, 8
    %vm3078 = vcmp.lt.s32.totalorder %v3010, 8
    %vm3079 = vcmp.lt.s32.totalorder %v3011, 8
    %vm3080 = vcmp.lt.s32.totalorder %v3012, 8
    %vm3081 = vcmp.lt.s32.totalorder %v3013, 8
    %vm3082 = vcmp.lt.s32.totalorder %v3014, 8
    %vm3083 = vcmp.lt.s32.totalorder %v3015, 8
    %vm3084 = vcmp.lt.s32.totalorder %v3016, 8
    %vm3085 = vcmp.lt.s32.totalorder %v3017, 8
    %vm3086 = vcmp.lt.s32.totalorder %v3018, 8
    %vm3087 = vcmp.lt.s32.totalorder %v3019, 8
    %vm3088 = vcmp.lt.s32.totalorder %v3020, 8
    %vm3089 = vcmp.lt.s32.totalorder %v3021, 8
    %vm3090 = vcmp.lt.s32.totalorder %v3022, 8
    %vm3091 = vcmp.lt.s32.totalorder %v3023, 8
    %vm3092 = vcmp.lt.s32.totalorder %v3024, 8
    %vm3093 = vcmp.lt.s32.totalorder %v3025, 8
    %vm3094 = vcmp.lt.s32.totalorder %v3026, 8
    %vm3095 = vcmp.lt.s32.totalorder %v3027, 8
    %vm3096 = vcmp.lt.s32.totalorder %v3028, 8
    %vm3097 = vcmp.lt.s32.totalorder %v3029, 8
    %vm3098 = vcmp.lt.s32.totalorder %v3030, 8
    %vm3099 = vcmp.lt.s32.totalorder %v3031, 8
    %vm3100 = vcmp.lt.s32.totalorder %v3032, 8
    %vm3101 = vcmp.lt.s32.totalorder %v3033, 8
    %vm3102 = vcmp.lt.s32.totalorder %v3034, 8
    %vm3103 = vcmp.lt.s32.totalorder %v3035, 8
    %vm3104 = vcmp.lt.s32.totalorder %v3036, 8
    %vm3105 = vcmp.lt.s32.totalorder %v3037, 8
    %vm3106 = vcmp.lt.s32.totalorder %v3038, 8
    %vm3107 = vmand %vm3039, %vm3073
    %vm3108 = vmand %vm3040, %vm3074
    %vm3109 = vmand %vm3041, %vm3075
    %vm3110 = vmand %vm3042, %vm3076
    %vm3111 = vmand %vm3043, %vm3077
    %vm3112 = vmand %vm3044, %vm3078
    %vm3113 = vmand %vm3045, %vm3079
    %vm3114 = vmand %vm3046, %vm3080
    %vm3115 = vmand %vm3047, %vm3081
    %vm3116 = vmand %vm3048, %vm3082
    %vm3117 = vmand %vm3049, %vm3083
    %vm3118 = vmand %vm3050, %vm3084
    %vm3119 = vmand %vm3051, %vm3085
    %vm3120 = vmand %vm3052, %vm3086
    %vm3121 = vmand %vm3053, %vm3087
    %vm3122 = vmand %vm3054, %vm3088
    %vm3123 = vmand %vm3055, %vm3089
    %vm3124 = vmand %vm3056, %vm3090
    %vm3125 = vmand %vm3057, %vm3091
    %vm3126 = vmand %vm3058, %vm3092
    %vm3127 = vmand %vm3059, %vm3093
    %vm3128 = vmand %vm3060, %vm3094
    %vm3129 = vmand %vm3061, %vm3095
    %vm3130 = vmand %vm3062, %vm3096
    %vm3131 = vmand %vm3063, %vm3097
    %vm3132 = vmand %vm3064, %vm3098
    %vm3133 = vmand %vm3065, %vm3099
    %vm3134 = vmand %vm3066, %vm3100
    %vm3135 = vmand %vm3067, %vm3101
    %vm3136 = vmand %vm3068, %vm3102
    %vm3137 = vmand %vm3069, %vm3103
    %vm3138 = vmand %vm3070, %vm3104
    %vm3139 = vmand %vm3071, %vm3105
    %vm3140 = vmand %vm3072, %vm3106
    %v3141 = vsel %vm3107, 1, 0
    %v3142 = vsel %vm3108, 1, 0
    %v3143 = vsel %vm3109, 1, 0
    %v3144 = vsel %vm3110, 1, 0
    %v3145 = vsel %vm3111, 1, 0
    %v3146 = vsel %vm3112, 1, 0
    %v3147 = vsel %vm3113, 1, 0
    %v3148 = vsel %vm3114, 1, 0
    %v3149 = vsel %vm3115, 1, 0
    %v3150 = vsel %vm3116, 1, 0
    %v3151 = vsel %vm3117, 1, 0
    %v3152 = vsel %vm3118, 1, 0
    %v3153 = vsel %vm3119, 1, 0
    %v3154 = vsel %vm3120, 1, 0
    %v3155 = vsel %vm3121, 1, 0
    %v3156 = vsel %vm3122, 1, 0
    %v3157 = vsel %vm3123, 1, 0
    %v3158 = vsel %vm3124, 1, 0
    %v3159 = vsel %vm3125, 1, 0
    %v3160 = vsel %vm3126, 1, 0
    %v3161 = vsel %vm3127, 1, 0
    %v3162 = vsel %vm3128, 1, 0
    %v3163 = vsel %vm3129, 1, 0
    %v3164 = vsel %vm3130, 1, 0
    %v3165 = vsel %vm3131, 1, 0
    %v3166 = vsel %vm3132, 1, 0
    %v3167 = vsel %vm3133, 1, 0
    %v3168 = vsel %vm3134, 1, 0
    %v3169 = vsel %vm3135, 1, 0
    %v3170 = vsel %vm3136, 1, 0
    %v3171 = vsel %vm3137, 1, 0
    %v3172 = vsel %vm3138, 1, 0
    %v3173 = vsel %vm3139, 1, 0
    %v3174 = vsel %vm3140, 1, 0
    %vm3175 = vcmp.eq.s32.totalorder %v3141, 1
    %vm3176 = vcmp.eq.s32.totalorder %v3142, 1
    %vm3177 = vcmp.eq.s32.totalorder %v3143, 1
    %vm3178 = vcmp.eq.s32.totalorder %v3144, 1
    %vm3179 = vcmp.eq.s32.totalorder %v3145, 1
    %vm3180 = vcmp.eq.s32.totalorder %v3146, 1
    %vm3181 = vcmp.eq.s32.totalorder %v3147, 1
    %vm3182 = vcmp.eq.s32.totalorder %v3148, 1
    %vm3183 = vcmp.eq.s32.totalorder %v3149, 1
    %vm3184 = vcmp.eq.s32.totalorder %v3150, 1
    %vm3185 = vcmp.eq.s32.totalorder %v3151, 1
    %vm3186 = vcmp.eq.s32.totalorder %v3152, 1
    %vm3187 = vcmp.eq.s32.totalorder %v3153, 1
    %vm3188 = vcmp.eq.s32.totalorder %v3154, 1
    %vm3189 = vcmp.eq.s32.totalorder %v3155, 1
    %vm3190 = vcmp.eq.s32.totalorder %v3156, 1
    %vm3191 = vcmp.eq.s32.totalorder %v3157, 1
    %vm3192 = vcmp.eq.s32.totalorder %v3158, 1
    %vm3193 = vcmp.eq.s32.totalorder %v3159, 1
    %vm3194 = vcmp.eq.s32.totalorder %v3160, 1
    %vm3195 = vcmp.eq.s32.totalorder %v3161, 1
    %vm3196 = vcmp.eq.s32.totalorder %v3162, 1
    %vm3197 = vcmp.eq.s32.totalorder %v3163, 1
    %vm3198 = vcmp.eq.s32.totalorder %v3164, 1
    %vm3199 = vcmp.eq.s32.totalorder %v3165, 1
    %vm3200 = vcmp.eq.s32.totalorder %v3166, 1
    %vm3201 = vcmp.eq.s32.totalorder %v3167, 1
    %vm3202 = vcmp.eq.s32.totalorder %v3168, 1
    %vm3203 = vcmp.eq.s32.totalorder %v3169, 1
    %vm3204 = vcmp.eq.s32.totalorder %v3170, 1
    %vm3205 = vcmp.eq.s32.totalorder %v3171, 1
    %vm3206 = vcmp.eq.s32.totalorder %v3172, 1
    %vm3207 = vcmp.eq.s32.totalorder %v3173, 1
    %vm3208 = vcmp.eq.s32.totalorder %v3174, 1
    %v3209 = vsel %vm3175, %v2390, 0.0
    %v3210 = vsel %vm3176, %v2391, 0.0
    %v3211 = vsel %vm3177, %v2392, 0.0
    %v3212 = vsel %vm3178, %v2393, 0.0
    %v3213 = vsel %vm3179, %v2394, 0.0
    %v3214 = vsel %vm3180, %v2395, 0.0
    %v3215 = vsel %vm3181, %v2396, 0.0
    %v3216 = vsel %vm3182, %v2397, 0.0
    %v3217 = vsel %vm3183, %v2398, 0.0
    %v3218 = vsel %vm3184, %v2399, 0.0
    %v3219 = vsel %vm3185, %v2400, 0.0
    %v3220 = vsel %vm3186, %v2401, 0.0
    %v3221 = vsel %vm3187, %v2402, 0.0
    %v3222 = vsel %vm3188, %v2403, 0.0
    %v3223 = vsel %vm3189, %v2404, 0.0
    %v3224 = vsel %vm3190, %v2405, 0.0
    %v3225 = vsel %vm3191, %v2406, 0.0
    %v3226 = vsel %vm3192, %v2407, 0.0
    %v3227 = vsel %vm3193, %v2408, 0.0
    %v3228 = vsel %vm3194, %v2409, 0.0
    %v3229 = vsel %vm3195, %v2410, 0.0
    %v3230 = vsel %vm3196, %v2411, 0.0
    %v3231 = vsel %vm3197, %v2412, 0.0
    %v3232 = vsel %vm3198, %v2413, 0.0
    %v3233 = vsel %vm3199, %v2414, 0.0
    %v3234 = vsel %vm3200, %v2415, 0.0
    %v3235 = vsel %vm3201, %v2416, 0.0
    %v3236 = vsel %vm3202, %v2417, 0.0
    %v3237 = vsel %vm3203, %v2418, 0.0
    %v3238 = vsel %vm3204, %v2419, 0.0
    %v3239 = vsel %vm3205, %v2420, 0.0
    %v3240 = vsel %vm3206, %v2421, 0.0
    %v3241 = vsel %vm3207, %v2422, 0.0
    %v3242 = vsel %vm3208, %v2423, 0.0
    %v3243 = vpack.c.bf16 %v3210, %v3209
    %v3244 = vpack.c.bf16 %v3212, %v3211
    %v3245 = vpack.c.bf16 %v3214, %v3213
    %v3246 = vpack.c.bf16 %v3216, %v3215
    %v3247 = vpack.c.bf16 %v3218, %v3217
    %v3248 = vpack.c.bf16 %v3220, %v3219
    %v3249 = vpack.c.bf16 %v3222, %v3221
    %v3250 = vpack.c.bf16 %v3224, %v3223
    %v3251 = vpack.c.bf16 %v3226, %v3225
    %v3252 = vpack.c.bf16 %v3228, %v3227
    %v3253 = vpack.c.bf16 %v3230, %v3229
    %v3254 = vpack.c.bf16 %v3232, %v3231
    %v3255 = vpack.c.bf16 %v3234, %v3233
    %v3256 = vpack.c.bf16 %v3236, %v3235
    %v3257 = vpack.c.bf16 %v3238, %v3237
    %v3258 = vpack.c.bf16 %v3240, %v3239
    %v3259 = vpack.c.bf16 %v3242, %v3241
    %v3277 = vunpack.c.l.b16 %v3243
    %v3278 = vunpack.c.h.b16 %v3243
    %v3279 = vunpack.c.l.b16 %v3244
    %v3280 = vunpack.c.h.b16 %v3244
    %v3281 = vunpack.c.l.b16 %v3245
    %v3282 = vunpack.c.h.b16 %v3245
    %v3283 = vunpack.c.l.b16 %v3246
    %v3284 = vunpack.c.h.b16 %v3246
    %v3285 = vunpack.c.l.b16 %v3247
    %v3286 = vunpack.c.h.b16 %v3247
    %v3287 = vunpack.c.l.b16 %v3248
    %v3288 = vunpack.c.h.b16 %v3248
    %v3289 = vunpack.c.l.b16 %v3249
    %v3290 = vunpack.c.h.b16 %v3249
    %v3291 = vunpack.c.l.b16 %v3250
    %v3292 = vunpack.c.h.b16 %v3250
    %v3293 = vunpack.c.l.b16 %v3251
    %v3294 = vunpack.c.h.b16 %v3251
    %v3295 = vunpack.c.l.b16 %v3252
    %v3296 = vunpack.c.h.b16 %v3252
    %v3297 = vunpack.c.l.b16 %v3253
    %v3298 = vunpack.c.h.b16 %v3253
    %v3299 = vunpack.c.l.b16 %v3254
    %v3300 = vunpack.c.h.b16 %v3254
    %v3301 = vunpack.c.l.b16 %v3255
    %v3302 = vunpack.c.h.b16 %v3255
    %v3303 = vunpack.c.l.b16 %v3256
    %v3304 = vunpack.c.h.b16 %v3256
    %v3305 = vunpack.c.l.b16 %v3257
    %v3306 = vunpack.c.h.b16 %v3257
    %v3307 = vunpack.c.l.b16 %v3258
    %v3308 = vunpack.c.h.b16 %v3258
    %v3309 = vunpack.c.l.b16 %v3259
    %v3310 = vunpack.c.h.b16 %v3259
    %v3311 = vpack.c.b16 %v3278, %v3277
    %v3312 = vpack.c.b16 %v3280, %v3279
    %v3313 = vpack.c.b16 %v3282, %v3281
    %v3314 = vpack.c.b16 %v3284, %v3283
    %v3315 = vpack.c.b16 %v3286, %v3285
    %v3316 = vpack.c.b16 %v3288, %v3287
    %v3317 = vpack.c.b16 %v3290, %v3289
    %v3318 = vpack.c.b16 %v3292, %v3291
    %v3319 = vpack.c.b16 %v3295, %v3294
    %v3320 = vpack.c.b16 %v3297, %v3296
    %v3321 = vpack.c.b16 %v3299, %v3298
    %v3322 = vpack.c.b16 %v3301, %v3300
    %v3323 = vpack.c.b16 %v3303, %v3302
    %v3324 = vpack.c.b16 %v3305, %v3304
    %v3325 = vpack.c.b16 %v3307, %v3306
    %v3326 = vpack.c.b16 %v3309, %v3308
    %v3343 = vpack.c.b16 %v3293, %v3293
    %v3344 = vpack.c.b16 %v3310, %v3310
    %vm3345 = vsmask.f32 7424
    %v3347 = vshrl.u32 %v3311, 16
    %v3349 = vshll.u32 %v3311, 16
    %v3351 = vrot.slane %v3349, 1
    %v3352 = vor.u32 %v3347, %v3351
    %v3354 = vshll.u32 %v3312, 16
    %v3356 = vrot.slane %v3354, 1
    %v3357 = vsel %vm3345, %v3352, %v3356
    %v3358 = vshrl.u32 %v3312, 16
    %v3360 = vor.u32 %v3358, %v3356
    %v3362 = vshll.u32 %v3313, 16
    %v3364 = vrot.slane %v3362, 1
    %v3365 = vsel %vm3345, %v3360, %v3364
    %v3366 = vshrl.u32 %v3313, 16
    %v3368 = vor.u32 %v3366, %v3364
    %v3370 = vshll.u32 %v3314, 16
    %v3372 = vrot.slane %v3370, 1
    %v3373 = vsel %vm3345, %v3368, %v3372
    %v3374 = vshrl.u32 %v3314, 16
    %v3376 = vor.u32 %v3374, %v3372
    %v3378 = vshll.u32 %v3315, 16
    %v3380 = vrot.slane %v3378, 1
    %v3381 = vsel %vm3345, %v3376, %v3380
    %v3382 = vshrl.u32 %v3315, 16
    %v3384 = vor.u32 %v3382, %v3380
    %v3386 = vshll.u32 %v3316, 16
    %v3388 = vrot.slane %v3386, 1
    %v3389 = vsel %vm3345, %v3384, %v3388
    %v3390 = vshrl.u32 %v3316, 16
    %v3392 = vor.u32 %v3390, %v3388
    %v3394 = vshll.u32 %v3317, 16
    %v3396 = vrot.slane %v3394, 1
    %v3397 = vsel %vm3345, %v3392, %v3396
    %v3398 = vshrl.u32 %v3317, 16
    %v3400 = vor.u32 %v3398, %v3396
    %v3402 = vshll.u32 %v3318, 16
    %v3404 = vrot.slane %v3402, 1
    %v3405 = vsel %vm3345, %v3400, %v3404
    %v3406 = vshrl.u32 %v3318, 16
    %v3408 = vor.u32 %v3406, %v3404
    %v3410 = vshll.u32 %v3343, 16
    %v3412 = vrot.slane %v3410, 1
    %v3413 = vsel %vm3345, %v3408, %v3412
    %v3415 = vshrl.u32 %v3319, 16
    %v3417 = vshll.u32 %v3319, 16
    %v3419 = vrot.slane %v3417, 1
    %v3420 = vor.u32 %v3415, %v3419
    %v3422 = vshll.u32 %v3320, 16
    %v3424 = vrot.slane %v3422, 1
    %v3425 = vsel %vm3345, %v3420, %v3424
    %v3426 = vshrl.u32 %v3320, 16
    %v3428 = vor.u32 %v3426, %v3424
    %v3430 = vshll.u32 %v3321, 16
    %v3432 = vrot.slane %v3430, 1
    %v3433 = vsel %vm3345, %v3428, %v3432
    %v3434 = vshrl.u32 %v3321, 16
    %v3436 = vor.u32 %v3434, %v3432
    %v3438 = vshll.u32 %v3322, 16
    %v3440 = vrot.slane %v3438, 1
    %v3441 = vsel %vm3345, %v3436, %v3440
    %v3442 = vshrl.u32 %v3322, 16
    %v3444 = vor.u32 %v3442, %v3440
    %v3446 = vshll.u32 %v3323, 16
    %v3448 = vrot.slane %v3446, 1
    %v3449 = vsel %vm3345, %v3444, %v3448
    %v3450 = vshrl.u32 %v3323, 16
    %v3452 = vor.u32 %v3450, %v3448
    %v3454 = vshll.u32 %v3324, 16
    %v3456 = vrot.slane %v3454, 1
    %v3457 = vsel %vm3345, %v3452, %v3456
    %v3458 = vshrl.u32 %v3324, 16
    %v3460 = vor.u32 %v3458, %v3456
    %v3462 = vshll.u32 %v3325, 16
    %v3464 = vrot.slane %v3462, 1
    %v3465 = vsel %vm3345, %v3460, %v3464
    %v3466 = vshrl.u32 %v3325, 16
    %v3468 = vor.u32 %v3466, %v3464
    %v3470 = vshll.u32 %v3326, 16
    %v3472 = vrot.slane %v3470, 1
    %v3473 = vsel %vm3345, %v3468, %v3472
    %v3474 = vshrl.u32 %v3326, 16
    %v3476 = vor.u32 %v3474, %v3472
    %v3478 = vshll.u32 %v3344, 16
    %v3480 = vrot.slane %v3478, 1
    %v3481 = vsel %vm3345, %v3476, %v3480
    %vm3498 = vcmask 1046528
    %v3499 = vrot.slane %v3311, 1
    %v3500 = vrot.slane %v3312, 1
    %v3501 = vsel %vm3498, %v3499, %v3500
    %v3502 = vrot.slane %v3313, 1
    %v3503 = vsel %vm3498, %v3500, %v3502
    %v3504 = vrot.slane %v3314, 1
    %v3505 = vsel %vm3498, %v3502, %v3504
    %v3506 = vrot.slane %v3315, 1
    %v3507 = vsel %vm3498, %v3504, %v3506
    %v3508 = vrot.slane %v3316, 1
    %v3509 = vsel %vm3498, %v3506, %v3508
    %v3510 = vrot.slane %v3317, 1
    %v3511 = vsel %vm3498, %v3508, %v3510
    %v3512 = vrot.slane %v3318, 1
    %v3513 = vsel %vm3498, %v3510, %v3512
    %v3514 = vrot.slane %v3343, 1
    %v3515 = vsel %vm3498, %v3512, %v3514
    %v3516 = vrot.slane %v3319, 1
    %v3517 = vrot.slane %v3320, 1
    %v3518 = vsel %vm3498, %v3516, %v3517
    %v3519 = vrot.slane %v3321, 1
    %v3520 = vsel %vm3498, %v3517, %v3519
    %v3521 = vrot.slane %v3322, 1
    %v3522 = vsel %vm3498, %v3519, %v3521
    %v3523 = vrot.slane %v3323, 1
    %v3524 = vsel %vm3498, %v3521, %v3523
    %v3525 = vrot.slane %v3324, 1
    %v3526 = vsel %vm3498, %v3523, %v3525
    %v3527 = vrot.slane %v3325, 1
    %v3528 = vsel %vm3498, %v3525, %v3527
    %v3529 = vrot.slane %v3326, 1
    %v3530 = vsel %vm3498, %v3527, %v3529
    %v3531 = vrot.slane %v3344, 1
    %v3532 = vsel %vm3498, %v3529, %v3531
    %v3549 = vld [vmem:[%s3] sm:$0xf]
    %v3550 = vld [vmem:[%s3 + $0x4] sm:$0xf]
    %v3551 = vld [vmem:[%s3 + $0x8] sm:$0xf]
    %v3552 = vld [vmem:[%s3 + $0xc] sm:$0xf]
    %v3553 = vld [vmem:[%s3 + $0x10] sm:$0xf]
    %v3554 = vld [vmem:[%s3 + $0x14] sm:$0xf]
    %v3555 = vld [vmem:[%s3 + $0x18] sm:$0xf]
    %v3556 = vld [vmem:[%s3 + $0x1c] sm:$0xf]
    %v3557 = vld [vmem:[%s3 + $0x20] sm:$0xf]
    %v3558 = vld [vmem:[%s3 + $0x24] sm:$0xf]
    %v3559 = vld [vmem:[%s3 + $0x28] sm:$0xf]
    %v3560 = vld [vmem:[%s3 + $0x2c] sm:$0xf]
    %v3561 = vld [vmem:[%s3 + $0x30] sm:$0xf]
    %v3562 = vld [vmem:[%s3 + $0x34] sm:$0xf]
    %v3563 = vld [vmem:[%s3 + $0x38] sm:$0xf]
    %v3564 = vld [vmem:[%s3 + $0x3c] sm:$0xf]
    %v3565 = vld [vmem:[%s3 + $0x40] sm:$0xf]
    %v3566 = vld [vmem:[%s3 + $0x44] sm:$0xf]
    %v3567 = vld [vmem:[%s3 + $0x48] sm:$0xf]
    %v3568 = vld [vmem:[%s3 + $0x4c] sm:$0xf]
    %v3569 = vld [vmem:[%s3 + $0x50] sm:$0xf]
    %v3570 = vld [vmem:[%s3 + $0x54] sm:$0xf]
    %v3571 = vld [vmem:[%s3 + $0x58] sm:$0xf]
    %v3572 = vld [vmem:[%s3 + $0x5c] sm:$0xf]
    %v3573 = vld [vmem:[%s3 + $0x60] sm:$0xf]
    %v3574 = vld [vmem:[%s3 + $0x64] sm:$0xf]
    %v3575 = vld [vmem:[%s3 + $0x68] sm:$0xf]
    %v3576 = vld [vmem:[%s3 + $0x6c] sm:$0xf]
    %v3577 = vld [vmem:[%s3 + $0x70] sm:$0xf]
    %v3578 = vld [vmem:[%s3 + $0x74] sm:$0xf]
    %v3579 = vld [vmem:[%s3 + $0x78] sm:$0xf]
    %v3580 = vld [vmem:[%s3 + $0x7c] sm:$0xf]
    %v3581 = vld [vmem:[%s3 + $0x80] sm:$0xf]
    %v3582 = vld [vmem:[%s3 + $0x84] sm:$0xf]
    %v3583 = vld [vmem:[%s3 + $0x88] sm:$0xf]
    %v3584 = vld [vmem:[%s3 + $0x8c] sm:$0xf]
    %v3585 = vld [vmem:[%s3 + $0x90] sm:$0xf]
    %v3586 = vld [vmem:[%s3 + $0x94] sm:$0xf]
    %v3587 = vld [vmem:[%s3 + $0x98] sm:$0xf]
    %v3588 = vld [vmem:[%s3 + $0x9c] sm:$0xf]
    %v3589 = vld [vmem:[%s3 + $0xa0] sm:$0xf]
    %v3590 = vld [vmem:[%s3 + $0xa4] sm:$0xf]
    %v3591 = vld [vmem:[%s3 + $0xa8] sm:$0xf]
    %v3592 = vld [vmem:[%s3 + $0xac] sm:$0xf]
    %v3593 = vld [vmem:[%s3 + $0xb0] sm:$0xf]
    %v3594 = vld [vmem:[%s3 + $0xb4] sm:$0xf]
    %v3595 = vld [vmem:[%s3 + $0xb8] sm:$0xf]
    %v3596 = vld [vmem:[%s3 + $0xbc] sm:$0xf]
    %v3597 = vld [vmem:[%s4] sm:$0x1]
    %v3599 = vlaneseq
    %v3600 = vshrl.u32 %v3599, 7
    %v3601 = vsub.s32 0, %v3600
    %v3602 = vrot.slane %v3597, %v3601
    %v3652 = vunpack.c.l.b16 %v3549
    %v3653 = vunpack.c.l.b16 %v3550
    %v3654 = vunpack.c.l.b16 %v3551
    %v3655 = vunpack.c.l.b16 %v3552
    %v3656 = vunpack.c.l.b16 %v3553
    %v3657 = vunpack.c.l.b16 %v3554
    %v3658 = vunpack.c.l.b16 %v3555
    %v3659 = vunpack.c.l.b16 %v3556
    %v3660 = vunpack.c.l.b16 %v3557
    %v3661 = vunpack.c.l.b16 %v3558
    %v3662 = vunpack.c.l.b16 %v3559
    %v3663 = vunpack.c.l.b16 %v3560
    %v3664 = vunpack.c.l.b16 %v3561
    %v3665 = vunpack.c.l.b16 %v3562
    %v3666 = vunpack.c.l.b16 %v3563
    %v3667 = vunpack.c.l.b16 %v3564
    %v3668 = vunpack.c.l.b16 %v3565
    %v3669 = vunpack.c.l.b16 %v3566
    %v3670 = vunpack.c.l.b16 %v3567
    %v3671 = vunpack.c.l.b16 %v3568
    %v3672 = vunpack.c.l.b16 %v3569
    %v3673 = vunpack.c.l.b16 %v3570
    %v3674 = vunpack.c.l.b16 %v3571
    %v3675 = vunpack.c.l.b16 %v3572
    %v3676 = vunpack.c.l.b16 %v3573
    %v3677 = vunpack.c.l.b16 %v3574
    %v3678 = vunpack.c.l.b16 %v3575
    %v3679 = vunpack.c.l.b16 %v3576
    %v3680 = vunpack.c.l.b16 %v3577
    %v3681 = vunpack.c.l.b16 %v3578
    %v3682 = vunpack.c.l.b16 %v3579
    %v3683 = vunpack.c.l.b16 %v3580
    %v3684 = vunpack.c.l.b16 %v3581
    %v3685 = vunpack.c.l.b16 %v3582
    %v3686 = vunpack.c.l.b16 %v3583
    %v3687 = vunpack.c.l.b16 %v3584
    %v3688 = vunpack.c.l.b16 %v3585
    %v3689 = vunpack.c.l.b16 %v3586
    %v3690 = vunpack.c.l.b16 %v3587
    %v3691 = vunpack.c.l.b16 %v3588
    %v3692 = vunpack.c.l.b16 %v3589
    %v3693 = vunpack.c.l.b16 %v3590
    %v3694 = vunpack.c.l.b16 %v3591
    %v3695 = vunpack.c.l.b16 %v3592
    %v3696 = vunpack.c.l.b16 %v3593
    %v3697 = vunpack.c.l.b16 %v3594
    %v3698 = vunpack.c.l.b16 %v3595
    %v3699 = vunpack.c.l.b16 %v3596
    %v3700 = vpack.c.b16 %v3653, %v3652
    %v3701 = vpack.c.b16 %v3655, %v3654
    %v3702 = vpack.c.b16 %v3657, %v3656
    %v3703 = vpack.c.b16 %v3659, %v3658
    %v3704 = vpack.c.b16 %v3661, %v3660
    %v3705 = vpack.c.b16 %v3663, %v3662
    %v3706 = vpack.c.b16 %v3665, %v3664
    %v3707 = vpack.c.b16 %v3667, %v3666
    %v3708 = vpack.c.b16 %v3669, %v3668
    %v3709 = vpack.c.b16 %v3671, %v3670
    %v3710 = vpack.c.b16 %v3673, %v3672
    %v3711 = vpack.c.b16 %v3675, %v3674
    %v3712 = vpack.c.b16 %v3677, %v3676
    %v3713 = vpack.c.b16 %v3679, %v3678
    %v3714 = vpack.c.b16 %v3681, %v3680
    %v3715 = vpack.c.b16 %v3683, %v3682
    %v3716 = vpack.c.b16 %v3685, %v3684
    %v3717 = vpack.c.b16 %v3687, %v3686
    %v3718 = vpack.c.b16 %v3689, %v3688
    %v3719 = vpack.c.b16 %v3691, %v3690
    %v3720 = vpack.c.b16 %v3693, %v3692
    %v3721 = vpack.c.b16 %v3695, %v3694
    %v3722 = vpack.c.b16 %v3697, %v3696
    %v3723 = vpack.c.b16 %v3699, %v3698
    %3748 = vmatprep.subr.bf16.mxu0 0
    %3749 = vmatpush1.bf16.msra.mxu0 %v3700
    %3750 = vmatprep.subr.bf16.mxu0 0
    %3751 = vmatpush1.bf16.msra.mxu0 %v3701
    %3752 = vmatprep.subr.bf16.mxu0 0
    %3753 = vmatpush1.bf16.msra.mxu0 %v3702
    %3754 = vmatprep.subr.bf16.mxu0 0
    %3755 = vmatpush1.bf16.msra.mxu0 %v3703
    %3756 = vmatprep.subr.bf16.mxu0 0
    %3757 = vmatpush1.bf16.msra.mxu0 %v3704
    %3758 = vmatprep.subr.bf16.mxu0 0
    %3759 = vmatpush1.bf16.msra.mxu0 %v3705
    %3760 = vmatprep.subr.bf16.mxu0 0
    %3761 = vmatpush1.bf16.msra.mxu0 %v3706
    %3762 = vmatprep.subr.bf16.mxu0 0
    %3763 = vmatpush1.bf16.msra.mxu0 %v3707
    %3764 = vmatprep.subr.bf16.mxu0 0
    %3765 = vmatpush1.bf16.msra.mxu0 %v3708
    %3766 = vmatprep.subr.bf16.mxu0 0
    %3767 = vmatpush1.bf16.msra.mxu0 %v3709
    %3768 = vmatprep.subr.bf16.mxu0 0
    %3769 = vmatpush1.bf16.msra.mxu0 %v3710
    %3770 = vmatprep.subr.bf16.mxu0 0
    %3771 = vmatpush1.bf16.msra.mxu0 %v3711
    %3772 = vmatprep.subr.bf16.mxu0 0
    %3773 = vmatpush1.bf16.msra.mxu0 %v3712
    %3774 = vmatprep.subr.bf16.mxu0 0
    %3775 = vmatpush1.bf16.msra.mxu0 %v3713
    %3776 = vmatprep.subr.bf16.mxu0 0
    %3777 = vmatpush1.bf16.msra.mxu0 %v3714
    %3778 = vmatprep.subr.bf16.mxu0 0
    %3779 = vmatpush1.bf16.msra.mxu0 %v3715
    %3780 = vmatprep.mubr.bf16.mxu0 %v3357
    %3781 = vmatmul.mubr.bf16.gmra.mrb[0].mxu0 %v3311
    %v3782 = vpop.f32.mrb[0].mxu0
    %v3783 = vadd.f32 %v3602, %v3782
    %v3784 = vpop.f32.mrb[0].mxu0
    %v3785 = vpop.f32.mrb[0].mxu0
    %v3786 = vadd.f32 %v3602, %v3785
    %v3787 = vpop.f32.mrb[0].mxu0
    %3788 = vmatprep.mubr.bf16.mxu0 %v3365
    %3789 = vmatmul.mubr.bf16.gmra.mrb[0].mxu0 %v3312
    %v3790 = vpop.f32.mrb[0].mxu0
    %v3791 = vadd.f32 %v3602, %v3790
    %v3792 = vpop.f32.mrb[0].mxu0
    %v3793 = vpop.f32.mrb[0].mxu0
    %v3794 = vadd.f32 %v3602, %v3793
    %v3795 = vpop.f32.mrb[0].mxu0
    %3796 = vmatprep.mubr.bf16.mxu0 %v3373
    %3797 = vmatmul.mubr.bf16.gmra.mrb[0].mxu0 %v3313
    %v3798 = vpop.f32.mrb[0].mxu0
    %v3799 = vadd.f32 %v3602, %v3798
    %v3800 = vpop.f32.mrb[0].mxu0
    %v3801 = vpop.f32.mrb[0].mxu0
    %v3802 = vadd.f32 %v3602, %v3801
    %v3803 = vpop.f32.mrb[0].mxu0
    %3804 = vmatprep.mubr.bf16.mxu0 %v3381
    %3805 = vmatmul.mubr.bf16.gmra.mrb[0].mxu0 %v3314
    %v3806 = vpop.f32.mrb[0].mxu0
    %v3807 = vadd.f32 %v3602, %v3806
    %v3808 = vpop.f32.mrb[0].mxu0
    %v3809 = vpop.f32.mrb[0].mxu0
    %v3810 = vadd.f32 %v3602, %v3809
    %v3811 = vpop.f32.mrb[0].mxu0
    %3812 = vmatprep.mubr.bf16.mxu0 %v3389
    %3813 = vmatmul.mubr.bf16.gmra.mrb[0].mxu0 %v3315
    %v3814 = vpop.f32.mrb[0].mxu0
    %v3815 = vadd.f32 %v3602, %v3814
    %v3816 = vpop.f32.mrb[0].mxu0
    %v3817 = vpop.f32.mrb[0].mxu0
    %v3818 = vadd.f32 %v3602, %v3817
    %v3819 = vpop.f32.mrb[0].mxu0
    %3820 = vmatprep.mubr.bf16.mxu0 %v3397
    %3821 = vmatmul.mubr.bf16.gmra.mrb[0].mxu0 %v3316
    %v3822 = vpop.f32.mrb[0].mxu0
    %v3823 = vadd.f32 %v3602, %v3822
    %v3824 = vpop.f32.mrb[0].mxu0
    %v3825 = vpop.f32.mrb[0].mxu0
    %v3826 = vadd.f32 %v3602, %v3825
    %v3827 = vpop.f32.mrb[0].mxu0
    %3828 = vmatprep.mubr.bf16.mxu0 %v3405
    %3829 = vmatmul.mubr.bf16.gmra.mrb[0].mxu0 %v3317
    %v3830 = vpop.f32.mrb[0].mxu0
    %v3831 = vadd.f32 %v3602, %v3830
    %v3832 = vpop.f32.mrb[0].mxu0
    %v3833 = vpop.f32.mrb[0].mxu0
    %v3834 = vadd.f32 %v3602, %v3833
    %v3835 = vpop.f32.mrb[0].mxu0
    %3836 = vmatprep.mubr.bf16.mxu0 %v3413
    %3837 = vmatmul.mubr.bf16.gmra.mrb[0].mxu0 %v3318
    %v3838 = vpop.f32.mrb[0].mxu0
    %v3839 = vadd.f32 %v3602, %v3838
    %v3840 = vpop.f32.mrb[0].mxu0
    %v3841 = vpop.f32.mrb[0].mxu0
    %v3842 = vadd.f32 %v3602, %v3841
    %v3843 = vpop.f32.mrb[0].mxu0
    %3844 = vmatprep.mubr.bf16.mxu0 %v3425
    %3845 = vmatmul.mubr.bf16.gmra.mrb[0].mxu0 %v3319
    %v3846 = vpop.f32.mrb[0].mxu0
    %v3847 = vadd.f32 %v3602, %v3846
    %v3848 = vpop.f32.mrb[0].mxu0
    %v3849 = vpop.f32.mrb[0].mxu0
    %v3850 = vadd.f32 %v3602, %v3849
    %v3851 = vpop.f32.mrb[0].mxu0
    %3852 = vmatprep.mubr.bf16.mxu0 %v3433
    %3853 = vmatmul.mubr.bf16.gmra.mrb[0].mxu0 %v3320
    %v3854 = vpop.f32.mrb[0].mxu0
    %v3855 = vadd.f32 %v3602, %v3854
    %v3856 = vpop.f32.mrb[0].mxu0
    %v3857 = vpop.f32.mrb[0].mxu0
    %v3858 = vadd.f32 %v3602, %v3857
    %v3859 = vpop.f32.mrb[0].mxu0
    %3860 = vmatprep.mubr.bf16.mxu0 %v3441
    %3861 = vmatmul.mubr.bf16.gmra.mrb[0].mxu0 %v3321
    %v3862 = vpop.f32.mrb[0].mxu0
    %v3863 = vadd.f32 %v3602, %v3862
    %v3864 = vpop.f32.mrb[0].mxu0
    %v3865 = vpop.f32.mrb[0].mxu0
    %v3866 = vadd.f32 %v3602, %v3865
    %v3867 = vpop.f32.mrb[0].mxu0
    %3868 = vmatprep.mubr.bf16.mxu0 %v3449
    %3869 = vmatmul.mubr.bf16.gmra.mrb[0].mxu0 %v3322
    %v3870 = vpop.f32.mrb[0].mxu0
    %v3871 = vadd.f32 %v3602, %v3870
    %v3872 = vpop.f32.mrb[0].mxu0
    %v3873 = vpop.f32.mrb[0].mxu0
    %v3874 = vadd.f32 %v3602, %v3873
    %v3875 = vpop.f32.mrb[0].mxu0
    %3876 = vmatprep.mubr.bf16.mxu0 %v3457
    %3877 = vmatmul.mubr.bf16.gmra.mrb[0].mxu0 %v3323
    %v3878 = vpop.f32.mrb[0].mxu0
    %v3879 = vadd.f32 %v3602, %v3878
    %v3880 = vpop.f32.mrb[0].mxu0
    %v3881 = vpop.f32.mrb[0].mxu0
    %v3882 = vadd.f32 %v3602, %v3881
    %v3883 = vpop.f32.mrb[0].mxu0
    %3884 = vmatprep.mubr.bf16.mxu0 %v3465
    %3885 = vmatmul.mubr.bf16.gmra.mrb[0].mxu0 %v3324
    %v3886 = vpop.f32.mrb[0].mxu0
    %v3887 = vadd.f32 %v3602, %v3886
    %v3888 = vpop.f32.mrb[0].mxu0
    %v3889 = vpop.f32.mrb[0].mxu0
    %v3890 = vadd.f32 %v3602, %v3889
    %v3891 = vpop.f32.mrb[0].mxu0
    %3892 = vmatprep.mubr.bf16.mxu0 %v3473
    %3893 = vmatmul.mubr.bf16.gmra.mrb[0].mxu0 %v3325
    %v3894 = vpop.f32.mrb[0].mxu0
    %v3895 = vadd.f32 %v3602, %v3894
    %v3896 = vpop.f32.mrb[0].mxu0
    %v3897 = vpop.f32.mrb[0].mxu0
    %v3898 = vadd.f32 %v3602, %v3897
    %v3899 = vpop.f32.mrb[0].mxu0
    %3900 = vmatprep.mubr.bf16.mxu0 %v3481
    %3901 = vmatmul.mubr.bf16.gmra.mrb[0].mxu0 %v3326
    %v3902 = vpop.f32.mrb[0].mxu0
    %v3903 = vadd.f32 %v3602, %v3902
    %v3904 = vpop.f32.mrb[0].mxu0
    %v3905 = vpop.f32.mrb[0].mxu0
    %v3906 = vadd.f32 %v3602, %v3905
    %v3907 = vpop.f32.mrb[0].mxu0
    %3908 = vdwg.mxu0
    %3909 = vmatprep.subr.bf16.mxu0 0
    %3910 = vmatpush1.bf16.msra.mxu0 %v3716
    %3911 = vmatprep.subr.bf16.mxu0 0
    %3912 = vmatpush1.bf16.msra.mxu0 %v3717
    %3913 = vmatprep.subr.bf16.mxu0 0
    %3914 = vmatpush1.bf16.msra.mxu0 %v3718
    %3915 = vmatprep.subr.bf16.mxu0 0
    %3916 = vmatpush1.bf16.msra.mxu0 %v3719
    %3917 = vmatprep.subr.bf16.mxu0 0
    %3918 = vmatpush1.bf16.msra.mxu0 %v3720
    %3919 = vmatprep.subr.bf16.mxu0 0
    %3920 = vmatpush1.bf16.msra.mxu0 %v3721
    %3921 = vmatprep.subr.bf16.mxu0 0
    %3922 = vmatpush1.bf16.msra.mxu0 %v3722
    %3923 = vmatprep.subr.bf16.mxu0 0
    %3924 = vmatpush1.bf16.msra.mxu0 %v3723
    %3925 = vmatprep.subr.bf16.mxu0 0
    %3926 = vmatpush1.bf16.msra.mxu0 0
    %3927 = vmatprep.subr.bf16.mxu0 0
    %3928 = vmatpush1.bf16.msra.mxu0 0
    %3929 = vmatprep.subr.bf16.mxu0 0
    %3930 = vmatpush1.bf16.msra.mxu0 0
    %3931 = vmatprep.subr.bf16.mxu0 0
    %3932 = vmatpush1.bf16.msra.mxu0 0
    %3933 = vmatprep.subr.bf16.mxu0 0
    %3934 = vmatpush1.bf16.msra.mxu0 0
    %3935 = vmatprep.subr.bf16.mxu0 0
    %3936 = vmatpush1.bf16.msra.mxu0 0
    %3937 = vmatprep.subr.bf16.mxu0 0
    %3938 = vmatpush1.bf16.msra.mxu0 0
    %3939 = vmatprep.subr.bf16.mxu0 0
    %3940 = vmatpush1.bf16.msra.mxu0 0
    %3941 = vmatprep.mubr.bf16.mxu0 0
    %3942 = vmatmul.mubr.bf16.gmra.mrb[0].mxu0 %v3501
    %v3943 = vpop.f32.mrb[0].mxu0
    %v3944 = vadd.f32 %v3783, %v3943
    %v3945 = vpop.f32.mrb[0].mxu0
    %v3946 = vpop.f32.mrb[0].mxu0
    %v3947 = vadd.f32 %v3786, %v3946
    %v3948 = vpop.f32.mrb[0].mxu0
    %3949 = vmatprep.mubr.bf16.mxu0 0
    %3950 = vmatmul.mubr.bf16.gmra.mrb[0].mxu0 %v3503
    %v3951 = vpop.f32.mrb[0].mxu0
    %v3952 = vadd.f32 %v3791, %v3951
    %v3953 = vpop.f32.mrb[0].mxu0
    %v3954 = vpop.f32.mrb[0].mxu0
    %v3955 = vadd.f32 %v3794, %v3954
    %v3956 = vpop.f32.mrb[0].mxu0
    %3957 = vmatprep.mubr.bf16.mxu0 0
    %3958 = vmatmul.mubr.bf16.gmra.mrb[0].mxu0 %v3505
    %v3959 = vpop.f32.mrb[0].mxu0
    %v3960 = vadd.f32 %v3799, %v3959
    %v3961 = vpop.f32.mrb[0].mxu0
    %v3962 = vpop.f32.mrb[0].mxu0
    %v3963 = vadd.f32 %v3802, %v3962
    %v3964 = vpop.f32.mrb[0].mxu0
    %3965 = vmatprep.mubr.bf16.mxu0 0
    %3966 = vmatmul.mubr.bf16.gmra.mrb[0].mxu0 %v3507
    %v3967 = vpop.f32.mrb[0].mxu0
    %v3968 = vadd.f32 %v3807, %v3967
    %v3969 = vpop.f32.mrb[0].mxu0
    %v3970 = vpop.f32.mrb[0].mxu0
    %v3971 = vadd.f32 %v3810, %v3970
    %v3972 = vpop.f32.mrb[0].mxu0
    %3973 = vmatprep.mubr.bf16.mxu0 0
    %3974 = vmatmul.mubr.bf16.gmra.mrb[0].mxu0 %v3509
    %v3975 = vpop.f32.mrb[0].mxu0
    %v3976 = vadd.f32 %v3815, %v3975
    %v3977 = vpop.f32.mrb[0].mxu0
    %v3978 = vpop.f32.mrb[0].mxu0
    %v3979 = vadd.f32 %v3818, %v3978
    %v3980 = vpop.f32.mrb[0].mxu0
    %3981 = vmatprep.mubr.bf16.mxu0 0
    %3982 = vmatmul.mubr.bf16.gmra.mrb[0].mxu0 %v3511
    %v3983 = vpop.f32.mrb[0].mxu0
    %v3984 = vadd.f32 %v3823, %v3983
    %v3985 = vpop.f32.mrb[0].mxu0
    %v3986 = vpop.f32.mrb[0].mxu0
    %v3987 = vadd.f32 %v3826, %v3986
    %v3988 = vpop.f32.mrb[0].mxu0
    %3989 = vmatprep.mubr.bf16.mxu0 0
    %3990 = vmatmul.mubr.bf16.gmra.mrb[0].mxu0 %v3513
    %v3991 = vpop.f32.mrb[0].mxu0
    %v3992 = vadd.f32 %v3831, %v3991
    %v3993 = vpop.f32.mrb[0].mxu0
    %v3994 = vpop.f32.mrb[0].mxu0
    %v3995 = vadd.f32 %v3834, %v3994
    %v3996 = vpop.f32.mrb[0].mxu0
    %3997 = vmatprep.mubr.bf16.mxu0 0
    %3998 = vmatmul.mubr.bf16.gmra.mrb[0].mxu0 %v3515
    %v3999 = vpop.f32.mrb[0].mxu0
    %v4000 = vadd.f32 %v3839, %v3999
    %v4001 = vpop.f32.mrb[0].mxu0
    %v4002 = vpop.f32.mrb[0].mxu0
    %v4003 = vadd.f32 %v3842, %v4002
    %v4004 = vpop.f32.mrb[0].mxu0
    %4005 = vmatprep.mubr.bf16.mxu0 0
    %4006 = vmatmul.mubr.bf16.gmra.mrb[0].mxu0 %v3518
    %v4007 = vpop.f32.mrb[0].mxu0
    %v4008 = vadd.f32 %v3847, %v4007
    %v4009 = vpop.f32.mrb[0].mxu0
    %v4010 = vpop.f32.mrb[0].mxu0
    %v4011 = vadd.f32 %v3850, %v4010
    %v4012 = vpop.f32.mrb[0].mxu0
    %4013 = vmatprep.mubr.bf16.mxu0 0
    %4014 = vmatmul.mubr.bf16.gmra.mrb[0].mxu0 %v3520
    %v4015 = vpop.f32.mrb[0].mxu0
    %v4016 = vadd.f32 %v3855, %v4015
    %v4017 = vpop.f32.mrb[0].mxu0
    %v4018 = vpop.f32.mrb[0].mxu0
    %v4019 = vadd.f32 %v3858, %v4018
    %v4020 = vpop.f32.mrb[0].mxu0
    %4021 = vmatprep.mubr.bf16.mxu0 0
    %4022 = vmatmul.mubr.bf16.gmra.mrb[0].mxu0 %v3522
    %v4023 = vpop.f32.mrb[0].mxu0
    %v4024 = vadd.f32 %v3863, %v4023
    %v4025 = vpop.f32.mrb[0].mxu0
    %v4026 = vpop.f32.mrb[0].mxu0
    %v4027 = vadd.f32 %v3866, %v4026
    %v4028 = vpop.f32.mrb[0].mxu0
    %4029 = vmatprep.mubr.bf16.mxu0 0
    %4030 = vmatmul.mubr.bf16.gmra.mrb[0].mxu0 %v3524
    %v4031 = vpop.f32.mrb[0].mxu0
    %v4032 = vadd.f32 %v3871, %v4031
    %v4033 = vpop.f32.mrb[0].mxu0
    %v4034 = vpop.f32.mrb[0].mxu0
    %v4035 = vadd.f32 %v3874, %v4034
    %v4036 = vpop.f32.mrb[0].mxu0
    %4037 = vmatprep.mubr.bf16.mxu0 0
    %4038 = vmatmul.mubr.bf16.gmra.mrb[0].mxu0 %v3526
    %v4039 = vpop.f32.mrb[0].mxu0
    %v4040 = vadd.f32 %v3879, %v4039
    %v4041 = vpop.f32.mrb[0].mxu0
    %v4042 = vpop.f32.mrb[0].mxu0
    %v4043 = vadd.f32 %v3882, %v4042
    %v4044 = vpop.f32.mrb[0].mxu0
    %4045 = vmatprep.mubr.bf16.mxu0 0
    %4046 = vmatmul.mubr.bf16.gmra.mrb[0].mxu0 %v3528
    %v4047 = vpop.f32.mrb[0].mxu0
    %v4048 = vadd.f32 %v3887, %v4047
    %v4049 = vpop.f32.mrb[0].mxu0
    %v4050 = vpop.f32.mrb[0].mxu0
    %v4051 = vadd.f32 %v3890, %v4050
    %v4052 = vpop.f32.mrb[0].mxu0
    %4053 = vmatprep.mubr.bf16.mxu0 0
    %4054 = vmatmul.mubr.bf16.gmra.mrb[0].mxu0 %v3530
    %v4055 = vpop.f32.mrb[0].mxu0
    %v4056 = vadd.f32 %v3895, %v4055
    %v4057 = vpop.f32.mrb[0].mxu0
    %v4058 = vpop.f32.mrb[0].mxu0
    %v4059 = vadd.f32 %v3898, %v4058
    %v4060 = vpop.f32.mrb[0].mxu0
    %4061 = vmatprep.mubr.bf16.mxu0 0
    %4062 = vmatmul.mubr.bf16.gmra.mrb[0].mxu0 %v3532
    %v4063 = vpop.f32.mrb[0].mxu0
    %v4064 = vadd.f32 %v3903, %v4063
    %v4065 = vpop.f32.mrb[0].mxu0
    %v4066 = vpop.f32.mrb[0].mxu0
    %v4067 = vadd.f32 %v3906, %v4066
    %v4068 = vpop.f32.mrb[0].mxu0
    %4069 = vdwg.mxu0
    %v4070 = vmax.f32 %v3944, 0.0
    %v4071 = vmax.f32 %v3947, 0.0
    %v4072 = vmax.f32 %v3952, 0.0
    %v4073 = vmax.f32 %v3955, 0.0
    %v4074 = vmax.f32 %v3960, 0.0
    %v4075 = vmax.f32 %v3963, 0.0
    %v4076 = vmax.f32 %v3968, 0.0
    %v4077 = vmax.f32 %v3971, 0.0
    %v4078 = vmax.f32 %v3976, 0.0
    %v4079 = vmax.f32 %v3979, 0.0
    %v4080 = vmax.f32 %v3984, 0.0
    %v4081 = vmax.f32 %v3987, 0.0
    %v4082 = vmax.f32 %v3992, 0.0
    %v4083 = vmax.f32 %v3995, 0.0
    %v4084 = vmax.f32 %v4000, 0.0
    %v4085 = vmax.f32 %v4003, 0.0
    %v4086 = vmax.f32 %v4008, 0.0
    %v4087 = vmax.f32 %v4011, 0.0
    %v4088 = vmax.f32 %v4016, 0.0
    %v4089 = vmax.f32 %v4019, 0.0
    %v4090 = vmax.f32 %v4024, 0.0
    %v4091 = vmax.f32 %v4027, 0.0
    %v4092 = vmax.f32 %v4032, 0.0
    %v4093 = vmax.f32 %v4035, 0.0
    %v4094 = vmax.f32 %v4040, 0.0
    %v4095 = vmax.f32 %v4043, 0.0
    %v4096 = vmax.f32 %v4048, 0.0
    %v4097 = vmax.f32 %v4051, 0.0
    %v4098 = vmax.f32 %v4056, 0.0
    %v4099 = vmax.f32 %v4059, 0.0
    %v4100 = vmax.f32 %v4064, 0.0
    %v4101 = vmax.f32 %v4067, 0.0
    %v4102 = vld [vmem:[%s5] sm:$0x3]
    %v4103 = vlaneseq
    %v4104 = vshrl.u32 %v4103, 7
    %v4105 = vsub.s32 0, %v4104
    %v4106 = vrot.slane %v4102, %v4105
    %v4107 = vmul.f32 %v4070, %v4106
    %v4108 = vmul.f32 %v4071, %v4106
    %v4109 = vmul.f32 %v4072, %v4106
    %v4110 = vmul.f32 %v4073, %v4106
    %v4111 = vmul.f32 %v4074, %v4106
    %v4112 = vmul.f32 %v4075, %v4106
    %v4113 = vmul.f32 %v4076, %v4106
    %v4114 = vmul.f32 %v4077, %v4106
    %v4115 = vmul.f32 %v4078, %v4106
    %v4116 = vmul.f32 %v4079, %v4106
    %v4117 = vmul.f32 %v4080, %v4106
    %v4118 = vmul.f32 %v4081, %v4106
    %v4119 = vmul.f32 %v4082, %v4106
    %v4120 = vmul.f32 %v4083, %v4106
    %v4121 = vmul.f32 %v4084, %v4106
    %v4122 = vmul.f32 %v4085, %v4106
    %v4123 = vmul.f32 %v4086, %v4106
    %v4124 = vmul.f32 %v4087, %v4106
    %v4125 = vmul.f32 %v4088, %v4106
    %v4126 = vmul.f32 %v4089, %v4106
    %v4127 = vmul.f32 %v4090, %v4106
    %v4128 = vmul.f32 %v4091, %v4106
    %v4129 = vmul.f32 %v4092, %v4106
    %v4130 = vmul.f32 %v4093, %v4106
    %v4131 = vmul.f32 %v4094, %v4106
    %v4132 = vmul.f32 %v4095, %v4106
    %v4133 = vmul.f32 %v4096, %v4106
    %v4134 = vmul.f32 %v4097, %v4106
    %v4135 = vmul.f32 %v4098, %v4106
    %v4136 = vmul.f32 %v4099, %v4106
    %v4137 = vmul.f32 %v4100, %v4106
    %v4138 = vmul.f32 %v4101, %v4106
    %4139 = vadd.xlane.f32.xlu0 %v4107
    %v4140 = vpop.xlane.xlu0 %4139
    %4141 = vadd.xlane.f32.xlu0 %v4108
    %v4142 = vpop.xlane.xlu0 %4141
    %4143 = vadd.xlane.f32.xlu0 %v4109
    %v4144 = vpop.xlane.xlu0 %4143
    %4145 = vadd.xlane.f32.xlu0 %v4110
    %v4146 = vpop.xlane.xlu0 %4145
    %4147 = vadd.xlane.f32.xlu0 %v4111
    %v4148 = vpop.xlane.xlu0 %4147
    %4149 = vadd.xlane.f32.xlu0 %v4112
    %v4150 = vpop.xlane.xlu0 %4149
    %4151 = vadd.xlane.f32.xlu0 %v4113
    %v4152 = vpop.xlane.xlu0 %4151
    %4153 = vadd.xlane.f32.xlu0 %v4114
    %v4154 = vpop.xlane.xlu0 %4153
    %4155 = vadd.xlane.f32.xlu0 %v4115
    %v4156 = vpop.xlane.xlu0 %4155
    %4157 = vadd.xlane.f32.xlu0 %v4116
    %v4158 = vpop.xlane.xlu0 %4157
    %4159 = vadd.xlane.f32.xlu0 %v4117
    %v4160 = vpop.xlane.xlu0 %4159
    %4161 = vadd.xlane.f32.xlu0 %v4118
    %v4162 = vpop.xlane.xlu0 %4161
    %4163 = vadd.xlane.f32.xlu0 %v4119
    %v4164 = vpop.xlane.xlu0 %4163
    %4165 = vadd.xlane.f32.xlu0 %v4120
    %v4166 = vpop.xlane.xlu0 %4165
    %4167 = vadd.xlane.f32.xlu0 %v4121
    %v4168 = vpop.xlane.xlu0 %4167
    %4169 = vadd.xlane.f32.xlu0 %v4122
    %v4170 = vpop.xlane.xlu0 %4169
    %4171 = vadd.xlane.f32.xlu0 %v4123
    %v4172 = vpop.xlane.xlu0 %4171
    %4173 = vadd.xlane.f32.xlu0 %v4124
    %v4174 = vpop.xlane.xlu0 %4173
    %4175 = vadd.xlane.f32.xlu0 %v4125
    %v4176 = vpop.xlane.xlu0 %4175
    %4177 = vadd.xlane.f32.xlu0 %v4126
    %v4178 = vpop.xlane.xlu0 %4177
    %4179 = vadd.xlane.f32.xlu0 %v4127
    %v4180 = vpop.xlane.xlu0 %4179
    %4181 = vadd.xlane.f32.xlu0 %v4128
    %v4182 = vpop.xlane.xlu0 %4181
    %4183 = vadd.xlane.f32.xlu0 %v4129
    %v4184 = vpop.xlane.xlu0 %4183
    %4185 = vadd.xlane.f32.xlu0 %v4130
    %v4186 = vpop.xlane.xlu0 %4185
    %4187 = vadd.xlane.f32.xlu0 %v4131
    %v4188 = vpop.xlane.xlu0 %4187
    %4189 = vadd.xlane.f32.xlu0 %v4132
    %v4190 = vpop.xlane.xlu0 %4189
    %4191 = vadd.xlane.f32.xlu0 %v4133
    %v4192 = vpop.xlane.xlu0 %4191
    %4193 = vadd.xlane.f32.xlu0 %v4134
    %v4194 = vpop.xlane.xlu0 %4193
    %4195 = vadd.xlane.f32.xlu0 %v4135
    %v4196 = vpop.xlane.xlu0 %4195
    %4197 = vadd.xlane.f32.xlu0 %v4136
    %v4198 = vpop.xlane.xlu0 %4197
    %4199 = vadd.xlane.f32.xlu0 %v4137
    %v4200 = vpop.xlane.xlu0 %4199
    %4201 = vadd.xlane.f32.xlu0 %v4138
    %v4202 = vpop.xlane.xlu0 %4201
    %s4203 = sld [smem:[#allocation2]]
    %v4204 = vstv %s4203
    %v4205 = vadd.f32 %v4140, %v4204
    %v4206 = vadd.f32 %v4142, %v4204
    %v4207 = vadd.f32 %v4144, %v4204
    %v4208 = vadd.f32 %v4146, %v4204
    %v4209 = vadd.f32 %v4148, %v4204
    %v4210 = vadd.f32 %v4150, %v4204
    %v4211 = vadd.f32 %v4152, %v4204
    %v4212 = vadd.f32 %v4154, %v4204
    %v4213 = vadd.f32 %v4156, %v4204
    %v4214 = vadd.f32 %v4158, %v4204
    %v4215 = vadd.f32 %v4160, %v4204
    %v4216 = vadd.f32 %v4162, %v4204
    %v4217 = vadd.f32 %v4164, %v4204
    %v4218 = vadd.f32 %v4166, %v4204
    %v4219 = vadd.f32 %v4168, %v4204
    %v4220 = vadd.f32 %v4170, %v4204
    %v4221 = vadd.f32 %v4172, %v4204
    %v4222 = vadd.f32 %v4174, %v4204
    %v4223 = vadd.f32 %v4176, %v4204
    %v4224 = vadd.f32 %v4178, %v4204
    %v4225 = vadd.f32 %v4180, %v4204
    %v4226 = vadd.f32 %v4182, %v4204
    %v4227 = vadd.f32 %v4184, %v4204
    %v4228 = vadd.f32 %v4186, %v4204
    %v4229 = vadd.f32 %v4188, %v4204
    %v4230 = vadd.f32 %v4190, %v4204
    %v4231 = vadd.f32 %v4192, %v4204
    %v4232 = vadd.f32 %v4194, %v4204
    %v4233 = vadd.f32 %v4196, %v4204
    %v4234 = vadd.f32 %v4198, %v4204
    %v4235 = vadd.f32 %v4200, %v4204
    %v4236 = vadd.f32 %v4202, %v4204
    %v4269 = vlaneseq
    %v4270 = vand.u32 %v4269, 127
    %v4271 = vlaneseq
    %v4272 = vshrl.u32 %v4271, 7
    %v4273 = vsub.s32 %v4270, %v4272
    %v4274 = vrot.slane %v4205, %v4273
    %v4275 = vadd.s32 %v4270, 4294967288
    %v4276 = vlaneseq
    %v4277 = vshrl.u32 %v4276, 7
    %v4278 = vsub.s32 %v4275, %v4277
    %v4279 = vrot.slane %v4206, %v4278
    %vm4280 = vcmask 130112
    %v4281 = vsel %vm4280, %v4279, %v4274
    %v4282 = vadd.s32 %v4270, 4294967280
    %v4283 = vlaneseq
    %v4284 = vshrl.u32 %v4283, 7
    %v4285 = vsub.s32 %v4282, %v4284
    %v4286 = vrot.slane %v4207, %v4285
    %vm4287 = vcmask 195712
    %v4288 = vsel %vm4287, %v4286, %v4281
    %v4289 = vadd.s32 %v4270, 4294967272
    %v4290 = vlaneseq
    %v4291 = vshrl.u32 %v4290, 7
    %v4292 = vsub.s32 %v4289, %v4291
    %v4293 = vrot.slane %v4208, %v4292
    %vm4294 = vcmask 261312
    %v4295 = vsel %vm4294, %v4293, %v4288
    %v4296 = vadd.s32 %v4270, 4294967264
    %v4297 = vlaneseq
    %v4298 = vshrl.u32 %v4297, 7
    %v4299 = vsub.s32 %v4296, %v4298
    %v4300 = vrot.slane %v4209, %v4299
    %vm4301 = vcmask 326912
    %v4302 = vsel %vm4301, %v4300, %v4295
    %v4303 = vadd.s32 %v4270, 4294967256
    %v4304 = vlaneseq
    %v4305 = vshrl.u32 %v4304, 7
    %v4306 = vsub.s32 %v4303, %v4305
    %v4307 = vrot.slane %v4210, %v4306
    %vm4308 = vcmask 392512
    %v4309 = vsel %vm4308, %v4307, %v4302
    %v4310 = vadd.s32 %v4270, 4294967248
    %v4311 = vlaneseq
    %v4312 = vshrl.u32 %v4311, 7
    %v4313 = vsub.s32 %v4310, %v4312
    %v4314 = vrot.slane %v4211, %v4313
    %vm4315 = vcmask 458112
    %v4316 = vsel %vm4315, %v4314, %v4309
    %v4317 = vadd.s32 %v4270, 4294967240
    %v4318 = vlaneseq
    %v4319 = vshrl.u32 %v4318, 7
    %v4320 = vsub.s32 %v4317, %v4319
    %v4321 = vrot.slane %v4212, %v4320
    %vm4322 = vcmask 523712
    %v4323 = vsel %vm4322, %v4321, %v4316
    %v4324 = vadd.s32 %v4270, 4294967232
    %v4325 = vlaneseq
    %v4326 = vshrl.u32 %v4325, 7
    %v4327 = vsub.s32 %v4324, %v4326
    %v4328 = vrot.slane %v4213, %v4327
    %vm4329 = vcmask 589312
    %v4330 = vsel %vm4329, %v4328, %v4323
    %v4331 = vadd.s32 %v4270, 4294967224
    %v4332 = vlaneseq
    %v4333 = vshrl.u32 %v4332, 7
    %v4334 = vsub.s32 %v4331, %v4333
    %v4335 = vrot.slane %v4214, %v4334
    %vm4336 = vcmask 654912
    %v4337 = vsel %vm4336, %v4335, %v4330
    %v4338 = vadd.s32 %v4270, 4294967216
    %v4339 = vlaneseq
    %v4340 = vshrl.u32 %v4339, 7
    %v4341 = vsub.s32 %v4338, %v4340
    %v4342 = vrot.slane %v4215, %v4341
    %vm4343 = vcmask 720512
    %v4344 = vsel %vm4343, %v4342, %v4337
    %v4345 = vadd.s32 %v4270, 4294967208
    %v4346 = vlaneseq
    %v4347 = vshrl.u32 %v4346, 7
    %v4348 = vsub.s32 %v4345, %v4347
    %v4349 = vrot.slane %v4216, %v4348
    %vm4350 = vcmask 786112
    %v4351 = vsel %vm4350, %v4349, %v4344
    %v4352 = vadd.s32 %v4270, 4294967200
    %v4353 = vlaneseq
    %v4354 = vshrl.u32 %v4353, 7
    %v4355 = vsub.s32 %v4352, %v4354
    %v4356 = vrot.slane %v4217, %v4355
    %vm4357 = vcmask 851712
    %v4358 = vsel %vm4357, %v4356, %v4351
    %v4359 = vadd.s32 %v4270, 4294967192
    %v4360 = vlaneseq
    %v4361 = vshrl.u32 %v4360, 7
    %v4362 = vsub.s32 %v4359, %v4361
    %v4363 = vrot.slane %v4218, %v4362
    %vm4364 = vcmask 917312
    %v4365 = vsel %vm4364, %v4363, %v4358
    %v4366 = vadd.s32 %v4270, 4294967184
    %v4367 = vlaneseq
    %v4368 = vshrl.u32 %v4367, 7
    %v4369 = vsub.s32 %v4366, %v4368
    %v4370 = vrot.slane %v4219, %v4369
    %vm4371 = vcmask 982912
    %v4372 = vsel %vm4371, %v4370, %v4365
    %v4373 = vadd.s32 %v4270, 4294967176
    %v4374 = vlaneseq
    %v4375 = vshrl.u32 %v4374, 7
    %v4376 = vsub.s32 %v4373, %v4375
    %v4377 = vrot.slane %v4220, %v4376
    %vm4378 = vcmask 1048512
    %v4379 = vsel %vm4378, %v4377, %v4372
    %v4380 = vlaneseq
    %v4381 = vshrl.u32 %v4380, 7
    %v4382 = vsub.s32 %v4270, %v4381
    %v4383 = vrot.slane %v4221, %v4382
    %v4384 = vlaneseq
    %v4385 = vshrl.u32 %v4384, 7
    %v4386 = vsub.s32 %v4275, %v4385
    %v4387 = vrot.slane %v4222, %v4386
    %v4388 = vsel %vm4280, %v4387, %v4383
    %v4389 = vlaneseq
    %v4390 = vshrl.u32 %v4389, 7
    %v4391 = vsub.s32 %v4282, %v4390
    %v4392 = vrot.slane %v4223, %v4391
    %v4393 = vsel %vm4287, %v4392, %v4388
    %v4394 = vlaneseq
    %v4395 = vshrl.u32 %v4394, 7
    %v4396 = vsub.s32 %v4289, %v4395
    %v4397 = vrot.slane %v4224, %v4396
    %v4398 = vsel %vm4294, %v4397, %v4393
    %v4399 = vlaneseq
    %v4400 = vshrl.u32 %v4399, 7
    %v4401 = vsub.s32 %v4296, %v4400
    %v4402 = vrot.slane %v4225, %v4401
    %v4403 = vsel %vm4301, %v4402, %v4398
    %v4404 = vlaneseq
    %v4405 = vshrl.u32 %v4404, 7
    %v4406 = vsub.s32 %v4303, %v4405
    %v4407 = vrot.slane %v4226, %v4406
    %v4408 = vsel %vm4308, %v4407, %v4403
    %v4409 = vlaneseq
    %v4410 = vshrl.u32 %v4409, 7
    %v4411 = vsub.s32 %v4310, %v4410
    %v4412 = vrot.slane %v4227, %v4411
    %v4413 = vsel %vm4315, %v4412, %v4408
    %v4414 = vlaneseq
    %v4415 = vshrl.u32 %v4414, 7
    %v4416 = vsub.s32 %v4317, %v4415
    %v4417 = vrot.slane %v4228, %v4416
    %v4418 = vsel %vm4322, %v4417, %v4413
    %v4419 = vlaneseq
    %v4420 = vshrl.u32 %v4419, 7
    %v4421 = vsub.s32 %v4324, %v4420
    %v4422 = vrot.slane %v4229, %v4421
    %v4423 = vsel %vm4329, %v4422, %v4418
    %v4424 = vlaneseq
    %v4425 = vshrl.u32 %v4424, 7
    %v4426 = vsub.s32 %v4331, %v4425
    %v4427 = vrot.slane %v4230, %v4426
    %v4428 = vsel %vm4336, %v4427, %v4423
    %v4429 = vlaneseq
    %v4430 = vshrl.u32 %v4429, 7
    %v4431 = vsub.s32 %v4338, %v4430
    %v4432 = vrot.slane %v4231, %v4431
    %v4433 = vsel %vm4343, %v4432, %v4428
    %v4434 = vlaneseq
    %v4435 = vshrl.u32 %v4434, 7
    %v4436 = vsub.s32 %v4345, %v4435
    %v4437 = vrot.slane %v4232, %v4436
    %v4438 = vsel %vm4350, %v4437, %v4433
    %v4439 = vlaneseq
    %v4440 = vshrl.u32 %v4439, 7
    %v4441 = vsub.s32 %v4352, %v4440
    %v4442 = vrot.slane %v4233, %v4441
    %v4443 = vsel %vm4357, %v4442, %v4438
    %v4444 = vlaneseq
    %v4445 = vshrl.u32 %v4444, 7
    %v4446 = vsub.s32 %v4359, %v4445
    %v4447 = vrot.slane %v4234, %v4446
    %v4448 = vsel %vm4364, %v4447, %v4443
    %v4449 = vlaneseq
    %v4450 = vshrl.u32 %v4449, 7
    %v4451 = vsub.s32 %v4366, %v4450
    %v4452 = vrot.slane %v4235, %v4451
    %v4453 = vsel %vm4371, %v4452, %v4448
    %v4454 = vlaneseq
    %v4455 = vshrl.u32 %v4454, 7
    %v4456 = vsub.s32 %v4373, %v4455
    %v4457 = vrot.slane %v4236, %v4456
    %v4458 = vsel %vm4378, %v4457, %v4453
    %4461 = vst [vmem:[#allocation5] sm:$0x1] %v4379
    %4462 = vst [vmem:[#allocation5 + $0x2] sm:$0x1] %v4458
    %v4463 = vlaneseq
    %v4464 = vshrl.u32 %v4463, 7
    %v4465 = vsub.s32 1, %v4464
    %v4466 = vrot.slane %v4102, %v4465
    %v4467 = vmul.f32 %v4070, %v4466
    %v4468 = vmul.f32 %v4071, %v4466
    %v4469 = vmul.f32 %v4072, %v4466
    %v4470 = vmul.f32 %v4073, %v4466
    %v4471 = vmul.f32 %v4074, %v4466
    %v4472 = vmul.f32 %v4075, %v4466
    %v4473 = vmul.f32 %v4076, %v4466
    %v4474 = vmul.f32 %v4077, %v4466
    %v4475 = vmul.f32 %v4078, %v4466
    %v4476 = vmul.f32 %v4079, %v4466
    %v4477 = vmul.f32 %v4080, %v4466
    %v4478 = vmul.f32 %v4081, %v4466
    %v4479 = vmul.f32 %v4082, %v4466
    %v4480 = vmul.f32 %v4083, %v4466
    %v4481 = vmul.f32 %v4084, %v4466
    %v4482 = vmul.f32 %v4085, %v4466
    %v4483 = vmul.f32 %v4086, %v4466
    %v4484 = vmul.f32 %v4087, %v4466
    %v4485 = vmul.f32 %v4088, %v4466
    %v4486 = vmul.f32 %v4089, %v4466
    %v4487 = vmul.f32 %v4090, %v4466
    %v4488 = vmul.f32 %v4091, %v4466
    %v4489 = vmul.f32 %v4092, %v4466
    %v4490 = vmul.f32 %v4093, %v4466
    %v4491 = vmul.f32 %v4094, %v4466
    %v4492 = vmul.f32 %v4095, %v4466
    %v4493 = vmul.f32 %v4096, %v4466
    %v4494 = vmul.f32 %v4097, %v4466
    %v4495 = vmul.f32 %v4098, %v4466
    %v4496 = vmul.f32 %v4099, %v4466
    %v4497 = vmul.f32 %v4100, %v4466
    %v4498 = vmul.f32 %v4101, %v4466
    %4499 = vadd.xlane.f32.xlu0 %v4467
    %v4500 = vpop.xlane.xlu0 %4499
    %4501 = vadd.xlane.f32.xlu0 %v4468
    %v4502 = vpop.xlane.xlu0 %4501
    %4503 = vadd.xlane.f32.xlu0 %v4469
    %v4504 = vpop.xlane.xlu0 %4503
    %4505 = vadd.xlane.f32.xlu0 %v4470
    %v4506 = vpop.xlane.xlu0 %4505
    %4507 = vadd.xlane.f32.xlu0 %v4471
    %v4508 = vpop.xlane.xlu0 %4507
    %4509 = vadd.xlane.f32.xlu0 %v4472
    %v4510 = vpop.xlane.xlu0 %4509
    %4511 = vadd.xlane.f32.xlu0 %v4473
    %v4512 = vpop.xlane.xlu0 %4511
    %4513 = vadd.xlane.f32.xlu0 %v4474
    %v4514 = vpop.xlane.xlu0 %4513
    %4515 = vadd.xlane.f32.xlu0 %v4475
    %v4516 = vpop.xlane.xlu0 %4515
    %4517 = vadd.xlane.f32.xlu0 %v4476
    %v4518 = vpop.xlane.xlu0 %4517
    %4519 = vadd.xlane.f32.xlu0 %v4477
    %v4520 = vpop.xlane.xlu0 %4519
    %4521 = vadd.xlane.f32.xlu0 %v4478
    %v4522 = vpop.xlane.xlu0 %4521
    %4523 = vadd.xlane.f32.xlu0 %v4479
    %v4524 = vpop.xlane.xlu0 %4523
    %4525 = vadd.xlane.f32.xlu0 %v4480
    %v4526 = vpop.xlane.xlu0 %4525
    %4527 = vadd.xlane.f32.xlu0 %v4481
    %v4528 = vpop.xlane.xlu0 %4527
    %4529 = vadd.xlane.f32.xlu0 %v4482
    %v4530 = vpop.xlane.xlu0 %4529
    %4531 = vadd.xlane.f32.xlu0 %v4483
    %v4532 = vpop.xlane.xlu0 %4531
    %4533 = vadd.xlane.f32.xlu0 %v4484
    %v4534 = vpop.xlane.xlu0 %4533
    %4535 = vadd.xlane.f32.xlu0 %v4485
    %v4536 = vpop.xlane.xlu0 %4535
    %4537 = vadd.xlane.f32.xlu0 %v4486
    %v4538 = vpop.xlane.xlu0 %4537
    %4539 = vadd.xlane.f32.xlu0 %v4487
    %v4540 = vpop.xlane.xlu0 %4539
    %4541 = vadd.xlane.f32.xlu0 %v4488
    %v4542 = vpop.xlane.xlu0 %4541
    %4543 = vadd.xlane.f32.xlu0 %v4489
    %v4544 = vpop.xlane.xlu0 %4543
    %4545 = vadd.xlane.f32.xlu0 %v4490
    %v4546 = vpop.xlane.xlu0 %4545
    %4547 = vadd.xlane.f32.xlu0 %v4491
    %v4548 = vpop.xlane.xlu0 %4547
    %4549 = vadd.xlane.f32.xlu0 %v4492
    %v4550 = vpop.xlane.xlu0 %4549
    %4551 = vadd.xlane.f32.xlu0 %v4493
    %v4552 = vpop.xlane.xlu0 %4551
    %4553 = vadd.xlane.f32.xlu0 %v4494
    %v4554 = vpop.xlane.xlu0 %4553
    %4555 = vadd.xlane.f32.xlu0 %v4495
    %v4556 = vpop.xlane.xlu0 %4555
    %4557 = vadd.xlane.f32.xlu0 %v4496
    %v4558 = vpop.xlane.xlu0 %4557
    %4559 = vadd.xlane.f32.xlu0 %v4497
    %v4560 = vpop.xlane.xlu0 %4559
    %4561 = vadd.xlane.f32.xlu0 %v4498
    %v4562 = vpop.xlane.xlu0 %4561
    %s4563 = sld [smem:[#allocation2 + $0x1]]
    %v4564 = vstv %s4563
    %v4565 = vadd.f32 %v4500, %v4564
    %v4566 = vadd.f32 %v4502, %v4564
    %v4567 = vadd.f32 %v4504, %v4564
    %v4568 = vadd.f32 %v4506, %v4564
    %v4569 = vadd.f32 %v4508, %v4564
    %v4570 = vadd.f32 %v4510, %v4564
    %v4571 = vadd.f32 %v4512, %v4564
    %v4572 = vadd.f32 %v4514, %v4564
    %v4573 = vadd.f32 %v4516, %v4564
    %v4574 = vadd.f32 %v4518, %v4564
    %v4575 = vadd.f32 %v4520, %v4564
    %v4576 = vadd.f32 %v4522, %v4564
    %v4577 = vadd.f32 %v4524, %v4564
    %v4578 = vadd.f32 %v4526, %v4564
    %v4579 = vadd.f32 %v4528, %v4564
    %v4580 = vadd.f32 %v4530, %v4564
    %v4581 = vadd.f32 %v4532, %v4564
    %v4582 = vadd.f32 %v4534, %v4564
    %v4583 = vadd.f32 %v4536, %v4564
    %v4584 = vadd.f32 %v4538, %v4564
    %v4585 = vadd.f32 %v4540, %v4564
    %v4586 = vadd.f32 %v4542, %v4564
    %v4587 = vadd.f32 %v4544, %v4564
    %v4588 = vadd.f32 %v4546, %v4564
    %v4589 = vadd.f32 %v4548, %v4564
    %v4590 = vadd.f32 %v4550, %v4564
    %v4591 = vadd.f32 %v4552, %v4564
    %v4592 = vadd.f32 %v4554, %v4564
    %v4593 = vadd.f32 %v4556, %v4564
    %v4594 = vadd.f32 %v4558, %v4564
    %v4595 = vadd.f32 %v4560, %v4564
    %v4596 = vadd.f32 %v4562, %v4564
    %v4629 = vlaneseq
    %v4630 = vshrl.u32 %v4629, 7
    %v4631 = vsub.s32 %v4270, %v4630
    %v4632 = vrot.slane %v4565, %v4631
    %v4633 = vlaneseq
    %v4634 = vshrl.u32 %v4633, 7
    %v4635 = vsub.s32 %v4275, %v4634
    %v4636 = vrot.slane %v4566, %v4635
    %v4637 = vsel %vm4280, %v4636, %v4632
    %v4638 = vlaneseq
    %v4639 = vshrl.u32 %v4638, 7
    %v4640 = vsub.s32 %v4282, %v4639
    %v4641 = vrot.slane %v4567, %v4640
    %v4642 = vsel %vm4287, %v4641, %v4637
    %v4643 = vlaneseq
    %v4644 = vshrl.u32 %v4643, 7
    %v4645 = vsub.s32 %v4289, %v4644
    %v4646 = vrot.slane %v4568, %v4645
    %v4647 = vsel %vm4294, %v4646, %v4642
    %v4648 = vlaneseq
    %v4649 = vshrl.u32 %v4648, 7
    %v4650 = vsub.s32 %v4296, %v4649
    %v4651 = vrot.slane %v4569, %v4650
    %v4652 = vsel %vm4301, %v4651, %v4647
    %v4653 = vlaneseq
    %v4654 = vshrl.u32 %v4653, 7
    %v4655 = vsub.s32 %v4303, %v4654
    %v4656 = vrot.slane %v4570, %v4655
    %v4657 = vsel %vm4308, %v4656, %v4652
    %v4658 = vlaneseq
    %v4659 = vshrl.u32 %v4658, 7
    %v4660 = vsub.s32 %v4310, %v4659
    %v4661 = vrot.slane %v4571, %v4660
    %v4662 = vsel %vm4315, %v4661, %v4657
    %v4663 = vlaneseq
    %v4664 = vshrl.u32 %v4663, 7
    %v4665 = vsub.s32 %v4317, %v4664
    %v4666 = vrot.slane %v4572, %v4665
    %v4667 = vsel %vm4322, %v4666, %v4662
    %v4668 = vlaneseq
    %v4669 = vshrl.u32 %v4668, 7
    %v4670 = vsub.s32 %v4324, %v4669
    %v4671 = vrot.slane %v4573, %v4670
    %v4672 = vsel %vm4329, %v4671, %v4667
    %v4673 = vlaneseq
    %v4674 = vshrl.u32 %v4673, 7
    %v4675 = vsub.s32 %v4331, %v4674
    %v4676 = vrot.slane %v4574, %v4675
    %v4677 = vsel %vm4336, %v4676, %v4672
    %v4678 = vlaneseq
    %v4679 = vshrl.u32 %v4678, 7
    %v4680 = vsub.s32 %v4338, %v4679
    %v4681 = vrot.slane %v4575, %v4680
    %v4682 = vsel %vm4343, %v4681, %v4677
    %v4683 = vlaneseq
    %v4684 = vshrl.u32 %v4683, 7
    %v4685 = vsub.s32 %v4345, %v4684
    %v4686 = vrot.slane %v4576, %v4685
    %v4687 = vsel %vm4350, %v4686, %v4682
    %v4688 = vlaneseq
    %v4689 = vshrl.u32 %v4688, 7
    %v4690 = vsub.s32 %v4352, %v4689
    %v4691 = vrot.slane %v4577, %v4690
    %v4692 = vsel %vm4357, %v4691, %v4687
    %v4693 = vlaneseq
    %v4694 = vshrl.u32 %v4693, 7
    %v4695 = vsub.s32 %v4359, %v4694
    %v4696 = vrot.slane %v4578, %v4695
    %v4697 = vsel %vm4364, %v4696, %v4692
    %v4698 = vlaneseq
    %v4699 = vshrl.u32 %v4698, 7
    %v4700 = vsub.s32 %v4366, %v4699
    %v4701 = vrot.slane %v4579, %v4700
    %v4702 = vsel %vm4371, %v4701, %v4697
    %v4703 = vlaneseq
    %v4704 = vshrl.u32 %v4703, 7
    %v4705 = vsub.s32 %v4373, %v4704
    %v4706 = vrot.slane %v4580, %v4705
    %v4707 = vsel %vm4378, %v4706, %v4702
    %v4708 = vlaneseq
    %v4709 = vshrl.u32 %v4708, 7
    %v4710 = vsub.s32 %v4270, %v4709
    %v4711 = vrot.slane %v4581, %v4710
    %v4712 = vlaneseq
    %v4713 = vshrl.u32 %v4712, 7
    %v4714 = vsub.s32 %v4275, %v4713
    %v4715 = vrot.slane %v4582, %v4714
    %v4716 = vsel %vm4280, %v4715, %v4711
    %v4717 = vlaneseq
    %v4718 = vshrl.u32 %v4717, 7
    %v4719 = vsub.s32 %v4282, %v4718
    %v4720 = vrot.slane %v4583, %v4719
    %v4721 = vsel %vm4287, %v4720, %v4716
    %v4722 = vlaneseq
    %v4723 = vshrl.u32 %v4722, 7
    %v4724 = vsub.s32 %v4289, %v4723
    %v4725 = vrot.slane %v4584, %v4724
    %v4726 = vsel %vm4294, %v4725, %v4721
    %v4727 = vlaneseq
    %v4728 = vshrl.u32 %v4727, 7
    %v4729 = vsub.s32 %v4296, %v4728
    %v4730 = vrot.slane %v4585, %v4729
    %v4731 = vsel %vm4301, %v4730, %v4726
    %v4732 = vlaneseq
    %v4733 = vshrl.u32 %v4732, 7
    %v4734 = vsub.s32 %v4303, %v4733
    %v4735 = vrot.slane %v4586, %v4734
    %v4736 = vsel %vm4308, %v4735, %v4731
    %v4737 = vlaneseq
    %v4738 = vshrl.u32 %v4737, 7
    %v4739 = vsub.s32 %v4310, %v4738
    %v4740 = vrot.slane %v4587, %v4739
    %v4741 = vsel %vm4315, %v4740, %v4736
    %v4742 = vlaneseq
    %v4743 = vshrl.u32 %v4742, 7
    %v4744 = vsub.s32 %v4317, %v4743
    %v4745 = vrot.slane %v4588, %v4744
    %v4746 = vsel %vm4322, %v4745, %v4741
    %v4747 = vlaneseq
    %v4748 = vshrl.u32 %v4747, 7
    %v4749 = vsub.s32 %v4324, %v4748
    %v4750 = vrot.slane %v4589, %v4749
    %v4751 = vsel %vm4329, %v4750, %v4746
    %v4752 = vlaneseq
    %v4753 = vshrl.u32 %v4752, 7
    %v4754 = vsub.s32 %v4331, %v4753
    %v4755 = vrot.slane %v4590, %v4754
    %v4756 = vsel %vm4336, %v4755, %v4751
    %v4757 = vlaneseq
    %v4758 = vshrl.u32 %v4757, 7
    %v4759 = vsub.s32 %v4338, %v4758
    %v4760 = vrot.slane %v4591, %v4759
    %v4761 = vsel %vm4343, %v4760, %v4756
    %v4762 = vlaneseq
    %v4763 = vshrl.u32 %v4762, 7
    %v4764 = vsub.s32 %v4345, %v4763
    %v4765 = vrot.slane %v4592, %v4764
    %v4766 = vsel %vm4350, %v4765, %v4761
    %v4767 = vlaneseq
    %v4768 = vshrl.u32 %v4767, 7
    %v4769 = vsub.s32 %v4352, %v4768
    %v4770 = vrot.slane %v4593, %v4769
    %v4771 = vsel %vm4357, %v4770, %v4766
    %v4772 = vlaneseq
    %v4773 = vshrl.u32 %v4772, 7
    %v4774 = vsub.s32 %v4359, %v4773
    %v4775 = vrot.slane %v4594, %v4774
    %v4776 = vsel %vm4364, %v4775, %v4771
    %v4777 = vlaneseq
    %v4778 = vshrl.u32 %v4777, 7
    %v4779 = vsub.s32 %v4366, %v4778
    %v4780 = vrot.slane %v4595, %v4779
    %v4781 = vsel %vm4371, %v4780, %v4776
    %v4782 = vlaneseq
    %v4783 = vshrl.u32 %v4782, 7
    %v4784 = vsub.s32 %v4373, %v4783
    %v4785 = vrot.slane %v4596, %v4784
    %v4786 = vsel %vm4378, %v4785, %v4781
    %4789 = vst [vmem:[#allocation5 + $0x1] sm:$0x1] %v4707
    %4790 = vst [vmem:[#allocation5 + $0x3] sm:$0x1] %v4786
    // Predicated region
    $region34: #{_forward_impl.1} parent=1 // pred_check
      _
    $region35: #{_forward_impl.1} parent=1 // pred_check_branch
      %4792 = sbr.rel (0) target = $region37
    $region36: #{_forward_impl.1} parent=1 // pred_region
      %s4794 = ssub.s32 64, 64
      %4795 = vsyncadd [#allocation3], %s4794
      %s4796 = sshll.u32 [#allocation5], 4
      %s4797 = int_to_ptr.vmem [resolvable:$true] %s4796
      %4802 = dma.vmem_to_hbm [thread:$0]  %s4797, 64, %s7, [#allocation3], 32, 32, 2
    $region37: #{_forward_impl.1} parent=1 // pred_fallthru
      _
    // Predicated region
    $region38: #{_forward_impl.1} parent=1 // pred_check
      _
    $region39: #{_forward_impl.1} parent=1 // pred_check_branch
      %4804 = sbr.rel (0) target = $region41
    $region40: #{_forward_impl.1} parent=1 // pred_region
      %4805 = dma.done [#allocation3], 64
    $region41: #{_forward_impl.1} parent=1 // pred_fallthru
      _
    %4806 = vsyncpa [#allocation3], 1
    %4807 = vsyncpa [#allocation4], 1

</llo_original>
